<compile_context>
chip_gen: v5e
topology: v5e:2x2
jax: 0.10.0
libtpu: 0.0.40
codegen_flags: <defaults>
</compile_context>

<pallas_src>
import functools

import jax
import jax.numpy as jnp
from jax.experimental import pallas as pl
from jax.experimental.pallas import tpu as pltpu

LANE = 128      # dueling-head output padded to a full 128-lane block
CP1 = 64        # conv1 output channels padded 32 -> 64 (keeps lane slices 128-aligned)
EPS = 1e-5      # BatchNorm eps


def _round_up(n, m):
    return (n + m - 1) // m * m


# ----------------------------- fused Pallas kernel ---------------------------

def _fused_dqn_kernel(x_ref, w1_ref, s1_ref, w2_ref, s2_ref, w3_ref, s3_ref,
                      wh1_ref, bh1_ref, wh2_ref, bh2_ref, o_ref, *, n_actions):
    """One grid step = one batch tile (TB). Everything stays VMEM resident.

    x_ref : (8, TB*8, 64*Cin) bf16  host-built conv1 im2col patches,
            dim0 = conv1 output column q, dim1 = b*8 + p (output row), lanes = K
    w*    : bf16 weights with BN scale folded in (zero-padded lanes stay zero
            on purpose -- ReLU then keeps padded channels at exactly 0)
    s*    : (1, Cout) f32 per-channel shifts (BN beta + folded conv bias)
    wh1   : (64, 1024) bf16   [wa1 | wv1]
    wh2   : (1024, 128) bf16  block matrix: adv in cols 0..A-1, val in col A
    """
    TB = o_ref.shape[0]
    R = TB * 8                       # rows per conv1 output-column block
    C1 = w1_ref.shape[1]             # conv1 out channels (padded) = CP1

    # ---- conv1: 8x8 stride 4 (patches built on host) -> one big matmul ------
    x = x_ref[...]                                        # (8, R, 64*Cin) bf16
    xf = x.reshape(8 * R, x.shape[-1])                    # leading merge (free)
    y1 = jnp.dot(xf, w1_ref[...], preferred_element_type=jnp.float32)  # (8R,C1)
    y1 = jnp.maximum(y1 + s1_ref[...], 0.0)
    # Fold the conv1 output column q into the lane dim (aligned slices only):
    # result (TB, 8, 8*C1) with lane index = q*C1 + c.
    y1 = jnp.concatenate([y1[q * R:(q + 1) * R, :] for q in range(8)], axis=-1)
    y1 = y1.reshape(TB, 8, 8 * C1)                        # leading split (free)

    # ---- conv2: 4x4 stride 2 -- build ONLY the 9 (3x3) consumed positions ---
    rows = [y1[:, r, :] for r in range(8)]                # 8 x (TB, 8*C1)
    wins = []
    for p in range(3):
        for q in range(3):
            lo = 2 * q * C1                               # 128-aligned offset
            wins.append(jnp.concatenate(
                [rows[2 * p + i][:, lo:lo + 4 * C1] for i in range(4)],
                axis=-1))                                 # (TB, 16*C1)
    p2 = jnp.concatenate(wins, axis=0)                    # (9*TB, 16*C1) f32
    y2 = jnp.dot(p2.astype(jnp.bfloat16), w2_ref[...],
                 preferred_element_type=jnp.float32)      # (9*TB, 64)
    y2 = jnp.maximum(y2 + s2_ref[...], 0.0)

    # ---- conv3: 3x3 stride 1 on the 3x3 map (1x1 output => fully connected) -
    p3 = jnp.concatenate([y2[t * TB:(t + 1) * TB, :] for t in range(9)],
                         axis=-1)                         # (TB, 576)
    y3 = jnp.dot(p3.astype(jnp.bfloat16), w3_ref[...],
                 preferred_element_type=jnp.float32)      # (TB, 64)
    y3 = jnp.maximum(y3 + s3_ref[...], 0.0)

    # ---- dueling head: two fused lane-dense matmuls --------------------------
    h = jnp.dot(y3.astype(jnp.bfloat16), wh1_ref[...],
                preferred_element_type=jnp.float32) + bh1_ref[...]
    h = jnp.maximum(h, 0.0)                               # (TB, 1024)
    o2 = jnp.dot(h.astype(jnp.bfloat16), wh2_ref[...],
                 preferred_element_type=jnp.float32) + bh2_ref[...]   # (TB,128)
    adv = o2[:, :n_actions]
    val = o2[:, n_actions:n_actions + 1]
    # Lane-dense write: lanes 0..n_actions-1 hold the Q-values, the rest is
    # irrelevant (sliced off in the wrapper).
    o_ref[...] = o2 + (val - jnp.mean(adv, axis=1, keepdims=True))


# ------------------------------- JAX wrapper ---------------------------------

def dueling_dqn_forward(packed, x_nchw, n_actions, *, batch_tile=None):
    """Matches DuelingDQN.forward(x) for NCHW float32 input (36x36 spatial)."""
    B, C, H, W = x_nchw.shape
    assert H % 4 == 0 and W % 4 == 0
    Hs, Ws = H // 4, W // 4
    assert (Hs, Ws) == (9, 9), "fused kernel expects 36x36 spatial input"

    # Batch tile: multiple of 8 so every in-kernel sublane slice / concat is
    # (8,128)-tile aligned. Default 32; raise (64-128) for large batches.
    TB = batch_tile if batch_tile is not None else min(32, _round_up(B, 8))
    assert TB % 8 == 0
    B_pad = _round_up(B, TB)
    grid = (B_pad // TB,)

    x = x_nchw.astype(jnp.float32)
    if B_pad != B:
        x = jnp.pad(x, ((0, B_pad - B), (0, 0), (0, 0), (0, 0)))

    # Host-side im2col for conv1 (cheap XLA permutation/slice work):
    #   space-to-depth(4), then the 4 s2d cells of each 8x8/stride-4 window are
    #   concatenated along channels; rows laid out (q, b, p) so the kernel can
    #   fold q into lanes with contiguous row-block slices only.
    #   lane index = (di*2+dj)*16C + r*4C + s*C + c  (kernel i=4di+r, j=4dj+s)
    xs = x.reshape(B_pad, C, Hs, 4, Ws, 4)
    xs = jnp.transpose(xs, (0, 2, 4, 3, 5, 1)).reshape(B_pad, Hs, Ws, 16 * C)
    x1 = jnp.concatenate([xs[:, di:di + 8, dj:dj + 8, :]
                          for di in range(2) for dj in range(2)], axis=-1)
    x1 = jnp.transpose(x1, (2, 0, 1, 3)).reshape(8, B_pad * 8, 64 * C)
    x1 = x1.astype(jnp.bfloat16)

    weight_names = ('w1', 's1', 'w2', 's2', 'w3', 's3', 'wh1', 'bh1', 'wh2', 'bh2')
    weights = [packed[k] for k in weight_names]

    def _full_spec(arr):
        nd = arr.ndim
        return pl.BlockSpec(arr.shape, lambda i, _nd=nd: (0,) * _nd)

    in_specs = [pl.BlockSpec((8, TB * 8, 64 * C), lambda i: (0, i, 0))]
    in_specs += [_full_spec(w) for w in weights]
    out_spec = pl.BlockSpec((TB, LANE), lambda i: (i, 0))

    kernel = functools.partial(_fused_dqn_kernel, n_actions=n_actions)
    out = pl.pallas_call(
        kernel,
        out_shape=jax.ShapeDtypeStruct((B_pad, LANE), jnp.float32),
        grid=grid,
        in_specs=in_specs,
        out_specs=out_spec,
        compiler_params=pltpu.CompilerParams(
            dimension_semantics=("parallel",),
            vmem_limit_bytes=32 * 1024 * 1024),
    )(x1, *weights)
    return out[:B, :n_actions]


# ----------------------------- parameter packing -----------------------------

def _bn_fold(layer):
    scale = layer['gamma'] / jnp.sqrt(layer['var'] + EPS)
    shift = layer['beta'] + (layer['bias'] - layer['mean']) * scale
    return scale, shift


def pack_params(params, n_actions):
    """Fold BN(eval) into bf16 weights and pre-arrange weight rows to match the
    kernel's patch orderings. NOTE: padded channels rely on zero-fill (so ReLU
    keeps them exactly 0 and downstream zero weight rows ignore them)."""
    c1, c2, c3 = params['conv']

    # conv1: K index = (di*2+dj)*16*Cin + r*4*Cin + s*Cin + c ; co padded to CP1
    scale1, sh1 = _bn_fold(c1)
    co1, ci1, _, _ = c1['w'].shape                       # (32, C, 8, 8)
    w1 = c1['w'].astype(jnp.float32) * scale1[:, None, None, None]
    w1 = w1.reshape(co1, ci1, 2, 4, 2, 4)                # (co, c, di, r, dj, s)
    w1 = jnp.transpose(w1, (2, 4, 3, 5, 1, 0)).reshape(64 * ci1, co1)
    w1 = jnp.pad(w1, ((0, 0), (0, CP1 - co1))).astype(jnp.bfloat16)
    s1 = jnp.pad(sh1, (0, CP1 - co1)).reshape(1, CP1).astype(jnp.float32)

    # conv2: ci padded 32 -> CP1, K index = (i*4+j)*CP1 + c ; co stays 64
    scale2, sh2 = _bn_fold(c2)
    co2, ci2, kh2, kw2 = c2['w'].shape                   # (64, 32, 4, 4)
    w2 = c2['w'].astype(jnp.float32) * scale2[:, None, None, None]
    w2 = jnp.pad(w2, ((0, 0), (0, CP1 - ci2), (0, 0), (0, 0)))
    w2 = jnp.transpose(w2, (2, 3, 1, 0)).reshape(kh2 * kw2 * CP1, co2)
    w2 = w2.astype(jnp.bfloat16)
    s2 = sh2.reshape(1, co2).astype(jnp.float32)

    # conv3: K index = (u*3+v)*64 + c ; co stays 64
    scale3, sh3 = _bn_fold(c3)
    co3, ci3, kh3, kw3 = c3['w'].shape                   # (64, 64, 3, 3)
    w3 = c3['w'].astype(jnp.float32) * scale3[:, None, None, None]
    w3 = jnp.transpose(w3, (2, 3, 1, 0)).reshape(kh3 * kw3 * ci3, co3)
    w3 = w3.astype(jnp.bfloat16)
    s3 = sh3.reshape(1, co3).astype(jnp.float32)

    fc = params['fc']
    hid = fc['wa1'].shape[1]
    wh1 = jnp.concatenate([fc['wa1'].astype(jnp.float32),
                           fc['wv1'].astype(jnp.float32)],
                          axis=1).astype(jnp.bfloat16)   # (64, 1024)
    bh1 = jnp.concatenate([fc['ba1'], fc['bv1']], axis=1).astype(jnp.float32)

    wh2 = jnp.zeros((2 * hid, LANE), jnp.float32)
    wh2 = wh2.at[:hid, :n_actions].set(fc['wa2'].astype(jnp.float32))
    wh2 = wh2.at[hid:, n_actions].set(fc['wv2'].astype(jnp.float32)[:, 0])
    wh2 = wh2.astype(jnp.bfloat16)
    bh2 = jnp.zeros((1, LANE), jnp.float32)
    bh2 = bh2.at[0, :n_actions].set(fc['ba2'][0])
    bh2 = bh2.at[0, n_actions].set(fc['bv2'][0, 0])

    return dict(w1=w1, s1=s1, w2=w2, s2=s2, w3=w3, s3=s3,
                wh1=wh1, bh1=bh1, wh2=wh2, bh2=bh2)


# ------------------------------- init & reference ----------------------------

def init_params(key, in_ch, n_actions):
    conv_cfg = [(in_ch, 32, 8, 4), (32, 64, 4, 2), (64, 64, 3, 1)]
    keys = iter(jax.random.split(key, 6 * len(conv_cfg) + 8))
    conv = []
    for cin, cout, k, s in conv_cfg:
        w = jax.random.normal(next(keys), (cout, cin, k, k),
                              jnp.float32) / jnp.sqrt(cin * k * k)
        conv.append(dict(
            w=w.astype(jnp.bfloat16),            # weights stored in bf16
            bias=0.01 * jax.random.normal(next(keys), (cout,), jnp.float32),
            gamma=1.0 + 0.1 * jax.random.normal(next(keys), (cout,), jnp.float32),
            beta=0.1 * jax.random.normal(next(keys), (cout,), jnp.float32),
            mean=0.05 * jax.random.normal(next(keys), (cout,), jnp.float32),
            var=1.0 + 0.1 * jax.random.uniform(next(keys), (cout,), jnp.float32),
            kernel=k, stride=s))
    conv_out = 64   # 36x36 input -> conv trunk output is (64, 1, 1)

    def lin(kk, fin, fout):
        return (jax.random.normal(kk, (fin, fout), jnp.float32)
                / jnp.sqrt(fin)).astype(jnp.bfloat16)

    fc = dict(
        wa1=lin(next(keys), conv_out, 512),
        ba1=0.01 * jax.random.normal(next(keys), (1, 512), jnp.float32),
        wa2=lin(next(keys), 512, n_actions),
        ba2=0.01 * jax.random.normal(next(keys), (1, n_actions), jnp.float32),
        wv1=lin(next(keys), conv_out, 512),
        bv1=0.01 * jax.random.normal(next(keys), (1, 512), jnp.float32),
        wv2=lin(next(keys), 512, 1),
        bv2=0.01 * jax.random.normal(next(keys), (1, 1), jnp.float32),
    )
    return dict(conv=conv, fc=fc)


def reference_forward(params, x_nchw):
    """Pure-JAX f32 reference (lax.conv + BN(eval) + dueling head)."""
    x = x_nchw
    for layer in params['conv']:
        w = layer['w'].astype(jnp.float32)
        x = jax.lax.conv_general_dilated(
            x, w, (layer['stride'], layer['stride']), 'VALID',
            dimension_numbers=('NCHW', 'OIHW', 'NCHW'))
        x = x + layer['bias'].reshape(1, -1, 1, 1)
        scale = layer['gamma'] / jnp.sqrt(layer['var'] + EPS)
        x = (x - layer['mean'].reshape(1, -1, 1, 1)) * scale.reshape(1, -1, 1, 1) \
            + layer['beta'].reshape(1, -1, 1, 1)
        x = jnp.maximum(x, 0.0)
    flat = x.reshape(x.shape[0], -1)       # PyTorch flatten (C,H,W); here 1x1
    fc = params['fc']
    ha = jnp.maximum(flat @ fc['wa1'].astype(jnp.float32) + fc['ba1'], 0.0)
    adv = ha @ fc['wa2'].astype(jnp.float32) + fc['ba2']
    hv = jnp.maximum(flat @ fc['wv1'].astype(jnp.float32) + fc['bv1'], 0.0)
    val = hv @ fc['wv2'].astype(jnp.float32) + fc['bv2']
    return val + adv - jnp.mean(adv, axis=1, keepdims=True)


# ------------------------------------ main ------------------------------------

if __name__ == "__main__":
    B, C, H, W = 2, 4, 36, 36          # 36x36 -> 8x8 -> 3x3 -> 1x1 spatial
    n_actions = 6

    key = jax.random.PRNGKey(0)
    pkey, xkey = jax.random.split(key)
    params = init_params(pkey, C, n_actions)
    packed = pack_params(params, n_actions)
    x = jax.random.normal(xkey, (B, C, H, W), jnp.float32)

    fwd = jax.jit(lambda xx: dueling_dqn_forward(packed, xx, n_actions))
    out = jax.block_until_ready(fwd(x))

    ref = reference_forward(params, x)
    assert out.shape == (B, n_actions), out.shape
    # Tolerance covers bf16 matmul operands / activation rounding.
    assert jnp.allclose(out, ref, rtol=2e-2, atol=2e-2), (out, ref)

    print("KERNEL_OK")
</pallas_src>

<mosaic_0001>
module attributes {stable_mosaic.version = 11 : i64} {
  func.func @_fused_dqn_kernel(%arg0: i32, %arg1: memref<8x64x256xbf16, #tpu.memory_space<vmem>>, %arg2: memref<256x64xbf16, #tpu.memory_space<vmem>>, %arg3: memref<1x64xf32, #tpu.memory_space<vmem>>, %arg4: memref<1024x64xbf16, #tpu.memory_space<vmem>>, %arg5: memref<1x64xf32, #tpu.memory_space<vmem>>, %arg6: memref<576x64xbf16, #tpu.memory_space<vmem>>, %arg7: memref<1x64xf32, #tpu.memory_space<vmem>>, %arg8: memref<64x1024xbf16, #tpu.memory_space<vmem>>, %arg9: memref<1x1024xf32, #tpu.memory_space<vmem>>, %arg10: memref<1024x128xbf16, #tpu.memory_space<vmem>>, %arg11: memref<1x128xf32, #tpu.memory_space<vmem>>, %arg12: memref<8x128xf32, #tpu.memory_space<vmem>>) attributes {dimension_semantics = [#tpu.dimension_semantics<parallel>], iteration_bounds = array<i64: 1>, scalar_prefetch = 0 : i64, scratch_operands = 0 : i64, tpu.core_type = #tpu.core_type<tc>, window_params = [{transform_indices = @transform_0, window_bounds = array<i64: 8, 64, 256>}, {pipeline_mode = #tpu.pipeline_mode<synchronous>, transform_indices = @transform_1, window_bounds = array<i64: 256, 64>}, {pipeline_mode = #tpu.pipeline_mode<synchronous>, transform_indices = @transform_2, window_bounds = array<i64: 1, 64>}, {pipeline_mode = #tpu.pipeline_mode<synchronous>, transform_indices = @transform_3, window_bounds = array<i64: 1024, 64>}, {pipeline_mode = #tpu.pipeline_mode<synchronous>, transform_indices = @transform_4, window_bounds = array<i64: 1, 64>}, {pipeline_mode = #tpu.pipeline_mode<synchronous>, transform_indices = @transform_5, window_bounds = array<i64: 576, 64>}, {pipeline_mode = #tpu.pipeline_mode<synchronous>, transform_indices = @transform_6, window_bounds = array<i64: 1, 64>}, {pipeline_mode = #tpu.pipeline_mode<synchronous>, transform_indices = @transform_7, window_bounds = array<i64: 64, 1024>}, {pipeline_mode = #tpu.pipeline_mode<synchronous>, transform_indices = @transform_8, window_bounds = array<i64: 1, 1024>}, {pipeline_mode = #tpu.pipeline_mode<synchronous>, transform_indices = @transform_9, window_bounds = array<i64: 1024, 128>}, {pipeline_mode = #tpu.pipeline_mode<synchronous>, transform_indices = @transform_10, window_bounds = array<i64: 1, 128>}, {transform_indices = @transform_11, window_bounds = array<i64: 8, 128>}]} {
    %c0 = arith.constant 0 : index
    %c0_0 = arith.constant 0 : index
    %c0_1 = arith.constant 0 : index
    %0 = vector.load %arg1[%c0, %c0_0, %c0_1] : memref<8x64x256xbf16, #tpu.memory_space<vmem>>, vector<8x64x256xbf16>
    %1 = vector.shape_cast %0 : vector<8x64x256xbf16> to vector<512x256xbf16>
    %c0_2 = arith.constant 0 : index
    %c0_3 = arith.constant 0 : index
    %2 = vector.load %arg2[%c0_2, %c0_3] : memref<256x64xbf16, #tpu.memory_space<vmem>>, vector<256x64xbf16>
    %cst = arith.constant dense<0.000000e+00> : vector<512x64xf32>
    %3 = tpu.matmul %1, %2, %cst {dimension_numbers = #tpu.dot_dimension_numbers<[1], [0], [0], [1], [0, 0, 1, 1], [], []>} : vector<512x256xbf16>, vector<256x64xbf16>, vector<512x64xf32> -> vector<512x64xf32>
    %c0_4 = arith.constant 0 : index
    %c0_5 = arith.constant 0 : index
    %4 = vector.load %arg3[%c0_4, %c0_5] : memref<1x64xf32, #tpu.memory_space<vmem>>, vector<1x64xf32>
    %5 = vector.broadcast %4 : vector<1x64xf32> to vector<512x64xf32>
    %6 = arith.addf %3, %5 : vector<512x64xf32>
    %cst_6 = arith.constant 0.000000e+00 : f32
    %7 = vector.broadcast %cst_6 : f32 to vector<512x64xf32>
    %8 = arith.maximumf %6, %7 : vector<512x64xf32>
    %9 = vector.extract_strided_slice %8 {offsets = [0, 0], sizes = [64, 64], strides = [1, 1]} : vector<512x64xf32> to vector<64x64xf32>
    %10 = vector.extract_strided_slice %8 {offsets = [64, 0], sizes = [64, 64], strides = [1, 1]} : vector<512x64xf32> to vector<64x64xf32>
    %11 = vector.extract_strided_slice %8 {offsets = [128, 0], sizes = [64, 64], strides = [1, 1]} : vector<512x64xf32> to vector<64x64xf32>
    %12 = vector.extract_strided_slice %8 {offsets = [192, 0], sizes = [64, 64], strides = [1, 1]} : vector<512x64xf32> to vector<64x64xf32>
    %13 = vector.extract_strided_slice %8 {offsets = [256, 0], sizes = [64, 64], strides = [1, 1]} : vector<512x64xf32> to vector<64x64xf32>
    %14 = vector.extract_strided_slice %8 {offsets = [320, 0], sizes = [64, 64], strides = [1, 1]} : vector<512x64xf32> to vector<64x64xf32>
    %15 = vector.extract_strided_slice %8 {offsets = [384, 0], sizes = [64, 64], strides = [1, 1]} : vector<512x64xf32> to vector<64x64xf32>
    %16 = vector.extract_strided_slice %8 {offsets = [448, 0], sizes = [64, 64], strides = [1, 1]} : vector<512x64xf32> to vector<64x64xf32>
    %17 = tpu.concatenate %9, %10, %11, %12, %13, %14, %15, %16 in 1 : vector<64x64xf32>, vector<64x64xf32>, vector<64x64xf32>, vector<64x64xf32>, vector<64x64xf32>, vector<64x64xf32>, vector<64x64xf32>, vector<64x64xf32> -> vector<64x512xf32>
    %18 = vector.shape_cast %17 : vector<64x512xf32> to vector<8x8x512xf32>
    %19 = vector.extract_strided_slice %18 {offsets = [0, 0, 0], sizes = [8, 1, 512], strides = [1, 1, 1]} : vector<8x8x512xf32> to vector<8x1x512xf32>
    %20 = vector.shape_cast %19 : vector<8x1x512xf32> to vector<8x512xf32>
    %21 = vector.extract_strided_slice %18 {offsets = [0, 1, 0], sizes = [8, 1, 512], strides = [1, 1, 1]} : vector<8x8x512xf32> to vector<8x1x512xf32>
    %22 = vector.shape_cast %21 : vector<8x1x512xf32> to vector<8x512xf32>
    %23 = vector.extract_strided_slice %18 {offsets = [0, 2, 0], sizes = [8, 1, 512], strides = [1, 1, 1]} : vector<8x8x512xf32> to vector<8x1x512xf32>
    %24 = vector.shape_cast %23 : vector<8x1x512xf32> to vector<8x512xf32>
    %25 = vector.extract_strided_slice %18 {offsets = [0, 3, 0], sizes = [8, 1, 512], strides = [1, 1, 1]} : vector<8x8x512xf32> to vector<8x1x512xf32>
    %26 = vector.shape_cast %25 : vector<8x1x512xf32> to vector<8x512xf32>
    %27 = vector.extract_strided_slice %18 {offsets = [0, 4, 0], sizes = [8, 1, 512], strides = [1, 1, 1]} : vector<8x8x512xf32> to vector<8x1x512xf32>
    %28 = vector.shape_cast %27 : vector<8x1x512xf32> to vector<8x512xf32>
    %29 = vector.extract_strided_slice %18 {offsets = [0, 5, 0], sizes = [8, 1, 512], strides = [1, 1, 1]} : vector<8x8x512xf32> to vector<8x1x512xf32>
    %30 = vector.shape_cast %29 : vector<8x1x512xf32> to vector<8x512xf32>
    %31 = vector.extract_strided_slice %18 {offsets = [0, 6, 0], sizes = [8, 1, 512], strides = [1, 1, 1]} : vector<8x8x512xf32> to vector<8x1x512xf32>
    %32 = vector.shape_cast %31 : vector<8x1x512xf32> to vector<8x512xf32>
    %33 = vector.extract_strided_slice %18 {offsets = [0, 7, 0], sizes = [8, 1, 512], strides = [1, 1, 1]} : vector<8x8x512xf32> to vector<8x1x512xf32>
    %34 = vector.shape_cast %33 : vector<8x1x512xf32> to vector<8x512xf32>
    %35 = vector.extract_strided_slice %20 {offsets = [0, 0], sizes = [8, 256], strides = [1, 1]} : vector<8x512xf32> to vector<8x256xf32>
    %36 = vector.extract_strided_slice %22 {offsets = [0, 0], sizes = [8, 256], strides = [1, 1]} : vector<8x512xf32> to vector<8x256xf32>
    %37 = vector.extract_strided_slice %24 {offsets = [0, 0], sizes = [8, 256], strides = [1, 1]} : vector<8x512xf32> to vector<8x256xf32>
    %38 = vector.extract_strided_slice %26 {offsets = [0, 0], sizes = [8, 256], strides = [1, 1]} : vector<8x512xf32> to vector<8x256xf32>
    %39 = tpu.concatenate %35, %36, %37, %38 in 1 : vector<8x256xf32>, vector<8x256xf32>, vector<8x256xf32>, vector<8x256xf32> -> vector<8x1024xf32>
    %40 = vector.extract_strided_slice %20 {offsets = [0, 128], sizes = [8, 256], strides = [1, 1]} : vector<8x512xf32> to vector<8x256xf32>
    %41 = vector.extract_strided_slice %22 {offsets = [0, 128], sizes = [8, 256], strides = [1, 1]} : vector<8x512xf32> to vector<8x256xf32>
    %42 = vector.extract_strided_slice %24 {offsets = [0, 128], sizes = [8, 256], strides = [1, 1]} : vector<8x512xf32> to vector<8x256xf32>
    %43 = vector.extract_strided_slice %26 {offsets = [0, 128], sizes = [8, 256], strides = [1, 1]} : vector<8x512xf32> to vector<8x256xf32>
    %44 = tpu.concatenate %40, %41, %42, %43 in 1 : vector<8x256xf32>, vector<8x256xf32>, vector<8x256xf32>, vector<8x256xf32> -> vector<8x1024xf32>
    %45 = vector.extract_strided_slice %20 {offsets = [0, 256], sizes = [8, 256], strides = [1, 1]} : vector<8x512xf32> to vector<8x256xf32>
    %46 = vector.extract_strided_slice %22 {offsets = [0, 256], sizes = [8, 256], strides = [1, 1]} : vector<8x512xf32> to vector<8x256xf32>
    %47 = vector.extract_strided_slice %24 {offsets = [0, 256], sizes = [8, 256], strides = [1, 1]} : vector<8x512xf32> to vector<8x256xf32>
    %48 = vector.extract_strided_slice %26 {offsets = [0, 256], sizes = [8, 256], strides = [1, 1]} : vector<8x512xf32> to vector<8x256xf32>
    %49 = tpu.concatenate %45, %46, %47, %48 in 1 : vector<8x256xf32>, vector<8x256xf32>, vector<8x256xf32>, vector<8x256xf32> -> vector<8x1024xf32>
    %50 = vector.extract_strided_slice %24 {offsets = [0, 0], sizes = [8, 256], strides = [1, 1]} : vector<8x512xf32> to vector<8x256xf32>
    %51 = vector.extract_strided_slice %26 {offsets = [0, 0], sizes = [8, 256], strides = [1, 1]} : vector<8x512xf32> to vector<8x256xf32>
    %52 = vector.extract_strided_slice %28 {offsets = [0, 0], sizes = [8, 256], strides = [1, 1]} : vector<8x512xf32> to vector<8x256xf32>
    %53 = vector.extract_strided_slice %30 {offsets = [0, 0], sizes = [8, 256], strides = [1, 1]} : vector<8x512xf32> to vector<8x256xf32>
    %54 = tpu.concatenate %50, %51, %52, %53 in 1 : vector<8x256xf32>, vector<8x256xf32>, vector<8x256xf32>, vector<8x256xf32> -> vector<8x1024xf32>
    %55 = vector.extract_strided_slice %24 {offsets = [0, 128], sizes = [8, 256], strides = [1, 1]} : vector<8x512xf32> to vector<8x256xf32>
    %56 = vector.extract_strided_slice %26 {offsets = [0, 128], sizes = [8, 256], strides = [1, 1]} : vector<8x512xf32> to vector<8x256xf32>
    %57 = vector.extract_strided_slice %28 {offsets = [0, 128], sizes = [8, 256], strides = [1, 1]} : vector<8x512xf32> to vector<8x256xf32>
    %58 = vector.extract_strided_slice %30 {offsets = [0, 128], sizes = [8, 256], strides = [1, 1]} : vector<8x512xf32> to vector<8x256xf32>
    %59 = tpu.concatenate %55, %56, %57, %58 in 1 : vector<8x256xf32>, vector<8x256xf32>, vector<8x256xf32>, vector<8x256xf32> -> vector<8x1024xf32>
    %60 = vector.extract_strided_slice %24 {offsets = [0, 256], sizes = [8, 256], strides = [1, 1]} : vector<8x512xf32> to vector<8x256xf32>
    %61 = vector.extract_strided_slice %26 {offsets = [0, 256], sizes = [8, 256], strides = [1, 1]} : vector<8x512xf32> to vector<8x256xf32>
    %62 = vector.extract_strided_slice %28 {offsets = [0, 256], sizes = [8, 256], strides = [1, 1]} : vector<8x512xf32> to vector<8x256xf32>
    %63 = vector.extract_strided_slice %30 {offsets = [0, 256], sizes = [8, 256], strides = [1, 1]} : vector<8x512xf32> to vector<8x256xf32>
    %64 = tpu.concatenate %60, %61, %62, %63 in 1 : vector<8x256xf32>, vector<8x256xf32>, vector<8x256xf32>, vector<8x256xf32> -> vector<8x1024xf32>
    %65 = vector.extract_strided_slice %28 {offsets = [0, 0], sizes = [8, 256], strides = [1, 1]} : vector<8x512xf32> to vector<8x256xf32>
    %66 = vector.extract_strided_slice %30 {offsets = [0, 0], sizes = [8, 256], strides = [1, 1]} : vector<8x512xf32> to vector<8x256xf32>
    %67 = vector.extract_strided_slice %32 {offsets = [0, 0], sizes = [8, 256], strides = [1, 1]} : vector<8x512xf32> to vector<8x256xf32>
    %68 = vector.extract_strided_slice %34 {offsets = [0, 0], sizes = [8, 256], strides = [1, 1]} : vector<8x512xf32> to vector<8x256xf32>
    %69 = tpu.concatenate %65, %66, %67, %68 in 1 : vector<8x256xf32>, vector<8x256xf32>, vector<8x256xf32>, vector<8x256xf32> -> vector<8x1024xf32>
    %70 = vector.extract_strided_slice %28 {offsets = [0, 128], sizes = [8, 256], strides = [1, 1]} : vector<8x512xf32> to vector<8x256xf32>
    %71 = vector.extract_strided_slice %30 {offsets = [0, 128], sizes = [8, 256], strides = [1, 1]} : vector<8x512xf32> to vector<8x256xf32>
    %72 = vector.extract_strided_slice %32 {offsets = [0, 128], sizes = [8, 256], strides = [1, 1]} : vector<8x512xf32> to vector<8x256xf32>
    %73 = vector.extract_strided_slice %34 {offsets = [0, 128], sizes = [8, 256], strides = [1, 1]} : vector<8x512xf32> to vector<8x256xf32>
    %74 = tpu.concatenate %70, %71, %72, %73 in 1 : vector<8x256xf32>, vector<8x256xf32>, vector<8x256xf32>, vector<8x256xf32> -> vector<8x1024xf32>
    %75 = vector.extract_strided_slice %28 {offsets = [0, 256], sizes = [8, 256], strides = [1, 1]} : vector<8x512xf32> to vector<8x256xf32>
    %76 = vector.extract_strided_slice %30 {offsets = [0, 256], sizes = [8, 256], strides = [1, 1]} : vector<8x512xf32> to vector<8x256xf32>
    %77 = vector.extract_strided_slice %32 {offsets = [0, 256], sizes = [8, 256], strides = [1, 1]} : vector<8x512xf32> to vector<8x256xf32>
    %78 = vector.extract_strided_slice %34 {offsets = [0, 256], sizes = [8, 256], strides = [1, 1]} : vector<8x512xf32> to vector<8x256xf32>
    %79 = tpu.concatenate %75, %76, %77, %78 in 1 : vector<8x256xf32>, vector<8x256xf32>, vector<8x256xf32>, vector<8x256xf32> -> vector<8x1024xf32>
    %80 = tpu.concatenate %39, %44, %49, %54, %59, %64, %69, %74, %79 in 0 : vector<8x1024xf32>, vector<8x1024xf32>, vector<8x1024xf32>, vector<8x1024xf32>, vector<8x1024xf32>, vector<8x1024xf32>, vector<8x1024xf32>, vector<8x1024xf32>, vector<8x1024xf32> -> vector<72x1024xf32>
    %81 = arith.truncf %80 : vector<72x1024xf32> to vector<72x1024xbf16>
    %c0_7 = arith.constant 0 : index
    %c0_8 = arith.constant 0 : index
    %82 = vector.load %arg4[%c0_7, %c0_8] : memref<1024x64xbf16, #tpu.memory_space<vmem>>, vector<1024x64xbf16>
    %cst_9 = arith.constant dense<0.000000e+00> : vector<72x64xf32>
    %83 = tpu.matmul %81, %82, %cst_9 {dimension_numbers = #tpu.dot_dimension_numbers<[1], [0], [0], [1], [0, 0, 1, 1], [], []>} : vector<72x1024xbf16>, vector<1024x64xbf16>, vector<72x64xf32> -> vector<72x64xf32>
    %c0_10 = arith.constant 0 : index
    %c0_11 = arith.constant 0 : index
    %84 = vector.load %arg5[%c0_10, %c0_11] : memref<1x64xf32, #tpu.memory_space<vmem>>, vector<1x64xf32>
    %85 = vector.broadcast %84 : vector<1x64xf32> to vector<72x64xf32>
    %86 = arith.addf %83, %85 : vector<72x64xf32>
    %cst_12 = arith.constant 0.000000e+00 : f32
    %87 = vector.broadcast %cst_12 : f32 to vector<72x64xf32>
    %88 = arith.maximumf %86, %87 : vector<72x64xf32>
    %89 = vector.extract_strided_slice %88 {offsets = [0, 0], sizes = [8, 64], strides = [1, 1]} : vector<72x64xf32> to vector<8x64xf32>
    %90 = vector.extract_strided_slice %88 {offsets = [8, 0], sizes = [8, 64], strides = [1, 1]} : vector<72x64xf32> to vector<8x64xf32>
    %91 = vector.extract_strided_slice %88 {offsets = [16, 0], sizes = [8, 64], strides = [1, 1]} : vector<72x64xf32> to vector<8x64xf32>
    %92 = vector.extract_strided_slice %88 {offsets = [24, 0], sizes = [8, 64], strides = [1, 1]} : vector<72x64xf32> to vector<8x64xf32>
    %93 = vector.extract_strided_slice %88 {offsets = [32, 0], sizes = [8, 64], strides = [1, 1]} : vector<72x64xf32> to vector<8x64xf32>
    %94 = vector.extract_strided_slice %88 {offsets = [40, 0], sizes = [8, 64], strides = [1, 1]} : vector<72x64xf32> to vector<8x64xf32>
    %95 = vector.extract_strided_slice %88 {offsets = [48, 0], sizes = [8, 64], strides = [1, 1]} : vector<72x64xf32> to vector<8x64xf32>
    %96 = vector.extract_strided_slice %88 {offsets = [56, 0], sizes = [8, 64], strides = [1, 1]} : vector<72x64xf32> to vector<8x64xf32>
    %97 = vector.extract_strided_slice %88 {offsets = [64, 0], sizes = [8, 64], strides = [1, 1]} : vector<72x64xf32> to vector<8x64xf32>
    %98 = tpu.concatenate %89, %90, %91, %92, %93, %94, %95, %96, %97 in 1 : vector<8x64xf32>, vector<8x64xf32>, vector<8x64xf32>, vector<8x64xf32>, vector<8x64xf32>, vector<8x64xf32>, vector<8x64xf32>, vector<8x64xf32>, vector<8x64xf32> -> vector<8x576xf32>
    %99 = arith.truncf %98 : vector<8x576xf32> to vector<8x576xbf16>
    %c0_13 = arith.constant 0 : index
    %c0_14 = arith.constant 0 : index
    %100 = vector.load %arg6[%c0_13, %c0_14] : memref<576x64xbf16, #tpu.memory_space<vmem>>, vector<576x64xbf16>
    %cst_15 = arith.constant dense<0.000000e+00> : vector<8x64xf32>
    %101 = tpu.matmul %99, %100, %cst_15 {dimension_numbers = #tpu.dot_dimension_numbers<[1], [0], [0], [1], [0, 0, 1, 1], [], []>} : vector<8x576xbf16>, vector<576x64xbf16>, vector<8x64xf32> -> vector<8x64xf32>
    %c0_16 = arith.constant 0 : index
    %c0_17 = arith.constant 0 : index
    %102 = vector.load %arg7[%c0_16, %c0_17] : memref<1x64xf32, #tpu.memory_space<vmem>>, vector<1x64xf32>
    %103 = vector.broadcast %102 : vector<1x64xf32> to vector<8x64xf32>
    %104 = arith.addf %101, %103 : vector<8x64xf32>
    %cst_18 = arith.constant 0.000000e+00 : f32
    %105 = vector.broadcast %cst_18 : f32 to vector<8x64xf32>
    %106 = arith.maximumf %104, %105 : vector<8x64xf32>
    %107 = arith.truncf %106 : vector<8x64xf32> to vector<8x64xbf16>
    %c0_19 = arith.constant 0 : index
    %c0_20 = arith.constant 0 : index
    %108 = vector.load %arg8[%c0_19, %c0_20] : memref<64x1024xbf16, #tpu.memory_space<vmem>>, vector<64x1024xbf16>
    %cst_21 = arith.constant dense<0.000000e+00> : vector<8x1024xf32>
    %109 = tpu.matmul %107, %108, %cst_21 {dimension_numbers = #tpu.dot_dimension_numbers<[1], [0], [0], [1], [0, 0, 1, 1], [], []>} : vector<8x64xbf16>, vector<64x1024xbf16>, vector<8x1024xf32> -> vector<8x1024xf32>
    %c0_22 = arith.constant 0 : index
    %c0_23 = arith.constant 0 : index
    %110 = vector.load %arg9[%c0_22, %c0_23] : memref<1x1024xf32, #tpu.memory_space<vmem>>, vector<1x1024xf32>
    %111 = vector.broadcast %110 : vector<1x1024xf32> to vector<8x1024xf32>
    %112 = arith.addf %109, %111 : vector<8x1024xf32>
    %cst_24 = arith.constant 0.000000e+00 : f32
    %113 = vector.broadcast %cst_24 : f32 to vector<8x1024xf32>
    %114 = arith.maximumf %112, %113 : vector<8x1024xf32>
    %115 = arith.truncf %114 : vector<8x1024xf32> to vector<8x1024xbf16>
    %c0_25 = arith.constant 0 : index
    %c0_26 = arith.constant 0 : index
    %116 = vector.load %arg10[%c0_25, %c0_26] : memref<1024x128xbf16, #tpu.memory_space<vmem>>, vector<1024x128xbf16>
    %cst_27 = arith.constant dense<0.000000e+00> : vector<8x128xf32>
    %117 = tpu.matmul %115, %116, %cst_27 {dimension_numbers = #tpu.dot_dimension_numbers<[1], [0], [0], [1], [0, 0, 1, 1], [], []>} : vector<8x1024xbf16>, vector<1024x128xbf16>, vector<8x128xf32> -> vector<8x128xf32>
    %c0_28 = arith.constant 0 : index
    %c0_29 = arith.constant 0 : index
    %118 = vector.load %arg11[%c0_28, %c0_29] : memref<1x128xf32, #tpu.memory_space<vmem>>, vector<1x128xf32>
    %119 = vector.broadcast %118 : vector<1x128xf32> to vector<8x128xf32>
    %120 = arith.addf %117, %119 : vector<8x128xf32>
    %121 = vector.extract_strided_slice %120 {offsets = [0, 0], sizes = [8, 6], strides = [1, 1]} : vector<8x128xf32> to vector<8x6xf32>
    %122 = vector.extract_strided_slice %120 {offsets = [0, 6], sizes = [8, 1], strides = [1, 1]} : vector<8x128xf32> to vector<8x1xf32>
    %cst_30 = arith.constant dense<0.000000e+00> : vector<8xf32>
    %123 = vector.multi_reduction <add>, %121, %cst_30 [1] : vector<8x6xf32> to vector<8xf32>
    %124 = vector.shape_cast %123 : vector<8xf32> to vector<8x1xf32>
    %cst_31 = arith.constant 6.000000e+00 : f32
    %125 = vector.broadcast %cst_31 : f32 to vector<8x1xf32>
    %126 = arith.divf %124, %125 : vector<8x1xf32>
    %127 = arith.subf %122, %126 : vector<8x1xf32>
    %128 = vector.broadcast %127 : vector<8x1xf32> to vector<8x128xf32>
    %129 = arith.addf %120, %128 : vector<8x128xf32>
    %c0_32 = arith.constant 0 : index
    %c0_33 = arith.constant 0 : index
    %130 = vector.load %arg12[%c0_32, %c0_33] : memref<8x128xf32, #tpu.memory_space<vmem>>, vector<8x128xf32>
    tpu.vector_store %arg12[%c0_32, %c0_33], %129 {strides = array<i32>} : memref<8x128xf32, #tpu.memory_space<vmem>>, vector<8x128xf32>,
    return
  }
  func.func @transform_0(%arg0: i32) -> (i32, i32, i32) {
    %c0_i32 = arith.constant 0 : i32
    %c0_i32_0 = arith.constant 0 : i32
    %c0_i32_1 = arith.constant 0 : i32
    return %c0_i32, %arg0, %c0_i32_0 : i32, i32, i32
  }
  func.func @transform_1(%arg0: i32) -> (i32, i32) {
    %c0_i32 = arith.constant 0 : i32
    %c0_i32_0 = arith.constant 0 : i32
    %c0_i32_1 = arith.constant 0 : i32
    return %c0_i32, %c0_i32_0 : i32, i32
  }
  func.func @transform_2(%arg0: i32) -> (i32, i32) {
    %c0_i32 = arith.constant 0 : i32
    %c0_i32_0 = arith.constant 0 : i32
    %c0_i32_1 = arith.constant 0 : i32
    return %c0_i32, %c0_i32_0 : i32, i32
  }
  func.func @transform_3(%arg0: i32) -> (i32, i32) {
    %c0_i32 = arith.constant 0 : i32
    %c0_i32_0 = arith.constant 0 : i32
    %c0_i32_1 = arith.constant 0 : i32
    return %c0_i32, %c0_i32_0 : i32, i32
  }
  func.func @transform_4(%arg0: i32) -> (i32, i32) {
    %c0_i32 = arith.constant 0 : i32
    %c0_i32_0 = arith.constant 0 : i32
    %c0_i32_1 = arith.constant 0 : i32
    return %c0_i32, %c0_i32_0 : i32, i32
  }
  func.func @transform_5(%arg0: i32) -> (i32, i32) {
    %c0_i32 = arith.constant 0 : i32
    %c0_i32_0 = arith.constant 0 : i32
    %c0_i32_1 = arith.constant 0 : i32
    return %c0_i32, %c0_i32_0 : i32, i32
  }
  func.func @transform_6(%arg0: i32) -> (i32, i32) {
    %c0_i32 = arith.constant 0 : i32
    %c0_i32_0 = arith.constant 0 : i32
    %c0_i32_1 = arith.constant 0 : i32
    return %c0_i32, %c0_i32_0 : i32, i32
  }
  func.func @transform_7(%arg0: i32) -> (i32, i32) {
    %c0_i32 = arith.constant 0 : i32
    %c0_i32_0 = arith.constant 0 : i32
    %c0_i32_1 = arith.constant 0 : i32
    return %c0_i32, %c0_i32_0 : i32, i32
  }
  func.func @transform_8(%arg0: i32) -> (i32, i32) {
    %c0_i32 = arith.constant 0 : i32
    %c0_i32_0 = arith.constant 0 : i32
    %c0_i32_1 = arith.constant 0 : i32
    return %c0_i32, %c0_i32_0 : i32, i32
  }
  func.func @transform_9(%arg0: i32) -> (i32, i32) {
    %c0_i32 = arith.constant 0 : i32
    %c0_i32_0 = arith.constant 0 : i32
    %c0_i32_1 = arith.constant 0 : i32
    return %c0_i32, %c0_i32_0 : i32, i32
  }
  func.func @transform_10(%arg0: i32) -> (i32, i32) {
    %c0_i32 = arith.constant 0 : i32
    %c0_i32_0 = arith.constant 0 : i32
    %c0_i32_1 = arith.constant 0 : i32
    return %c0_i32, %c0_i32_0 : i32, i32
  }
  func.func @transform_11(%arg0: i32) -> (i32, i32) {
    %c0_i32 = arith.constant 0 : i32
    %c0_i32_0 = arith.constant 0 : i32
    return %arg0, %c0_i32 : i32, i32
  }
}

</mosaic_0001>

<llo_original>
// kernel: _lambda_.1
$region0: #{_lambda_.1}
  #allocation0 [shape = 'u32[]', space=smem, size = 0x4, offset = 0x4, fixed_abs, tag = 'smem constant byte address 0x4 - core index']
  #allocation1 [shape = 'u32[72,128]{1,0:T(1,128)}', space=vmem, size = 0x9000, scoped, tag = 'internal scratch']
  %s0 = inlined_call_operand.vmem [shape: bf16[8,64,256], index: 0, kind: input, shape index: {}]
  %s1 = inlined_call_operand.vmem [shape: bf16[256,64], index: 1, kind: input, shape index: {}]
  %s2 = inlined_call_operand.vmem [shape: f32[1,64], index: 2, kind: input, shape index: {}]
  %s3 = inlined_call_operand.vmem [shape: bf16[1024,64], index: 3, kind: input, shape index: {}]
  %s4 = inlined_call_operand.vmem [shape: f32[1,64], index: 4, kind: input, shape index: {}]
  %s5 = inlined_call_operand.vmem [shape: bf16[576,64], index: 5, kind: input, shape index: {}]
  %s6 = inlined_call_operand.vmem [shape: f32[1,64], index: 6, kind: input, shape index: {}]
  %s7 = inlined_call_operand.vmem [shape: bf16[64,1024], index: 7, kind: input, shape index: {}]
  %s8 = inlined_call_operand.vmem [shape: f32[1,1024], index: 8, kind: input, shape index: {}]
  %s9 = inlined_call_operand.vmem [shape: bf16[1024,128], index: 9, kind: input, shape index: {}]
  %s10 = inlined_call_operand.vmem [shape: f32[1,128], index: 10, kind: input, shape index: {}]
  %s11 = inlined_call_operand.vmem [shape: f32[8,128], index: 11, kind: output, shape index: {}]
  %s12 = sld [smem:[#allocation0]]
  $region54: #{_lambda_.1} parent=0
    _
  %s14 = ssub.s32 1, %s12
  %s15 = scalar_select 0, %s14, %s12
  // Predicated region
  $region2: #{_lambda_.1} parent=0 // pred_check
    _
  $region3: #{_lambda_.1} parent=0 // pred_check_branch
    %17 = sbr.rel (0) target = $region5
  $region4: #{_lambda_.1} parent=0 // pred_region
    _
  $region5: #{_lambda_.1} parent=0 // pred_fallthru
    _
  // Predicated region
  $region6: #{_lambda_.1} parent=0 // pred_check
    _
  $region7: #{_lambda_.1} parent=0 // pred_check_branch
    %19 = sbr.rel (0) target = $region9
  $region8: #{_lambda_.1} parent=0 // pred_region
    _
  $region9: #{_lambda_.1} parent=0 // pred_fallthru
    _
  // Predicated region
  $region10: #{_lambda_.1} parent=0 // pred_check
    _
  $region11: #{_lambda_.1} parent=0 // pred_check_branch
    %21 = sbr.rel (0) target = $region13
  $region12: #{_lambda_.1} parent=0 // pred_region
    _
  $region13: #{_lambda_.1} parent=0 // pred_fallthru
    _
  // Predicated region
  $region14: #{_lambda_.1} parent=0 // pred_check
    _
  $region15: #{_lambda_.1} parent=0 // pred_check_branch
    %23 = sbr.rel (0) target = $region17
  $region16: #{_lambda_.1} parent=0 // pred_region
    _
  $region17: #{_lambda_.1} parent=0 // pred_fallthru
    _
  // Predicated region
  $region18: #{_lambda_.1} parent=0 // pred_check
    _
  $region19: #{_lambda_.1} parent=0 // pred_check_branch
    %25 = sbr.rel (0) target = $region21
  $region20: #{_lambda_.1} parent=0 // pred_region
    _
  $region21: #{_lambda_.1} parent=0 // pred_fallthru
    _
  // Predicated region
  $region22: #{_lambda_.1} parent=0 // pred_check
    _
  $region23: #{_lambda_.1} parent=0 // pred_check_branch
    %27 = sbr.rel (0) target = $region25
  $region24: #{_lambda_.1} parent=0 // pred_region
    _
  $region25: #{_lambda_.1} parent=0 // pred_fallthru
    _
  // Predicated region
  $region26: #{_lambda_.1} parent=0 // pred_check
    _
  $region27: #{_lambda_.1} parent=0 // pred_check_branch
    %29 = sbr.rel (0) target = $region29
  $region28: #{_lambda_.1} parent=0 // pred_region
    _
  $region29: #{_lambda_.1} parent=0 // pred_fallthru
    _
  // Predicated region
  $region30: #{_lambda_.1} parent=0 // pred_check
    _
  $region31: #{_lambda_.1} parent=0 // pred_check_branch
    %31 = sbr.rel (0) target = $region33
  $region32: #{_lambda_.1} parent=0 // pred_region
    _
  $region33: #{_lambda_.1} parent=0 // pred_fallthru
    _
  // Predicated region
  $region34: #{_lambda_.1} parent=0 // pred_check
    _
  $region35: #{_lambda_.1} parent=0 // pred_check_branch
    %33 = sbr.rel (0) target = $region37
  $region36: #{_lambda_.1} parent=0 // pred_region
    _
  $region37: #{_lambda_.1} parent=0 // pred_fallthru
    _
  // Predicated region
  $region38: #{_lambda_.1} parent=0 // pred_check
    _
  $region39: #{_lambda_.1} parent=0 // pred_check_branch
    %35 = sbr.rel (0) target = $region41
  $region40: #{_lambda_.1} parent=0 // pred_region
    _
  $region41: #{_lambda_.1} parent=0 // pred_fallthru
    _
  // Predicated region
  $region42: #{_lambda_.1} parent=0 // pred_check
    _
  $region43: #{_lambda_.1} parent=0 // pred_check_branch
    %37 = sbr.rel (0) target = $region45
  $region44: #{_lambda_.1} parent=0 // pred_region
    _
  $region45: #{_lambda_.1} parent=0 // pred_fallthru
    _
  %v39 = vld [vmem:[%s0] sm:$0xff]
  %v40 = vld [vmem:[%s0 + $0x8] sm:$0xff]
  %v41 = vld [vmem:[%s0 + $0x10] sm:$0xff]
  %v42 = vld [vmem:[%s0 + $0x18] sm:$0xff]
  %v43 = vld [vmem:[%s0 + $0x20] sm:$0xff]
  %v44 = vld [vmem:[%s0 + $0x28] sm:$0xff]
  %v45 = vld [vmem:[%s0 + $0x30] sm:$0xff]
  %v46 = vld [vmem:[%s0 + $0x38] sm:$0xff]
  %v47 = vld [vmem:[%s0 + $0x40] sm:$0xff]
  %v48 = vld [vmem:[%s0 + $0x48] sm:$0xff]
  %v49 = vld [vmem:[%s0 + $0x50] sm:$0xff]
  %v50 = vld [vmem:[%s0 + $0x58] sm:$0xff]
  %v51 = vld [vmem:[%s0 + $0x60] sm:$0xff]
  %v52 = vld [vmem:[%s0 + $0x68] sm:$0xff]
  %v53 = vld [vmem:[%s0 + $0x70] sm:$0xff]
  %v54 = vld [vmem:[%s0 + $0x78] sm:$0xff]
  %v55 = vld [vmem:[%s0 + $0x80] sm:$0xff]
  %v56 = vld [vmem:[%s0 + $0x88] sm:$0xff]
  %v57 = vld [vmem:[%s0 + $0x90] sm:$0xff]
  %v58 = vld [vmem:[%s0 + $0x98] sm:$0xff]
  %v59 = vld [vmem:[%s0 + $0xa0] sm:$0xff]
  %v60 = vld [vmem:[%s0 + $0xa8] sm:$0xff]
  %v61 = vld [vmem:[%s0 + $0xb0] sm:$0xff]
  %v62 = vld [vmem:[%s0 + $0xb8] sm:$0xff]
  %v63 = vld [vmem:[%s0 + $0xc0] sm:$0xff]
  %v64 = vld [vmem:[%s0 + $0xc8] sm:$0xff]
  %v65 = vld [vmem:[%s0 + $0xd0] sm:$0xff]
  %v66 = vld [vmem:[%s0 + $0xd8] sm:$0xff]
  %v67 = vld [vmem:[%s0 + $0xe0] sm:$0xff]
  %v68 = vld [vmem:[%s0 + $0xe8] sm:$0xff]
  %v69 = vld [vmem:[%s0 + $0xf0] sm:$0xff]
  %v70 = vld [vmem:[%s0 + $0xf8] sm:$0xff]
  %v71 = vld [vmem:[%s0 + $0x100] sm:$0xff]
  %v72 = vld [vmem:[%s0 + $0x108] sm:$0xff]
  %v73 = vld [vmem:[%s0 + $0x110] sm:$0xff]
  %v74 = vld [vmem:[%s0 + $0x118] sm:$0xff]
  %v75 = vld [vmem:[%s0 + $0x120] sm:$0xff]
  %v76 = vld [vmem:[%s0 + $0x128] sm:$0xff]
  %v77 = vld [vmem:[%s0 + $0x130] sm:$0xff]
  %v78 = vld [vmem:[%s0 + $0x138] sm:$0xff]
  %v79 = vld [vmem:[%s0 + $0x140] sm:$0xff]
  %v80 = vld [vmem:[%s0 + $0x148] sm:$0xff]
  %v81 = vld [vmem:[%s0 + $0x150] sm:$0xff]
  %v82 = vld [vmem:[%s0 + $0x158] sm:$0xff]
  %v83 = vld [vmem:[%s0 + $0x160] sm:$0xff]
  %v84 = vld [vmem:[%s0 + $0x168] sm:$0xff]
  %v85 = vld [vmem:[%s0 + $0x170] sm:$0xff]
  %v86 = vld [vmem:[%s0 + $0x178] sm:$0xff]
  %v87 = vld [vmem:[%s0 + $0x180] sm:$0xff]
  %v88 = vld [vmem:[%s0 + $0x188] sm:$0xff]
  %v89 = vld [vmem:[%s0 + $0x190] sm:$0xff]
  %v90 = vld [vmem:[%s0 + $0x198] sm:$0xff]
  %v91 = vld [vmem:[%s0 + $0x1a0] sm:$0xff]
  %v92 = vld [vmem:[%s0 + $0x1a8] sm:$0xff]
  %v93 = vld [vmem:[%s0 + $0x1b0] sm:$0xff]
  %v94 = vld [vmem:[%s0 + $0x1b8] sm:$0xff]
  %v95 = vld [vmem:[%s0 + $0x1c0] sm:$0xff]
  %v96 = vld [vmem:[%s0 + $0x1c8] sm:$0xff]
  %v97 = vld [vmem:[%s0 + $0x1d0] sm:$0xff]
  %v98 = vld [vmem:[%s0 + $0x1d8] sm:$0xff]
  %v99 = vld [vmem:[%s0 + $0x1e0] sm:$0xff]
  %v100 = vld [vmem:[%s0 + $0x1e8] sm:$0xff]
  %v101 = vld [vmem:[%s0 + $0x1f0] sm:$0xff]
  %v102 = vld [vmem:[%s0 + $0x1f8] sm:$0xff]
  %v103 = vld [vmem:[%s1] sm:$0xf]
  %v104 = vld [vmem:[%s1 + $0x4] sm:$0xf]
  %v105 = vld [vmem:[%s1 + $0x8] sm:$0xf]
  %v106 = vld [vmem:[%s1 + $0xc] sm:$0xf]
  %v107 = vld [vmem:[%s1 + $0x10] sm:$0xf]
  %v108 = vld [vmem:[%s1 + $0x14] sm:$0xf]
  %v109 = vld [vmem:[%s1 + $0x18] sm:$0xf]
  %v110 = vld [vmem:[%s1 + $0x1c] sm:$0xf]
  %v111 = vld [vmem:[%s1 + $0x20] sm:$0xf]
  %v112 = vld [vmem:[%s1 + $0x24] sm:$0xf]
  %v113 = vld [vmem:[%s1 + $0x28] sm:$0xf]
  %v114 = vld [vmem:[%s1 + $0x2c] sm:$0xf]
  %v115 = vld [vmem:[%s1 + $0x30] sm:$0xf]
  %v116 = vld [vmem:[%s1 + $0x34] sm:$0xf]
  %v117 = vld [vmem:[%s1 + $0x38] sm:$0xf]
  %v118 = vld [vmem:[%s1 + $0x3c] sm:$0xf]
  %v119 = vld [vmem:[%s1 + $0x40] sm:$0xf]
  %v120 = vld [vmem:[%s1 + $0x44] sm:$0xf]
  %v121 = vld [vmem:[%s1 + $0x48] sm:$0xf]
  %v122 = vld [vmem:[%s1 + $0x4c] sm:$0xf]
  %v123 = vld [vmem:[%s1 + $0x50] sm:$0xf]
  %v124 = vld [vmem:[%s1 + $0x54] sm:$0xf]
  %v125 = vld [vmem:[%s1 + $0x58] sm:$0xf]
  %v126 = vld [vmem:[%s1 + $0x5c] sm:$0xf]
  %v127 = vld [vmem:[%s1 + $0x60] sm:$0xf]
  %v128 = vld [vmem:[%s1 + $0x64] sm:$0xf]
  %v129 = vld [vmem:[%s1 + $0x68] sm:$0xf]
  %v130 = vld [vmem:[%s1 + $0x6c] sm:$0xf]
  %v131 = vld [vmem:[%s1 + $0x70] sm:$0xf]
  %v132 = vld [vmem:[%s1 + $0x74] sm:$0xf]
  %v133 = vld [vmem:[%s1 + $0x78] sm:$0xf]
  %v134 = vld [vmem:[%s1 + $0x7c] sm:$0xf]
  %v135 = vld [vmem:[%s2] sm:$0x1]
  %v137 = vperm.slane %v135, 0
  %v203 = vunpack.c.l.b16 %v39
  %v204 = vunpack.c.h.b16 %v39
  %v205 = vunpack.c.l.b16 %v40
  %v206 = vunpack.c.h.b16 %v40
  %v207 = vunpack.c.l.b16 %v41
  %v208 = vunpack.c.h.b16 %v41
  %v209 = vunpack.c.l.b16 %v42
  %v210 = vunpack.c.h.b16 %v42
  %v211 = vunpack.c.l.b16 %v43
  %v212 = vunpack.c.h.b16 %v43
  %v213 = vunpack.c.l.b16 %v44
  %v214 = vunpack.c.h.b16 %v44
  %v215 = vunpack.c.l.b16 %v45
  %v216 = vunpack.c.h.b16 %v45
  %v217 = vunpack.c.l.b16 %v46
  %v218 = vunpack.c.h.b16 %v46
  %v219 = vunpack.c.l.b16 %v47
  %v220 = vunpack.c.h.b16 %v47
  %v221 = vunpack.c.l.b16 %v48
  %v222 = vunpack.c.h.b16 %v48
  %v223 = vunpack.c.l.b16 %v49
  %v224 = vunpack.c.h.b16 %v49
  %v225 = vunpack.c.l.b16 %v50
  %v226 = vunpack.c.h.b16 %v50
  %v227 = vunpack.c.l.b16 %v51
  %v228 = vunpack.c.h.b16 %v51
  %v229 = vunpack.c.l.b16 %v52
  %v230 = vunpack.c.h.b16 %v52
  %v231 = vunpack.c.l.b16 %v53
  %v232 = vunpack.c.h.b16 %v53
  %v233 = vunpack.c.l.b16 %v54
  %v234 = vunpack.c.h.b16 %v54
  %v235 = vunpack.c.l.b16 %v55
  %v236 = vunpack.c.h.b16 %v55
  %v237 = vunpack.c.l.b16 %v56
  %v238 = vunpack.c.h.b16 %v56
  %v239 = vunpack.c.l.b16 %v57
  %v240 = vunpack.c.h.b16 %v57
  %v241 = vunpack.c.l.b16 %v58
  %v242 = vunpack.c.h.b16 %v58
  %v243 = vunpack.c.l.b16 %v59
  %v244 = vunpack.c.h.b16 %v59
  %v245 = vunpack.c.l.b16 %v60
  %v246 = vunpack.c.h.b16 %v60
  %v247 = vunpack.c.l.b16 %v61
  %v248 = vunpack.c.h.b16 %v61
  %v249 = vunpack.c.l.b16 %v62
  %v250 = vunpack.c.h.b16 %v62
  %v251 = vunpack.c.l.b16 %v63
  %v252 = vunpack.c.h.b16 %v63
  %v253 = vunpack.c.l.b16 %v64
  %v254 = vunpack.c.h.b16 %v64
  %v255 = vunpack.c.l.b16 %v65
  %v256 = vunpack.c.h.b16 %v65
  %v257 = vunpack.c.l.b16 %v66
  %v258 = vunpack.c.h.b16 %v66
  %v259 = vunpack.c.l.b16 %v67
  %v260 = vunpack.c.h.b16 %v67
  %v261 = vunpack.c.l.b16 %v68
  %v262 = vunpack.c.h.b16 %v68
  %v263 = vunpack.c.l.b16 %v69
  %v264 = vunpack.c.h.b16 %v69
  %v265 = vunpack.c.l.b16 %v70
  %v266 = vunpack.c.h.b16 %v70
  %v267 = vunpack.c.l.b16 %v71
  %v268 = vunpack.c.h.b16 %v71
  %v269 = vunpack.c.l.b16 %v72
  %v270 = vunpack.c.h.b16 %v72
  %v271 = vunpack.c.l.b16 %v73
  %v272 = vunpack.c.h.b16 %v73
  %v273 = vunpack.c.l.b16 %v74
  %v274 = vunpack.c.h.b16 %v74
  %v275 = vunpack.c.l.b16 %v75
  %v276 = vunpack.c.h.b16 %v75
  %v277 = vunpack.c.l.b16 %v76
  %v278 = vunpack.c.h.b16 %v76
  %v279 = vunpack.c.l.b16 %v77
  %v280 = vunpack.c.h.b16 %v77
  %v281 = vunpack.c.l.b16 %v78
  %v282 = vunpack.c.h.b16 %v78
  %v283 = vunpack.c.l.b16 %v79
  %v284 = vunpack.c.h.b16 %v79
  %v285 = vunpack.c.l.b16 %v80
  %v286 = vunpack.c.h.b16 %v80
  %v287 = vunpack.c.l.b16 %v81
  %v288 = vunpack.c.h.b16 %v81
  %v289 = vunpack.c.l.b16 %v82
  %v290 = vunpack.c.h.b16 %v82
  %v291 = vunpack.c.l.b16 %v83
  %v292 = vunpack.c.h.b16 %v83
  %v293 = vunpack.c.l.b16 %v84
  %v294 = vunpack.c.h.b16 %v84
  %v295 = vunpack.c.l.b16 %v85
  %v296 = vunpack.c.h.b16 %v85
  %v297 = vunpack.c.l.b16 %v86
  %v298 = vunpack.c.h.b16 %v86
  %v299 = vunpack.c.l.b16 %v87
  %v300 = vunpack.c.h.b16 %v87
  %v301 = vunpack.c.l.b16 %v88
  %v302 = vunpack.c.h.b16 %v88
  %v303 = vunpack.c.l.b16 %v89
  %v304 = vunpack.c.h.b16 %v89
  %v305 = vunpack.c.l.b16 %v90
  %v306 = vunpack.c.h.b16 %v90
  %v307 = vunpack.c.l.b16 %v91
  %v308 = vunpack.c.h.b16 %v91
  %v309 = vunpack.c.l.b16 %v92
  %v310 = vunpack.c.h.b16 %v92
  %v311 = vunpack.c.l.b16 %v93
  %v312 = vunpack.c.h.b16 %v93
  %v313 = vunpack.c.l.b16 %v94
  %v314 = vunpack.c.h.b16 %v94
  %v315 = vunpack.c.l.b16 %v95
  %v316 = vunpack.c.h.b16 %v95
  %v317 = vunpack.c.l.b16 %v96
  %v318 = vunpack.c.h.b16 %v96
  %v319 = vunpack.c.l.b16 %v97
  %v320 = vunpack.c.h.b16 %v97
  %v321 = vunpack.c.l.b16 %v98
  %v322 = vunpack.c.h.b16 %v98
  %v323 = vunpack.c.l.b16 %v99
  %v324 = vunpack.c.h.b16 %v99
  %v325 = vunpack.c.l.b16 %v100
  %v326 = vunpack.c.h.b16 %v100
  %v327 = vunpack.c.l.b16 %v101
  %v328 = vunpack.c.h.b16 %v101
  %v329 = vunpack.c.l.b16 %v102
  %v330 = vunpack.c.h.b16 %v102
  %v331 = vpack.c.b16 %v205, %v203
  %v332 = vpack.c.b16 %v206, %v204
  %v333 = vpack.c.b16 %v209, %v207
  %v334 = vpack.c.b16 %v210, %v208
  %v335 = vpack.c.b16 %v213, %v211
  %v336 = vpack.c.b16 %v214, %v212
  %v337 = vpack.c.b16 %v217, %v215
  %v338 = vpack.c.b16 %v218, %v216
  %v339 = vpack.c.b16 %v221, %v219
  %v340 = vpack.c.b16 %v222, %v220
  %v341 = vpack.c.b16 %v225, %v223
  %v342 = vpack.c.b16 %v226, %v224
  %v343 = vpack.c.b16 %v229, %v227
  %v344 = vpack.c.b16 %v230, %v228
  %v345 = vpack.c.b16 %v233, %v231
  %v346 = vpack.c.b16 %v234, %v232
  %v347 = vpack.c.b16 %v237, %v235
  %v348 = vpack.c.b16 %v238, %v236
  %v349 = vpack.c.b16 %v241, %v239
  %v350 = vpack.c.b16 %v242, %v240
  %v351 = vpack.c.b16 %v245, %v243
  %v352 = vpack.c.b16 %v246, %v244
  %v353 = vpack.c.b16 %v249, %v247
  %v354 = vpack.c.b16 %v250, %v248
  %v355 = vpack.c.b16 %v253, %v251
  %v356 = vpack.c.b16 %v254, %v252
  %v357 = vpack.c.b16 %v257, %v255
  %v358 = vpack.c.b16 %v258, %v256
  %v359 = vpack.c.b16 %v261, %v259
  %v360 = vpack.c.b16 %v262, %v260
  %v361 = vpack.c.b16 %v265, %v263
  %v362 = vpack.c.b16 %v266, %v264
  %v363 = vpack.c.b16 %v269, %v267
  %v364 = vpack.c.b16 %v270, %v268
  %v365 = vpack.c.b16 %v273, %v271
  %v366 = vpack.c.b16 %v274, %v272
  %v367 = vpack.c.b16 %v277, %v275
  %v368 = vpack.c.b16 %v278, %v276
  %v369 = vpack.c.b16 %v281, %v279
  %v370 = vpack.c.b16 %v282, %v280
  %v371 = vpack.c.b16 %v285, %v283
  %v372 = vpack.c.b16 %v286, %v284
  %v373 = vpack.c.b16 %v289, %v287
  %v374 = vpack.c.b16 %v290, %v288
  %v375 = vpack.c.b16 %v293, %v291
  %v376 = vpack.c.b16 %v294, %v292
  %v377 = vpack.c.b16 %v297, %v295
  %v378 = vpack.c.b16 %v298, %v296
  %v379 = vpack.c.b16 %v301, %v299
  %v380 = vpack.c.b16 %v302, %v300
  %v381 = vpack.c.b16 %v305, %v303
  %v382 = vpack.c.b16 %v306, %v304
  %v383 = vpack.c.b16 %v309, %v307
  %v384 = vpack.c.b16 %v310, %v308
  %v385 = vpack.c.b16 %v313, %v311
  %v386 = vpack.c.b16 %v314, %v312
  %v387 = vpack.c.b16 %v317, %v315
  %v388 = vpack.c.b16 %v318, %v316
  %v389 = vpack.c.b16 %v321, %v319
  %v390 = vpack.c.b16 %v322, %v320
  %v391 = vpack.c.b16 %v325, %v323
  %v392 = vpack.c.b16 %v326, %v324
  %v393 = vpack.c.b16 %v329, %v327
  %v394 = vpack.c.b16 %v330, %v328
  %v491 = vunpack.c.l.b16 %v103
  %v492 = vunpack.c.l.b16 %v104
  %v493 = vunpack.c.l.b16 %v105
  %v494 = vunpack.c.l.b16 %v106
  %v495 = vunpack.c.l.b16 %v107
  %v496 = vunpack.c.l.b16 %v108
  %v497 = vunpack.c.l.b16 %v109
  %v498 = vunpack.c.l.b16 %v110
  %v499 = vunpack.c.l.b16 %v111
  %v500 = vunpack.c.l.b16 %v112
  %v501 = vunpack.c.l.b16 %v113
  %v502 = vunpack.c.l.b16 %v114
  %v503 = vunpack.c.l.b16 %v115
  %v504 = vunpack.c.l.b16 %v116
  %v505 = vunpack.c.l.b16 %v117
  %v506 = vunpack.c.l.b16 %v118
  %v507 = vunpack.c.l.b16 %v119
  %v508 = vunpack.c.l.b16 %v120
  %v509 = vunpack.c.l.b16 %v121
  %v510 = vunpack.c.l.b16 %v122
  %v511 = vunpack.c.l.b16 %v123
  %v512 = vunpack.c.l.b16 %v124
  %v513 = vunpack.c.l.b16 %v125
  %v514 = vunpack.c.l.b16 %v126
  %v515 = vunpack.c.l.b16 %v127
  %v516 = vunpack.c.l.b16 %v128
  %v517 = vunpack.c.l.b16 %v129
  %v518 = vunpack.c.l.b16 %v130
  %v519 = vunpack.c.l.b16 %v131
  %v520 = vunpack.c.l.b16 %v132
  %v521 = vunpack.c.l.b16 %v133
  %v522 = vunpack.c.l.b16 %v134
  %v523 = vpack.c.b16 %v492, %v491
  %v524 = vpack.c.b16 %v494, %v493
  %v525 = vpack.c.b16 %v496, %v495
  %v526 = vpack.c.b16 %v498, %v497
  %v527 = vpack.c.b16 %v500, %v499
  %v528 = vpack.c.b16 %v502, %v501
  %v529 = vpack.c.b16 %v504, %v503
  %v530 = vpack.c.b16 %v506, %v505
  %v531 = vpack.c.b16 %v508, %v507
  %v532 = vpack.c.b16 %v510, %v509
  %v533 = vpack.c.b16 %v512, %v511
  %v534 = vpack.c.b16 %v514, %v513
  %v535 = vpack.c.b16 %v516, %v515
  %v536 = vpack.c.b16 %v518, %v517
  %v537 = vpack.c.b16 %v520, %v519
  %v538 = vpack.c.b16 %v522, %v521
  %555 = vmatpush.bf16.msra.mxu0 %v530
  %556 = vmatpush.bf16.msra.mxu0 %v529
  %557 = vmatpush.bf16.msra.mxu0 %v528
  %558 = vmatpush.bf16.msra.mxu0 %v527
  %559 = vmatpush.bf16.msra.mxu0 %v526
  %560 = vmatpush.bf16.msra.mxu0 %v525
  %561 = vmatpush.bf16.msra.mxu0 %v524
  %562 = vmatpush.bf16.msra.mxu0 %v523
  %563 = vmatmul.bf16.gmra.mxu0 %v331
  %v564 = vpop.f32.mrf.mxu0
  %v565 = vadd.f32 %v137, %v564
  %v566 = vpop.f32.mrf.mxu0
  %v567 = vadd.f32 %v137, %v566
  %568 = vmatmul.bf16.gmra.mxu0 %v333
  %v569 = vpop.f32.mrf.mxu0
  %v570 = vadd.f32 %v137, %v569
  %v571 = vpop.f32.mrf.mxu0
  %v572 = vadd.f32 %v137, %v571
  %573 = vmatmul.bf16.gmra.mxu0 %v335
  %v574 = vpop.f32.mrf.mxu0
  %v575 = vadd.f32 %v137, %v574
  %v576 = vpop.f32.mrf.mxu0
  %v577 = vadd.f32 %v137, %v576
  %578 = vmatmul.bf16.gmra.mxu0 %v337
  %v579 = vpop.f32.mrf.mxu0
  %v580 = vadd.f32 %v137, %v579
  %v581 = vpop.f32.mrf.mxu0
  %v582 = vadd.f32 %v137, %v581
  %583 = vmatmul.bf16.gmra.mxu0 %v339
  %v584 = vpop.f32.mrf.mxu0
  %v585 = vadd.f32 %v137, %v584
  %v586 = vpop.f32.mrf.mxu0
  %v587 = vadd.f32 %v137, %v586
  %588 = vmatmul.bf16.gmra.mxu0 %v341
  %v589 = vpop.f32.mrf.mxu0
  %v590 = vadd.f32 %v137, %v589
  %v591 = vpop.f32.mrf.mxu0
  %v592 = vadd.f32 %v137, %v591
  %593 = vmatmul.bf16.gmra.mxu0 %v343
  %v594 = vpop.f32.mrf.mxu0
  %v595 = vadd.f32 %v137, %v594
  %v596 = vpop.f32.mrf.mxu0
  %v597 = vadd.f32 %v137, %v596
  %598 = vmatmul.bf16.gmra.mxu0 %v345
  %v599 = vpop.f32.mrf.mxu0
  %v600 = vadd.f32 %v137, %v599
  %v601 = vpop.f32.mrf.mxu0
  %v602 = vadd.f32 %v137, %v601
  %603 = vmatmul.bf16.gmra.mxu0 %v347
  %v604 = vpop.f32.mrf.mxu0
  %v605 = vadd.f32 %v137, %v604
  %v606 = vpop.f32.mrf.mxu0
  %v607 = vadd.f32 %v137, %v606
  %608 = vmatmul.bf16.gmra.mxu0 %v349
  %v609 = vpop.f32.mrf.mxu0
  %v610 = vadd.f32 %v137, %v609
  %v611 = vpop.f32.mrf.mxu0
  %v612 = vadd.f32 %v137, %v611
  %613 = vmatmul.bf16.gmra.mxu0 %v351
  %v614 = vpop.f32.mrf.mxu0
  %v615 = vadd.f32 %v137, %v614
  %v616 = vpop.f32.mrf.mxu0
  %v617 = vadd.f32 %v137, %v616
  %618 = vmatmul.bf16.gmra.mxu0 %v353
  %v619 = vpop.f32.mrf.mxu0
  %v620 = vadd.f32 %v137, %v619
  %v621 = vpop.f32.mrf.mxu0
  %v622 = vadd.f32 %v137, %v621
  %623 = vmatmul.bf16.gmra.mxu0 %v355
  %v624 = vpop.f32.mrf.mxu0
  %v625 = vadd.f32 %v137, %v624
  %v626 = vpop.f32.mrf.mxu0
  %v627 = vadd.f32 %v137, %v626
  %628 = vmatmul.bf16.gmra.mxu0 %v357
  %v629 = vpop.f32.mrf.mxu0
  %v630 = vadd.f32 %v137, %v629
  %v631 = vpop.f32.mrf.mxu0
  %v632 = vadd.f32 %v137, %v631
  %633 = vmatmul.bf16.gmra.mxu0 %v359
  %v634 = vpop.f32.mrf.mxu0
  %v635 = vadd.f32 %v137, %v634
  %v636 = vpop.f32.mrf.mxu0
  %v637 = vadd.f32 %v137, %v636
  %638 = vmatmul.bf16.gmra.mxu0 %v361
  %v639 = vpop.f32.mrf.mxu0
  %v640 = vadd.f32 %v137, %v639
  %v641 = vpop.f32.mrf.mxu0
  %v642 = vadd.f32 %v137, %v641
  %643 = vmatmul.bf16.gmra.mxu0 %v363
  %v644 = vpop.f32.mrf.mxu0
  %v645 = vadd.f32 %v137, %v644
  %v646 = vpop.f32.mrf.mxu0
  %v647 = vadd.f32 %v137, %v646
  %648 = vmatmul.bf16.gmra.mxu0 %v365
  %v649 = vpop.f32.mrf.mxu0
  %v650 = vadd.f32 %v137, %v649
  %v651 = vpop.f32.mrf.mxu0
  %v652 = vadd.f32 %v137, %v651
  %653 = vmatmul.bf16.gmra.mxu0 %v367
  %v654 = vpop.f32.mrf.mxu0
  %v655 = vadd.f32 %v137, %v654
  %v656 = vpop.f32.mrf.mxu0
  %v657 = vadd.f32 %v137, %v656
  %658 = vmatmul.bf16.gmra.mxu0 %v369
  %v659 = vpop.f32.mrf.mxu0
  %v660 = vadd.f32 %v137, %v659
  %v661 = vpop.f32.mrf.mxu0
  %v662 = vadd.f32 %v137, %v661
  %663 = vmatmul.bf16.gmra.mxu0 %v371
  %v664 = vpop.f32.mrf.mxu0
  %v665 = vadd.f32 %v137, %v664
  %v666 = vpop.f32.mrf.mxu0
  %v667 = vadd.f32 %v137, %v666
  %668 = vmatmul.bf16.gmra.mxu0 %v373
  %v669 = vpop.f32.mrf.mxu0
  %v670 = vadd.f32 %v137, %v669
  %v671 = vpop.f32.mrf.mxu0
  %v672 = vadd.f32 %v137, %v671
  %673 = vmatmul.bf16.gmra.mxu0 %v375
  %v674 = vpop.f32.mrf.mxu0
  %v675 = vadd.f32 %v137, %v674
  %v676 = vpop.f32.mrf.mxu0
  %v677 = vadd.f32 %v137, %v676
  %678 = vmatmul.bf16.gmra.mxu0 %v377
  %v679 = vpop.f32.mrf.mxu0
  %v680 = vadd.f32 %v137, %v679
  %v681 = vpop.f32.mrf.mxu0
  %v682 = vadd.f32 %v137, %v681
  %683 = vmatmul.bf16.gmra.mxu0 %v379
  %v684 = vpop.f32.mrf.mxu0
  %v685 = vadd.f32 %v137, %v684
  %v686 = vpop.f32.mrf.mxu0
  %v687 = vadd.f32 %v137, %v686
  %688 = vmatmul.bf16.gmra.mxu0 %v381
  %v689 = vpop.f32.mrf.mxu0
  %v690 = vadd.f32 %v137, %v689
  %v691 = vpop.f32.mrf.mxu0
  %v692 = vadd.f32 %v137, %v691
  %693 = vmatmul.bf16.gmra.mxu0 %v383
  %v694 = vpop.f32.mrf.mxu0
  %v695 = vadd.f32 %v137, %v694
  %v696 = vpop.f32.mrf.mxu0
  %v697 = vadd.f32 %v137, %v696
  %698 = vmatmul.bf16.gmra.mxu0 %v385
  %v699 = vpop.f32.mrf.mxu0
  %v700 = vadd.f32 %v137, %v699
  %v701 = vpop.f32.mrf.mxu0
  %v702 = vadd.f32 %v137, %v701
  %703 = vmatmul.bf16.gmra.mxu0 %v387
  %v704 = vpop.f32.mrf.mxu0
  %v705 = vadd.f32 %v137, %v704
  %v706 = vpop.f32.mrf.mxu0
  %v707 = vadd.f32 %v137, %v706
  %708 = vmatmul.bf16.gmra.mxu0 %v389
  %v709 = vpop.f32.mrf.mxu0
  %v710 = vadd.f32 %v137, %v709
  %v711 = vpop.f32.mrf.mxu0
  %v712 = vadd.f32 %v137, %v711
  %713 = vmatmul.bf16.gmra.mxu0 %v391
  %v714 = vpop.f32.mrf.mxu0
  %v715 = vadd.f32 %v137, %v714
  %v716 = vpop.f32.mrf.mxu0
  %v717 = vadd.f32 %v137, %v716
  %718 = vmatmul.bf16.gmra.mxu0 %v393
  %v719 = vpop.f32.mrf.mxu0
  %v720 = vadd.f32 %v137, %v719
  %v721 = vpop.f32.mrf.mxu0
  %v722 = vadd.f32 %v137, %v721
  %723 = vdwg.mxu0
  %724 = vmatpush.bf16.msra.mxu0 %v538
  %725 = vmatpush.bf16.msra.mxu0 %v537
  %726 = vmatpush.bf16.msra.mxu0 %v536
  %727 = vmatpush.bf16.msra.mxu0 %v535
  %728 = vmatpush.bf16.msra.mxu0 %v534
  %729 = vmatpush.bf16.msra.mxu0 %v533
  %730 = vmatpush.bf16.msra.mxu0 %v532
  %731 = vmatpush.bf16.msra.mxu0 %v531
  %732 = vmatmul.bf16.gmra.mxu0 %v332
  %v733 = vpop.f32.mrf.mxu0
  %v734 = vadd.f32 %v565, %v733
  %v735 = vpop.f32.mrf.mxu0
  %v736 = vadd.f32 %v567, %v735
  %737 = vmatmul.bf16.gmra.mxu0 %v334
  %v738 = vpop.f32.mrf.mxu0
  %v739 = vadd.f32 %v570, %v738
  %v740 = vpop.f32.mrf.mxu0
  %v741 = vadd.f32 %v572, %v740
  %742 = vmatmul.bf16.gmra.mxu0 %v336
  %v743 = vpop.f32.mrf.mxu0
  %v744 = vadd.f32 %v575, %v743
  %v745 = vpop.f32.mrf.mxu0
  %v746 = vadd.f32 %v577, %v745
  %747 = vmatmul.bf16.gmra.mxu0 %v338
  %v748 = vpop.f32.mrf.mxu0
  %v749 = vadd.f32 %v580, %v748
  %v750 = vpop.f32.mrf.mxu0
  %v751 = vadd.f32 %v582, %v750
  %752 = vmatmul.bf16.gmra.mxu0 %v340
  %v753 = vpop.f32.mrf.mxu0
  %v754 = vadd.f32 %v585, %v753
  %v755 = vpop.f32.mrf.mxu0
  %v756 = vadd.f32 %v587, %v755
  %757 = vmatmul.bf16.gmra.mxu0 %v342
  %v758 = vpop.f32.mrf.mxu0
  %v759 = vadd.f32 %v590, %v758
  %v760 = vpop.f32.mrf.mxu0
  %v761 = vadd.f32 %v592, %v760
  %762 = vmatmul.bf16.gmra.mxu0 %v344
  %v763 = vpop.f32.mrf.mxu0
  %v764 = vadd.f32 %v595, %v763
  %v765 = vpop.f32.mrf.mxu0
  %v766 = vadd.f32 %v597, %v765
  %767 = vmatmul.bf16.gmra.mxu0 %v346
  %v768 = vpop.f32.mrf.mxu0
  %v769 = vadd.f32 %v600, %v768
  %v770 = vpop.f32.mrf.mxu0
  %v771 = vadd.f32 %v602, %v770
  %772 = vmatmul.bf16.gmra.mxu0 %v348
  %v773 = vpop.f32.mrf.mxu0
  %v774 = vadd.f32 %v605, %v773
  %v775 = vpop.f32.mrf.mxu0
  %v776 = vadd.f32 %v607, %v775
  %777 = vmatmul.bf16.gmra.mxu0 %v350
  %v778 = vpop.f32.mrf.mxu0
  %v779 = vadd.f32 %v610, %v778
  %v780 = vpop.f32.mrf.mxu0
  %v781 = vadd.f32 %v612, %v780
  %782 = vmatmul.bf16.gmra.mxu0 %v352
  %v783 = vpop.f32.mrf.mxu0
  %v784 = vadd.f32 %v615, %v783
  %v785 = vpop.f32.mrf.mxu0
  %v786 = vadd.f32 %v617, %v785
  %787 = vmatmul.bf16.gmra.mxu0 %v354
  %v788 = vpop.f32.mrf.mxu0
  %v789 = vadd.f32 %v620, %v788
  %v790 = vpop.f32.mrf.mxu0
  %v791 = vadd.f32 %v622, %v790
  %792 = vmatmul.bf16.gmra.mxu0 %v356
  %v793 = vpop.f32.mrf.mxu0
  %v794 = vadd.f32 %v625, %v793
  %v795 = vpop.f32.mrf.mxu0
  %v796 = vadd.f32 %v627, %v795
  %797 = vmatmul.bf16.gmra.mxu0 %v358
  %v798 = vpop.f32.mrf.mxu0
  %v799 = vadd.f32 %v630, %v798
  %v800 = vpop.f32.mrf.mxu0
  %v801 = vadd.f32 %v632, %v800
  %802 = vmatmul.bf16.gmra.mxu0 %v360
  %v803 = vpop.f32.mrf.mxu0
  %v804 = vadd.f32 %v635, %v803
  %v805 = vpop.f32.mrf.mxu0
  %v806 = vadd.f32 %v637, %v805
  %807 = vmatmul.bf16.gmra.mxu0 %v362
  %v808 = vpop.f32.mrf.mxu0
  %v809 = vadd.f32 %v640, %v808
  %v810 = vpop.f32.mrf.mxu0
  %v811 = vadd.f32 %v642, %v810
  %812 = vmatmul.bf16.gmra.mxu0 %v364
  %v813 = vpop.f32.mrf.mxu0
  %v814 = vadd.f32 %v645, %v813
  %v815 = vpop.f32.mrf.mxu0
  %v816 = vadd.f32 %v647, %v815
  %817 = vmatmul.bf16.gmra.mxu0 %v366
  %v818 = vpop.f32.mrf.mxu0
  %v819 = vadd.f32 %v650, %v818
  %v820 = vpop.f32.mrf.mxu0
  %v821 = vadd.f32 %v652, %v820
  %822 = vmatmul.bf16.gmra.mxu0 %v368
  %v823 = vpop.f32.mrf.mxu0
  %v824 = vadd.f32 %v655, %v823
  %v825 = vpop.f32.mrf.mxu0
  %v826 = vadd.f32 %v657, %v825
  %827 = vmatmul.bf16.gmra.mxu0 %v370
  %v828 = vpop.f32.mrf.mxu0
  %v829 = vadd.f32 %v660, %v828
  %v830 = vpop.f32.mrf.mxu0
  %v831 = vadd.f32 %v662, %v830
  %832 = vmatmul.bf16.gmra.mxu0 %v372
  %v833 = vpop.f32.mrf.mxu0
  %v834 = vadd.f32 %v665, %v833
  %v835 = vpop.f32.mrf.mxu0
  %v836 = vadd.f32 %v667, %v835
  %837 = vmatmul.bf16.gmra.mxu0 %v374
  %v838 = vpop.f32.mrf.mxu0
  %v839 = vadd.f32 %v670, %v838
  %v840 = vpop.f32.mrf.mxu0
  %v841 = vadd.f32 %v672, %v840
  %842 = vmatmul.bf16.gmra.mxu0 %v376
  %v843 = vpop.f32.mrf.mxu0
  %v844 = vadd.f32 %v675, %v843
  %v845 = vpop.f32.mrf.mxu0
  %v846 = vadd.f32 %v677, %v845
  %847 = vmatmul.bf16.gmra.mxu0 %v378
  %v848 = vpop.f32.mrf.mxu0
  %v849 = vadd.f32 %v680, %v848
  %v850 = vpop.f32.mrf.mxu0
  %v851 = vadd.f32 %v682, %v850
  %852 = vmatmul.bf16.gmra.mxu0 %v380
  %v853 = vpop.f32.mrf.mxu0
  %v854 = vadd.f32 %v685, %v853
  %v855 = vpop.f32.mrf.mxu0
  %v856 = vadd.f32 %v687, %v855
  %857 = vmatmul.bf16.gmra.mxu0 %v382
  %v858 = vpop.f32.mrf.mxu0
  %v859 = vadd.f32 %v690, %v858
  %v860 = vpop.f32.mrf.mxu0
  %v861 = vadd.f32 %v692, %v860
  %862 = vmatmul.bf16.gmra.mxu0 %v384
  %v863 = vpop.f32.mrf.mxu0
  %v864 = vadd.f32 %v695, %v863
  %v865 = vpop.f32.mrf.mxu0
  %v866 = vadd.f32 %v697, %v865
  %867 = vmatmul.bf16.gmra.mxu0 %v386
  %v868 = vpop.f32.mrf.mxu0
  %v869 = vadd.f32 %v700, %v868
  %v870 = vpop.f32.mrf.mxu0
  %v871 = vadd.f32 %v702, %v870
  %872 = vmatmul.bf16.gmra.mxu0 %v388
  %v873 = vpop.f32.mrf.mxu0
  %v874 = vadd.f32 %v705, %v873
  %v875 = vpop.f32.mrf.mxu0
  %v876 = vadd.f32 %v707, %v875
  %877 = vmatmul.bf16.gmra.mxu0 %v390
  %v878 = vpop.f32.mrf.mxu0
  %v879 = vadd.f32 %v710, %v878
  %v880 = vpop.f32.mrf.mxu0
  %v881 = vadd.f32 %v712, %v880
  %882 = vmatmul.bf16.gmra.mxu0 %v392
  %v883 = vpop.f32.mrf.mxu0
  %v884 = vadd.f32 %v715, %v883
  %v885 = vpop.f32.mrf.mxu0
  %v886 = vadd.f32 %v717, %v885
  %887 = vmatmul.bf16.gmra.mxu0 %v394
  %v888 = vpop.f32.mrf.mxu0
  %v889 = vadd.f32 %v720, %v888
  %v890 = vpop.f32.mrf.mxu0
  %v891 = vadd.f32 %v722, %v890
  %892 = vdwg.mxu0
  %v893 = vmax.f32 %v734, 0.0
  %v894 = vmax.f32 %v736, 0.0
  %v895 = vmax.f32 %v739, 0.0
  %v896 = vmax.f32 %v741, 0.0
  %v897 = vmax.f32 %v744, 0.0
  %v898 = vmax.f32 %v746, 0.0
  %v899 = vmax.f32 %v749, 0.0
  %v900 = vmax.f32 %v751, 0.0
  %v901 = vmax.f32 %v754, 0.0
  %v902 = vmax.f32 %v756, 0.0
  %v903 = vmax.f32 %v759, 0.0
  %v904 = vmax.f32 %v761, 0.0
  %v905 = vmax.f32 %v764, 0.0
  %v906 = vmax.f32 %v766, 0.0
  %v907 = vmax.f32 %v769, 0.0
  %v908 = vmax.f32 %v771, 0.0
  %v909 = vmax.f32 %v774, 0.0
  %v910 = vmax.f32 %v776, 0.0
  %v911 = vmax.f32 %v779, 0.0
  %v912 = vmax.f32 %v781, 0.0
  %v913 = vmax.f32 %v784, 0.0
  %v914 = vmax.f32 %v786, 0.0
  %v915 = vmax.f32 %v789, 0.0
  %v916 = vmax.f32 %v791, 0.0
  %v917 = vmax.f32 %v794, 0.0
  %v918 = vmax.f32 %v796, 0.0
  %v919 = vmax.f32 %v799, 0.0
  %v920 = vmax.f32 %v801, 0.0
  %v921 = vmax.f32 %v804, 0.0
  %v922 = vmax.f32 %v806, 0.0
  %v923 = vmax.f32 %v809, 0.0
  %v924 = vmax.f32 %v811, 0.0
  %v925 = vmax.f32 %v814, 0.0
  %v926 = vmax.f32 %v816, 0.0
  %v927 = vmax.f32 %v819, 0.0
  %v928 = vmax.f32 %v821, 0.0
  %v929 = vmax.f32 %v824, 0.0
  %v930 = vmax.f32 %v826, 0.0
  %v931 = vmax.f32 %v829, 0.0
  %v932 = vmax.f32 %v831, 0.0
  %v933 = vmax.f32 %v834, 0.0
  %v934 = vmax.f32 %v836, 0.0
  %v935 = vmax.f32 %v839, 0.0
  %v936 = vmax.f32 %v841, 0.0
  %v937 = vmax.f32 %v844, 0.0
  %v938 = vmax.f32 %v846, 0.0
  %v939 = vmax.f32 %v849, 0.0
  %v940 = vmax.f32 %v851, 0.0
  %v941 = vmax.f32 %v854, 0.0
  %v942 = vmax.f32 %v856, 0.0
  %v943 = vmax.f32 %v859, 0.0
  %v944 = vmax.f32 %v861, 0.0
  %v945 = vmax.f32 %v864, 0.0
  %v946 = vmax.f32 %v866, 0.0
  %v947 = vmax.f32 %v869, 0.0
  %v948 = vmax.f32 %v871, 0.0
  %v949 = vmax.f32 %v874, 0.0
  %v950 = vmax.f32 %v876, 0.0
  %v951 = vmax.f32 %v879, 0.0
  %v952 = vmax.f32 %v881, 0.0
  %v953 = vmax.f32 %v884, 0.0
  %v954 = vmax.f32 %v886, 0.0
  %v955 = vmax.f32 %v889, 0.0
  %v956 = vmax.f32 %v891, 0.0
  %965 = vrot.lane.b32.xlu0 %v901, 64
  %v966 = vpop.permute.xlu0 %965
  %967 = vrot.lane.b32.xlu0 %v902, 64
  %v968 = vpop.permute.xlu0 %967
  %969 = vrot.lane.b32.xlu0 %v903, 64
  %v970 = vpop.permute.xlu0 %969
  %971 = vrot.lane.b32.xlu0 %v904, 64
  %v972 = vpop.permute.xlu0 %971
  %973 = vrot.lane.b32.xlu0 %v905, 64
  %v974 = vpop.permute.xlu0 %973
  %975 = vrot.lane.b32.xlu0 %v906, 64
  %v976 = vpop.permute.xlu0 %975
  %977 = vrot.lane.b32.xlu0 %v907, 64
  %v978 = vpop.permute.xlu0 %977
  %979 = vrot.lane.b32.xlu0 %v908, 64
  %v980 = vpop.permute.xlu0 %979
  %997 = vrot.lane.b32.xlu0 %v917, 64
  %v998 = vpop.permute.xlu0 %997
  %999 = vrot.lane.b32.xlu0 %v918, 64
  %v1000 = vpop.permute.xlu0 %999
  %1001 = vrot.lane.b32.xlu0 %v919, 64
  %v1002 = vpop.permute.xlu0 %1001
  %1003 = vrot.lane.b32.xlu0 %v920, 64
  %v1004 = vpop.permute.xlu0 %1003
  %1005 = vrot.lane.b32.xlu0 %v921, 64
  %v1006 = vpop.permute.xlu0 %1005
  %1007 = vrot.lane.b32.xlu0 %v922, 64
  %v1008 = vpop.permute.xlu0 %1007
  %1009 = vrot.lane.b32.xlu0 %v923, 64
  %v1010 = vpop.permute.xlu0 %1009
  %1011 = vrot.lane.b32.xlu0 %v924, 64
  %v1012 = vpop.permute.xlu0 %1011
  %1029 = vrot.lane.b32.xlu0 %v933, 64
  %v1030 = vpop.permute.xlu0 %1029
  %1031 = vrot.lane.b32.xlu0 %v934, 64
  %v1032 = vpop.permute.xlu0 %1031
  %1033 = vrot.lane.b32.xlu0 %v935, 64
  %v1034 = vpop.permute.xlu0 %1033
  %1035 = vrot.lane.b32.xlu0 %v936, 64
  %v1036 = vpop.permute.xlu0 %1035
  %1037 = vrot.lane.b32.xlu0 %v937, 64
  %v1038 = vpop.permute.xlu0 %1037
  %1039 = vrot.lane.b32.xlu0 %v938, 64
  %v1040 = vpop.permute.xlu0 %1039
  %1041 = vrot.lane.b32.xlu0 %v939, 64
  %v1042 = vpop.permute.xlu0 %1041
  %1043 = vrot.lane.b32.xlu0 %v940, 64
  %v1044 = vpop.permute.xlu0 %1043
  %1061 = vrot.lane.b32.xlu0 %v949, 64
  %v1062 = vpop.permute.xlu0 %1061
  %1063 = vrot.lane.b32.xlu0 %v950, 64
  %v1064 = vpop.permute.xlu0 %1063
  %1065 = vrot.lane.b32.xlu0 %v951, 64
  %v1066 = vpop.permute.xlu0 %1065
  %1067 = vrot.lane.b32.xlu0 %v952, 64
  %v1068 = vpop.permute.xlu0 %1067
  %1069 = vrot.lane.b32.xlu0 %v953, 64
  %v1070 = vpop.permute.xlu0 %1069
  %1071 = vrot.lane.b32.xlu0 %v954, 64
  %v1072 = vpop.permute.xlu0 %1071
  %1073 = vrot.lane.b32.xlu0 %v955, 64
  %v1074 = vpop.permute.xlu0 %1073
  %1075 = vrot.lane.b32.xlu0 %v956, 64
  %v1076 = vpop.permute.xlu0 %1075
  %vm1085 = vcmask 523264
  %v1086 = vsel %vm1085, %v893, %v966
  %v1087 = vsel %vm1085, %v894, %v968
  %v1088 = vsel %vm1085, %v895, %v970
  %v1089 = vsel %vm1085, %v896, %v972
  %v1090 = vsel %vm1085, %v897, %v974
  %v1091 = vsel %vm1085, %v898, %v976
  %v1092 = vsel %vm1085, %v899, %v978
  %v1093 = vsel %vm1085, %v900, %v980
  %v1094 = vsel %vm1085, %v909, %v998
  %v1095 = vsel %vm1085, %v910, %v1000
  %v1096 = vsel %vm1085, %v911, %v1002
  %v1097 = vsel %vm1085, %v912, %v1004
  %v1098 = vsel %vm1085, %v913, %v1006
  %v1099 = vsel %vm1085, %v914, %v1008
  %v1100 = vsel %vm1085, %v915, %v1010
  %v1101 = vsel %vm1085, %v916, %v1012
  %v1102 = vsel %vm1085, %v925, %v1030
  %v1103 = vsel %vm1085, %v926, %v1032
  %v1104 = vsel %vm1085, %v927, %v1034
  %v1105 = vsel %vm1085, %v928, %v1036
  %v1106 = vsel %vm1085, %v929, %v1038
  %v1107 = vsel %vm1085, %v930, %v1040
  %v1108 = vsel %vm1085, %v931, %v1042
  %v1109 = vsel %vm1085, %v932, %v1044
  %v1110 = vsel %vm1085, %v941, %v1062
  %v1111 = vsel %vm1085, %v942, %v1064
  %v1112 = vsel %vm1085, %v943, %v1066
  %v1113 = vsel %vm1085, %v944, %v1068
  %v1114 = vsel %vm1085, %v945, %v1070
  %v1115 = vsel %vm1085, %v946, %v1072
  %v1116 = vsel %vm1085, %v947, %v1074
  %v1117 = vsel %vm1085, %v948, %v1076
  %v1134 = vrot.slane %v1087, 7
  %vm1135 = vcmask 1041409
  %v1136 = vsel %vm1135, %v1134, %v1086
  %v1137 = vrot.slane %v1088, 6
  %vm1138 = vcmask 1042434
  %v1139 = vsel %vm1138, %v1137, %v1136
  %v1140 = vrot.slane %v1089, 5
  %vm1141 = vcmask 1043459
  %v1142 = vsel %vm1141, %v1140, %v1139
  %v1143 = vrot.slane %v1090, 4
  %vm1144 = vcmask 1044484
  %v1145 = vsel %vm1144, %v1143, %v1142
  %v1146 = vrot.slane %v1091, 3
  %vm1147 = vcmask 1045509
  %v1148 = vsel %vm1147, %v1146, %v1145
  %v1149 = vrot.slane %v1092, 2
  %vm1150 = vcmask 1046534
  %v1151 = vsel %vm1150, %v1149, %v1148
  %v1152 = vrot.slane %v1093, 1
  %vm1153 = vcmask 1047559
  %v1154 = vsel %vm1153, %v1152, %v1151
  %v1155 = vrot.slane %v1095, 7
  %v1156 = vsel %vm1135, %v1155, %v1094
  %v1157 = vrot.slane %v1096, 6
  %v1158 = vsel %vm1138, %v1157, %v1156
  %v1159 = vrot.slane %v1097, 5
  %v1160 = vsel %vm1141, %v1159, %v1158
  %v1161 = vrot.slane %v1098, 4
  %v1162 = vsel %vm1144, %v1161, %v1160
  %v1163 = vrot.slane %v1099, 3
  %v1164 = vsel %vm1147, %v1163, %v1162
  %v1165 = vrot.slane %v1100, 2
  %v1166 = vsel %vm1150, %v1165, %v1164
  %v1167 = vrot.slane %v1101, 1
  %v1168 = vsel %vm1153, %v1167, %v1166
  %v1171 = vrot.slane %v1086, 1
  %v1172 = vsel %vm1135, %v1087, %v1171
  %v1173 = vrot.slane %v1088, 7
  %v1174 = vsel %vm1138, %v1173, %v1172
  %v1175 = vrot.slane %v1089, 6
  %v1176 = vsel %vm1141, %v1175, %v1174
  %v1177 = vrot.slane %v1090, 5
  %v1178 = vsel %vm1144, %v1177, %v1176
  %v1179 = vrot.slane %v1091, 4
  %v1180 = vsel %vm1147, %v1179, %v1178
  %v1181 = vrot.slane %v1092, 3
  %v1182 = vsel %vm1150, %v1181, %v1180
  %v1183 = vrot.slane %v1093, 2
  %v1184 = vsel %vm1153, %v1183, %v1182
  %v1185 = vrot.slane %v1094, 1
  %v1186 = vsel %vm1135, %v1095, %v1185
  %v1187 = vrot.slane %v1096, 7
  %v1188 = vsel %vm1138, %v1187, %v1186
  %v1189 = vrot.slane %v1097, 6
  %v1190 = vsel %vm1141, %v1189, %v1188
  %v1191 = vrot.slane %v1098, 5
  %v1192 = vsel %vm1144, %v1191, %v1190
  %v1193 = vrot.slane %v1099, 4
  %v1194 = vsel %vm1147, %v1193, %v1192
  %v1195 = vrot.slane %v1100, 3
  %v1196 = vsel %vm1150, %v1195, %v1194
  %v1197 = vrot.slane %v1101, 2
  %v1198 = vsel %vm1153, %v1197, %v1196
  %v1201 = vrot.slane %v1086, 2
  %v1202 = vrot.slane %v1087, 1
  %v1203 = vsel %vm1135, %v1202, %v1201
  %v1204 = vsel %vm1138, %v1088, %v1203
  %v1205 = vrot.slane %v1089, 7
  %v1206 = vsel %vm1141, %v1205, %v1204
  %v1207 = vrot.slane %v1090, 6
  %v1208 = vsel %vm1144, %v1207, %v1206
  %v1209 = vrot.slane %v1091, 5
  %v1210 = vsel %vm1147, %v1209, %v1208
  %v1211 = vrot.slane %v1092, 4
  %v1212 = vsel %vm1150, %v1211, %v1210
  %v1213 = vrot.slane %v1093, 3
  %v1214 = vsel %vm1153, %v1213, %v1212
  %v1215 = vrot.slane %v1094, 2
  %v1216 = vrot.slane %v1095, 1
  %v1217 = vsel %vm1135, %v1216, %v1215
  %v1218 = vsel %vm1138, %v1096, %v1217
  %v1219 = vrot.slane %v1097, 7
  %v1220 = vsel %vm1141, %v1219, %v1218
  %v1221 = vrot.slane %v1098, 6
  %v1222 = vsel %vm1144, %v1221, %v1220
  %v1223 = vrot.slane %v1099, 5
  %v1224 = vsel %vm1147, %v1223, %v1222
  %v1225 = vrot.slane %v1100, 4
  %v1226 = vsel %vm1150, %v1225, %v1224
  %v1227 = vrot.slane %v1101, 3
  %v1228 = vsel %vm1153, %v1227, %v1226
  %v1231 = vrot.slane %v1086, 3
  %v1232 = vrot.slane %v1087, 2
  %v1233 = vsel %vm1135, %v1232, %v1231
  %v1234 = vrot.slane %v1088, 1
  %v1235 = vsel %vm1138, %v1234, %v1233
  %v1236 = vsel %vm1141, %v1089, %v1235
  %v1237 = vrot.slane %v1090, 7
  %v1238 = vsel %vm1144, %v1237, %v1236
  %v1239 = vrot.slane %v1091, 6
  %v1240 = vsel %vm1147, %v1239, %v1238
  %v1241 = vrot.slane %v1092, 5
  %v1242 = vsel %vm1150, %v1241, %v1240
  %v1243 = vrot.slane %v1093, 4
  %v1244 = vsel %vm1153, %v1243, %v1242
  %v1245 = vrot.slane %v1094, 3
  %v1246 = vrot.slane %v1095, 2
  %v1247 = vsel %vm1135, %v1246, %v1245
  %v1248 = vrot.slane %v1096, 1
  %v1249 = vsel %vm1138, %v1248, %v1247
  %v1250 = vsel %vm1141, %v1097, %v1249
  %v1251 = vrot.slane %v1098, 7
  %v1252 = vsel %vm1144, %v1251, %v1250
  %v1253 = vrot.slane %v1099, 6
  %v1254 = vsel %vm1147, %v1253, %v1252
  %v1255 = vrot.slane %v1100, 5
  %v1256 = vsel %vm1150, %v1255, %v1254
  %v1257 = vrot.slane %v1101, 4
  %v1258 = vsel %vm1153, %v1257, %v1256
  %v1269 = vrot.slane %v1103, 7
  %v1270 = vsel %vm1135, %v1269, %v1102
  %v1271 = vrot.slane %v1104, 6
  %v1272 = vsel %vm1138, %v1271, %v1270
  %v1273 = vrot.slane %v1105, 5
  %v1274 = vsel %vm1141, %v1273, %v1272
  %v1275 = vrot.slane %v1106, 4
  %v1276 = vsel %vm1144, %v1275, %v1274
  %v1277 = vrot.slane %v1107, 3
  %v1278 = vsel %vm1147, %v1277, %v1276
  %v1279 = vrot.slane %v1108, 2
  %v1280 = vsel %vm1150, %v1279, %v1278
  %v1281 = vrot.slane %v1109, 1
  %v1282 = vsel %vm1153, %v1281, %v1280
  %v1284 = vrot.slane %v1102, 1
  %v1285 = vsel %vm1135, %v1103, %v1284
  %v1286 = vrot.slane %v1104, 7
  %v1287 = vsel %vm1138, %v1286, %v1285
  %v1288 = vrot.slane %v1105, 6
  %v1289 = vsel %vm1141, %v1288, %v1287
  %v1290 = vrot.slane %v1106, 5
  %v1291 = vsel %vm1144, %v1290, %v1289
  %v1292 = vrot.slane %v1107, 4
  %v1293 = vsel %vm1147, %v1292, %v1291
  %v1294 = vrot.slane %v1108, 3
  %v1295 = vsel %vm1150, %v1294, %v1293
  %v1296 = vrot.slane %v1109, 2
  %v1297 = vsel %vm1153, %v1296, %v1295
  %v1299 = vrot.slane %v1102, 2
  %v1300 = vrot.slane %v1103, 1
  %v1301 = vsel %vm1135, %v1300, %v1299
  %v1302 = vsel %vm1138, %v1104, %v1301
  %v1303 = vrot.slane %v1105, 7
  %v1304 = vsel %vm1141, %v1303, %v1302
  %v1305 = vrot.slane %v1106, 6
  %v1306 = vsel %vm1144, %v1305, %v1304
  %v1307 = vrot.slane %v1107, 5
  %v1308 = vsel %vm1147, %v1307, %v1306
  %v1309 = vrot.slane %v1108, 4
  %v1310 = vsel %vm1150, %v1309, %v1308
  %v1311 = vrot.slane %v1109, 3
  %v1312 = vsel %vm1153, %v1311, %v1310
  %v1314 = vrot.slane %v1102, 3
  %v1315 = vrot.slane %v1103, 2
  %v1316 = vsel %vm1135, %v1315, %v1314
  %v1317 = vrot.slane %v1104, 1
  %v1318 = vsel %vm1138, %v1317, %v1316
  %v1319 = vsel %vm1141, %v1105, %v1318
  %v1320 = vrot.slane %v1106, 7
  %v1321 = vsel %vm1144, %v1320, %v1319
  %v1322 = vrot.slane %v1107, 6
  %v1323 = vsel %vm1147, %v1322, %v1321
  %v1324 = vrot.slane %v1108, 5
  %v1325 = vsel %vm1150, %v1324, %v1323
  %v1326 = vrot.slane %v1109, 4
  %v1327 = vsel %vm1153, %v1326, %v1325
  %v1337 = vrot.slane %v1111, 7
  %v1338 = vsel %vm1135, %v1337, %v1110
  %v1339 = vrot.slane %v1112, 6
  %v1340 = vsel %vm1138, %v1339, %v1338
  %v1341 = vrot.slane %v1113, 5
  %v1342 = vsel %vm1141, %v1341, %v1340
  %v1343 = vrot.slane %v1114, 4
  %v1344 = vsel %vm1144, %v1343, %v1342
  %v1345 = vrot.slane %v1115, 3
  %v1346 = vsel %vm1147, %v1345, %v1344
  %v1347 = vrot.slane %v1116, 2
  %v1348 = vsel %vm1150, %v1347, %v1346
  %v1349 = vrot.slane %v1117, 1
  %v1350 = vsel %vm1153, %v1349, %v1348
  %v1352 = vrot.slane %v1110, 1
  %v1353 = vsel %vm1135, %v1111, %v1352
  %v1354 = vrot.slane %v1112, 7
  %v1355 = vsel %vm1138, %v1354, %v1353
  %v1356 = vrot.slane %v1113, 6
  %v1357 = vsel %vm1141, %v1356, %v1355
  %v1358 = vrot.slane %v1114, 5
  %v1359 = vsel %vm1144, %v1358, %v1357
  %v1360 = vrot.slane %v1115, 4
  %v1361 = vsel %vm1147, %v1360, %v1359
  %v1362 = vrot.slane %v1116, 3
  %v1363 = vsel %vm1150, %v1362, %v1361
  %v1364 = vrot.slane %v1117, 2
  %v1365 = vsel %vm1153, %v1364, %v1363
  %v1367 = vrot.slane %v1110, 2
  %v1368 = vrot.slane %v1111, 1
  %v1369 = vsel %vm1135, %v1368, %v1367
  %v1370 = vsel %vm1138, %v1112, %v1369
  %v1371 = vrot.slane %v1113, 7
  %v1372 = vsel %vm1141, %v1371, %v1370
  %v1373 = vrot.slane %v1114, 6
  %v1374 = vsel %vm1144, %v1373, %v1372
  %v1375 = vrot.slane %v1115, 5
  %v1376 = vsel %vm1147, %v1375, %v1374
  %v1377 = vrot.slane %v1116, 4
  %v1378 = vsel %vm1150, %v1377, %v1376
  %v1379 = vrot.slane %v1117, 3
  %v1380 = vsel %vm1153, %v1379, %v1378
  %v1382 = vrot.slane %v1110, 3
  %v1383 = vrot.slane %v1111, 2
  %v1384 = vsel %vm1135, %v1383, %v1382
  %v1385 = vrot.slane %v1112, 1
  %v1386 = vsel %vm1138, %v1385, %v1384
  %v1387 = vsel %vm1141, %v1113, %v1386
  %v1388 = vrot.slane %v1114, 7
  %v1389 = vsel %vm1144, %v1388, %v1387
  %v1390 = vrot.slane %v1115, 6
  %v1391 = vsel %vm1147, %v1390, %v1389
  %v1392 = vrot.slane %v1116, 5
  %v1393 = vsel %vm1150, %v1392, %v1391
  %v1394 = vrot.slane %v1117, 4
  %v1395 = vsel %vm1153, %v1394, %v1393
  %v1397 = vsel %vm1141, %v1134, %v1086
  %v1398 = vsel %vm1144, %v1137, %v1397
  %v1399 = vsel %vm1147, %v1140, %v1398
  %v1400 = vsel %vm1150, %v1143, %v1399
  %v1401 = vsel %vm1153, %v1146, %v1400
  %v1402 = vsel %vm1141, %v1155, %v1094
  %v1403 = vsel %vm1144, %v1157, %v1402
  %v1404 = vsel %vm1147, %v1159, %v1403
  %v1405 = vsel %vm1150, %v1161, %v1404
  %v1406 = vsel %vm1153, %v1163, %v1405
  %v1407 = vsel %vm1135, %v1152, %v1149
  %v1408 = vsel %vm1135, %v1167, %v1165
  %v1409 = vsel %vm1141, %v1087, %v1171
  %v1410 = vsel %vm1144, %v1173, %v1409
  %v1411 = vsel %vm1147, %v1175, %v1410
  %v1412 = vsel %vm1150, %v1177, %v1411
  %v1413 = vsel %vm1153, %v1179, %v1412
  %v1414 = vsel %vm1141, %v1095, %v1185
  %v1415 = vsel %vm1144, %v1187, %v1414
  %v1416 = vsel %vm1147, %v1189, %v1415
  %v1417 = vsel %vm1150, %v1191, %v1416
  %v1418 = vsel %vm1153, %v1193, %v1417
  %v1419 = vsel %vm1135, %v1183, %v1181
  %v1420 = vsel %vm1135, %v1197, %v1195
  %v1421 = vsel %vm1141, %v1202, %v1201
  %v1422 = vsel %vm1144, %v1088, %v1421
  %v1423 = vsel %vm1147, %v1205, %v1422
  %v1424 = vsel %vm1150, %v1207, %v1423
  %v1425 = vsel %vm1153, %v1209, %v1424
  %v1426 = vsel %vm1141, %v1216, %v1215
  %v1427 = vsel %vm1144, %v1096, %v1426
  %v1428 = vsel %vm1147, %v1219, %v1427
  %v1429 = vsel %vm1150, %v1221, %v1428
  %v1430 = vsel %vm1153, %v1223, %v1429
  %v1431 = vsel %vm1135, %v1213, %v1211
  %v1432 = vsel %vm1135, %v1227, %v1225
  %v1433 = vsel %vm1141, %v1232, %v1231
  %v1434 = vsel %vm1144, %v1234, %v1433
  %v1435 = vsel %vm1147, %v1089, %v1434
  %v1436 = vsel %vm1150, %v1237, %v1435
  %v1437 = vsel %vm1153, %v1239, %v1436
  %v1438 = vsel %vm1141, %v1246, %v1245
  %v1439 = vsel %vm1144, %v1248, %v1438
  %v1440 = vsel %vm1147, %v1097, %v1439
  %v1441 = vsel %vm1150, %v1251, %v1440
  %v1442 = vsel %vm1153, %v1253, %v1441
  %v1443 = vsel %vm1135, %v1243, %v1241
  %v1444 = vsel %vm1135, %v1257, %v1255
  %v1445 = vsel %vm1141, %v1269, %v1102
  %v1446 = vsel %vm1144, %v1271, %v1445
  %v1447 = vsel %vm1147, %v1273, %v1446
  %v1448 = vsel %vm1150, %v1275, %v1447
  %v1449 = vsel %vm1153, %v1277, %v1448
  %v1450 = vsel %vm1135, %v1281, %v1279
  %v1451 = vsel %vm1141, %v1103, %v1284
  %v1452 = vsel %vm1144, %v1286, %v1451
  %v1453 = vsel %vm1147, %v1288, %v1452
  %v1454 = vsel %vm1150, %v1290, %v1453
  %v1455 = vsel %vm1153, %v1292, %v1454
  %v1456 = vsel %vm1135, %v1296, %v1294
  %v1457 = vsel %vm1141, %v1300, %v1299
  %v1458 = vsel %vm1144, %v1104, %v1457
  %v1459 = vsel %vm1147, %v1303, %v1458
  %v1460 = vsel %vm1150, %v1305, %v1459
  %v1461 = vsel %vm1153, %v1307, %v1460
  %v1462 = vsel %vm1135, %v1311, %v1309
  %v1463 = vsel %vm1141, %v1315, %v1314
  %v1464 = vsel %vm1144, %v1317, %v1463
  %v1465 = vsel %vm1147, %v1105, %v1464
  %v1466 = vsel %vm1150, %v1320, %v1465
  %v1467 = vsel %vm1153, %v1322, %v1466
  %v1468 = vsel %vm1135, %v1326, %v1324
  %v1469 = vsel %vm1141, %v1337, %v1110
  %v1470 = vsel %vm1144, %v1339, %v1469
  %v1471 = vsel %vm1147, %v1341, %v1470
  %v1472 = vsel %vm1150, %v1343, %v1471
  %v1473 = vsel %vm1153, %v1345, %v1472
  %v1474 = vsel %vm1135, %v1349, %v1347
  %v1475 = vsel %vm1141, %v1111, %v1352
  %v1476 = vsel %vm1144, %v1354, %v1475
  %v1477 = vsel %vm1147, %v1356, %v1476
  %v1478 = vsel %vm1150, %v1358, %v1477
  %v1479 = vsel %vm1153, %v1360, %v1478
  %v1480 = vsel %vm1135, %v1364, %v1362
  %v1481 = vsel %vm1141, %v1368, %v1367
  %v1482 = vsel %vm1144, %v1112, %v1481
  %v1483 = vsel %vm1147, %v1371, %v1482
  %v1484 = vsel %vm1150, %v1373, %v1483
  %v1485 = vsel %vm1153, %v1375, %v1484
  %v1486 = vsel %vm1135, %v1379, %v1377
  %v1487 = vsel %vm1141, %v1383, %v1382
  %v1488 = vsel %vm1144, %v1385, %v1487
  %v1489 = vsel %vm1147, %v1113, %v1488
  %v1490 = vsel %vm1150, %v1388, %v1489
  %v1491 = vsel %vm1153, %v1390, %v1490
  %v1492 = vsel %vm1135, %v1394, %v1392
  %v1493 = vsel %vm1147, %v1134, %v1086
  %v1494 = vsel %vm1150, %v1137, %v1493
  %v1495 = vsel %vm1153, %v1140, %v1494
  %v1496 = vsel %vm1147, %v1155, %v1094
  %v1497 = vsel %vm1150, %v1157, %v1496
  %v1498 = vsel %vm1153, %v1159, %v1497
  %v1499 = vsel %vm1135, %v1146, %v1143
  %v1500 = vsel %vm1138, %v1149, %v1499
  %v1501 = vsel %vm1141, %v1152, %v1500
  %v1502 = vsel %vm1135, %v1163, %v1161
  %v1503 = vsel %vm1138, %v1165, %v1502
  %v1504 = vsel %vm1141, %v1167, %v1503
  %v1505 = vsel %vm1147, %v1087, %v1171
  %v1506 = vsel %vm1150, %v1173, %v1505
  %v1507 = vsel %vm1153, %v1175, %v1506
  %v1508 = vsel %vm1147, %v1095, %v1185
  %v1509 = vsel %vm1150, %v1187, %v1508
  %v1510 = vsel %vm1153, %v1189, %v1509
  %v1511 = vsel %vm1135, %v1179, %v1177
  %v1512 = vsel %vm1138, %v1181, %v1511
  %v1513 = vsel %vm1141, %v1183, %v1512
  %v1514 = vsel %vm1135, %v1193, %v1191
  %v1515 = vsel %vm1138, %v1195, %v1514
  %v1516 = vsel %vm1141, %v1197, %v1515
  %v1517 = vsel %vm1147, %v1202, %v1201
  %v1518 = vsel %vm1150, %v1088, %v1517
  %v1519 = vsel %vm1153, %v1205, %v1518
  %v1520 = vsel %vm1147, %v1216, %v1215
  %v1521 = vsel %vm1150, %v1096, %v1520
  %v1522 = vsel %vm1153, %v1219, %v1521
  %v1523 = vsel %vm1135, %v1209, %v1207
  %v1524 = vsel %vm1138, %v1211, %v1523
  %v1525 = vsel %vm1141, %v1213, %v1524
  %v1526 = vsel %vm1135, %v1223, %v1221
  %v1527 = vsel %vm1138, %v1225, %v1526
  %v1528 = vsel %vm1141, %v1227, %v1527
  %v1529 = vsel %vm1147, %v1232, %v1231
  %v1530 = vsel %vm1150, %v1234, %v1529
  %v1531 = vsel %vm1153, %v1089, %v1530
  %v1532 = vsel %vm1147, %v1246, %v1245
  %v1533 = vsel %vm1150, %v1248, %v1532
  %v1534 = vsel %vm1153, %v1097, %v1533
  %v1535 = vsel %vm1135, %v1239, %v1237
  %v1536 = vsel %vm1138, %v1241, %v1535
  %v1537 = vsel %vm1141, %v1243, %v1536
  %v1538 = vsel %vm1135, %v1253, %v1251
  %v1539 = vsel %vm1138, %v1255, %v1538
  %v1540 = vsel %vm1141, %v1257, %v1539
  %v1541 = vsel %vm1147, %v1269, %v1102
  %v1542 = vsel %vm1150, %v1271, %v1541
  %v1543 = vsel %vm1153, %v1273, %v1542
  %v1544 = vsel %vm1135, %v1277, %v1275
  %v1545 = vsel %vm1138, %v1279, %v1544
  %v1546 = vsel %vm1141, %v1281, %v1545
  %v1547 = vsel %vm1147, %v1103, %v1284
  %v1548 = vsel %vm1150, %v1286, %v1547
  %v1549 = vsel %vm1153, %v1288, %v1548
  %v1550 = vsel %vm1135, %v1292, %v1290
  %v1551 = vsel %vm1138, %v1294, %v1550
  %v1552 = vsel %vm1141, %v1296, %v1551
  %v1553 = vsel %vm1147, %v1300, %v1299
  %v1554 = vsel %vm1150, %v1104, %v1553
  %v1555 = vsel %vm1153, %v1303, %v1554
  %v1556 = vsel %vm1135, %v1307, %v1305
  %v1557 = vsel %vm1138, %v1309, %v1556
  %v1558 = vsel %vm1141, %v1311, %v1557
  %v1559 = vsel %vm1147, %v1315, %v1314
  %v1560 = vsel %vm1150, %v1317, %v1559
  %v1561 = vsel %vm1153, %v1105, %v1560
  %v1562 = vsel %vm1135, %v1322, %v1320
  %v1563 = vsel %vm1138, %v1324, %v1562
  %v1564 = vsel %vm1141, %v1326, %v1563
  %v1565 = vsel %vm1147, %v1337, %v1110
  %v1566 = vsel %vm1150, %v1339, %v1565
  %v1567 = vsel %vm1153, %v1341, %v1566
  %v1568 = vsel %vm1135, %v1345, %v1343
  %v1569 = vsel %vm1138, %v1347, %v1568
  %v1570 = vsel %vm1141, %v1349, %v1569
  %v1571 = vsel %vm1147, %v1111, %v1352
  %v1572 = vsel %vm1150, %v1354, %v1571
  %v1573 = vsel %vm1153, %v1356, %v1572
  %v1574 = vsel %vm1135, %v1360, %v1358
  %v1575 = vsel %vm1138, %v1362, %v1574
  %v1576 = vsel %vm1141, %v1364, %v1575
  %v1577 = vsel %vm1147, %v1368, %v1367
  %v1578 = vsel %vm1150, %v1112, %v1577
  %v1579 = vsel %vm1153, %v1371, %v1578
  %v1580 = vsel %vm1135, %v1375, %v1373
  %v1581 = vsel %vm1138, %v1377, %v1580
  %v1582 = vsel %vm1141, %v1379, %v1581
  %v1583 = vsel %vm1147, %v1383, %v1382
  %v1584 = vsel %vm1150, %v1385, %v1583
  %v1585 = vsel %vm1153, %v1113, %v1584
  %v1586 = vsel %vm1135, %v1390, %v1388
  %v1587 = vsel %vm1138, %v1392, %v1586
  %v1588 = vsel %vm1141, %v1394, %v1587
  %vm1589 = vcmask 1045504
  %v1590 = vrot.slane %v1401, 2
  %v1591 = vrot.slane %v1407, 2
  %v1592 = vsel %vm1589, %v1590, %v1591
  %v1593 = vrot.slane %v1406, 2
  %v1594 = vrot.slane %v1408, 2
  %v1595 = vsel %vm1589, %v1593, %v1594
  %v1596 = vrot.slane %v1413, 2
  %v1597 = vrot.slane %v1419, 2
  %v1598 = vsel %vm1589, %v1596, %v1597
  %v1599 = vrot.slane %v1418, 2
  %v1600 = vrot.slane %v1420, 2
  %v1601 = vsel %vm1589, %v1599, %v1600
  %v1602 = vrot.slane %v1425, 2
  %v1603 = vrot.slane %v1431, 2
  %v1604 = vsel %vm1589, %v1602, %v1603
  %v1605 = vrot.slane %v1430, 2
  %v1606 = vrot.slane %v1432, 2
  %v1607 = vsel %vm1589, %v1605, %v1606
  %v1608 = vrot.slane %v1437, 2
  %v1609 = vrot.slane %v1443, 2
  %v1610 = vsel %vm1589, %v1608, %v1609
  %v1611 = vrot.slane %v1442, 2
  %v1612 = vrot.slane %v1444, 2
  %v1613 = vsel %vm1589, %v1611, %v1612
  %v1622 = vrot.slane %v1449, 2
  %v1623 = vrot.slane %v1450, 2
  %v1624 = vsel %vm1589, %v1622, %v1623
  %v1625 = vrot.slane %v1455, 2
  %v1626 = vrot.slane %v1456, 2
  %v1627 = vsel %vm1589, %v1625, %v1626
  %v1628 = vrot.slane %v1461, 2
  %v1629 = vrot.slane %v1462, 2
  %v1630 = vsel %vm1589, %v1628, %v1629
  %v1631 = vrot.slane %v1467, 2
  %v1632 = vrot.slane %v1468, 2
  %v1633 = vsel %vm1589, %v1631, %v1632
  %v1638 = vrot.slane %v1473, 2
  %v1639 = vrot.slane %v1474, 2
  %v1640 = vsel %vm1589, %v1638, %v1639
  %v1641 = vrot.slane %v1479, 2
  %v1642 = vrot.slane %v1480, 2
  %v1643 = vsel %vm1589, %v1641, %v1642
  %v1644 = vrot.slane %v1485, 2
  %v1645 = vrot.slane %v1486, 2
  %v1646 = vsel %vm1589, %v1644, %v1645
  %v1647 = vrot.slane %v1491, 2
  %v1648 = vrot.slane %v1492, 2
  %v1649 = vsel %vm1589, %v1647, %v1648
  %vm1654 = vcmask 1043456
  %v1655 = vrot.slane %v1495, 4
  %v1656 = vrot.slane %v1501, 4
  %v1657 = vsel %vm1654, %v1655, %v1656
  %v1658 = vrot.slane %v1498, 4
  %v1659 = vrot.slane %v1504, 4
  %v1660 = vsel %vm1654, %v1658, %v1659
  %v1661 = vrot.slane %v1507, 4
  %v1662 = vrot.slane %v1513, 4
  %v1663 = vsel %vm1654, %v1661, %v1662
  %v1664 = vrot.slane %v1510, 4
  %v1665 = vrot.slane %v1516, 4
  %v1666 = vsel %vm1654, %v1664, %v1665
  %v1667 = vrot.slane %v1519, 4
  %v1668 = vrot.slane %v1525, 4
  %v1669 = vsel %vm1654, %v1667, %v1668
  %v1670 = vrot.slane %v1522, 4
  %v1671 = vrot.slane %v1528, 4
  %v1672 = vsel %vm1654, %v1670, %v1671
  %v1673 = vrot.slane %v1531, 4
  %v1674 = vrot.slane %v1537, 4
  %v1675 = vsel %vm1654, %v1673, %v1674
  %v1676 = vrot.slane %v1534, 4
  %v1677 = vrot.slane %v1540, 4
  %v1678 = vsel %vm1654, %v1676, %v1677
  %v1687 = vrot.slane %v1543, 4
  %v1688 = vrot.slane %v1546, 4
  %v1689 = vsel %vm1654, %v1687, %v1688
  %v1690 = vrot.slane %v1549, 4
  %v1691 = vrot.slane %v1552, 4
  %v1692 = vsel %vm1654, %v1690, %v1691
  %v1693 = vrot.slane %v1555, 4
  %v1694 = vrot.slane %v1558, 4
  %v1695 = vsel %vm1654, %v1693, %v1694
  %v1696 = vrot.slane %v1561, 4
  %v1697 = vrot.slane %v1564, 4
  %v1698 = vsel %vm1654, %v1696, %v1697
  %v1703 = vrot.slane %v1567, 4
  %v1704 = vrot.slane %v1570, 4
  %v1705 = vsel %vm1654, %v1703, %v1704
  %v1706 = vrot.slane %v1573, 4
  %v1707 = vrot.slane %v1576, 4
  %v1708 = vsel %vm1654, %v1706, %v1707
  %v1709 = vrot.slane %v1579, 4
  %v1710 = vrot.slane %v1582, 4
  %v1711 = vsel %vm1654, %v1709, %v1710
  %v1712 = vrot.slane %v1585, 4
  %v1713 = vrot.slane %v1588, 4
  %v1714 = vsel %vm1654, %v1712, %v1713
  %v1719 = vpack.c.bf16 %v1168, %v1154
  %v1720 = vpack.c.bf16 %v1282, %v1168
  %v1721 = vpack.c.bf16 %v1198, %v1184
  %v1722 = vpack.c.bf16 %v1297, %v1198
  %v1723 = vpack.c.bf16 %v1228, %v1214
  %v1724 = vpack.c.bf16 %v1312, %v1228
  %v1725 = vpack.c.bf16 %v1258, %v1244
  %v1726 = vpack.c.bf16 %v1327, %v1258
  %v1727 = vpack.c.bf16 %v1592, %v1282
  %v1728 = vpack.c.bf16 %v1595, %v1350
  %v1729 = vpack.c.bf16 %v1598, %v1297
  %v1730 = vpack.c.bf16 %v1601, %v1365
  %v1731 = vpack.c.bf16 %v1604, %v1312
  %v1732 = vpack.c.bf16 %v1607, %v1380
  %v1733 = vpack.c.bf16 %v1610, %v1327
  %v1734 = vpack.c.bf16 %v1613, %v1395
  %v1735 = vpack.c.bf16 %v1624, %v1595
  %v1736 = vpack.c.bf16 %v1640, %v1624
  %v1737 = vpack.c.bf16 %v1627, %v1601
  %v1738 = vpack.c.bf16 %v1643, %v1627
  %v1739 = vpack.c.bf16 %v1630, %v1607
  %v1740 = vpack.c.bf16 %v1646, %v1630
  %v1741 = vpack.c.bf16 %v1633, %v1613
  %v1742 = vpack.c.bf16 %v1649, %v1633
  %v1743 = vpack.c.bf16 %v1660, %v1657
  %v1744 = vpack.c.bf16 %v1689, %v1660
  %v1745 = vpack.c.bf16 %v1666, %v1663
  %v1746 = vpack.c.bf16 %v1692, %v1666
  %v1747 = vpack.c.bf16 %v1672, %v1669
  %v1748 = vpack.c.bf16 %v1695, %v1672
  %v1749 = vpack.c.bf16 %v1678, %v1675
  %v1750 = vpack.c.bf16 %v1698, %v1678
  %v1751 = vpack.c.bf16 %v1689, %v1689
  %v1752 = vpack.c.bf16 %v1705, %v1705
  %v1753 = vpack.c.bf16 %v1692, %v1692
  %v1754 = vpack.c.bf16 %v1708, %v1708
  %v1755 = vpack.c.bf16 %v1695, %v1695
  %v1756 = vpack.c.bf16 %v1711, %v1711
  %v1757 = vpack.c.bf16 %v1698, %v1698
  %v1758 = vpack.c.bf16 %v1714, %v1714
  %v1759 = vld [vmem:[%s3] sm:$0xf]
  %v1760 = vld [vmem:[%s3 + $0x4] sm:$0xf]
  %v1761 = vld [vmem:[%s3 + $0x8] sm:$0xf]
  %v1762 = vld [vmem:[%s3 + $0xc] sm:$0xf]
  %v1763 = vld [vmem:[%s3 + $0x10] sm:$0xf]
  %v1764 = vld [vmem:[%s3 + $0x14] sm:$0xf]
  %v1765 = vld [vmem:[%s3 + $0x18] sm:$0xf]
  %v1766 = vld [vmem:[%s3 + $0x1c] sm:$0xf]
  %v1767 = vld [vmem:[%s3 + $0x20] sm:$0xf]
  %v1768 = vld [vmem:[%s3 + $0x24] sm:$0xf]
  %v1769 = vld [vmem:[%s3 + $0x28] sm:$0xf]
  %v1770 = vld [vmem:[%s3 + $0x2c] sm:$0xf]
  %v1771 = vld [vmem:[%s3 + $0x30] sm:$0xf]
  %v1772 = vld [vmem:[%s3 + $0x34] sm:$0xf]
  %v1773 = vld [vmem:[%s3 + $0x38] sm:$0xf]
  %v1774 = vld [vmem:[%s3 + $0x3c] sm:$0xf]
  %v1775 = vld [vmem:[%s3 + $0x40] sm:$0xf]
  %v1776 = vld [vmem:[%s3 + $0x44] sm:$0xf]
  %v1777 = vld [vmem:[%s3 + $0x48] sm:$0xf]
  %v1778 = vld [vmem:[%s3 + $0x4c] sm:$0xf]
  %v1779 = vld [vmem:[%s3 + $0x50] sm:$0xf]
  %v1780 = vld [vmem:[%s3 + $0x54] sm:$0xf]
  %v1781 = vld [vmem:[%s3 + $0x58] sm:$0xf]
  %v1782 = vld [vmem:[%s3 + $0x5c] sm:$0xf]
  %v1783 = vld [vmem:[%s3 + $0x60] sm:$0xf]
  %v1784 = vld [vmem:[%s3 + $0x64] sm:$0xf]
  %v1785 = vld [vmem:[%s3 + $0x68] sm:$0xf]
  %v1786 = vld [vmem:[%s3 + $0x6c] sm:$0xf]
  %v1787 = vld [vmem:[%s3 + $0x70] sm:$0xf]
  %v1788 = vld [vmem:[%s3 + $0x74] sm:$0xf]
  %v1789 = vld [vmem:[%s3 + $0x78] sm:$0xf]
  %v1790 = vld [vmem:[%s3 + $0x7c] sm:$0xf]
  %v1791 = vld [vmem:[%s3 + $0x80] sm:$0xf]
  %v1792 = vld [vmem:[%s3 + $0x84] sm:$0xf]
  %v1793 = vld [vmem:[%s3 + $0x88] sm:$0xf]
  %v1794 = vld [vmem:[%s3 + $0x8c] sm:$0xf]
  %v1795 = vld [vmem:[%s3 + $0x90] sm:$0xf]
  %v1796 = vld [vmem:[%s3 + $0x94] sm:$0xf]
  %v1797 = vld [vmem:[%s3 + $0x98] sm:$0xf]
  %v1798 = vld [vmem:[%s3 + $0x9c] sm:$0xf]
  %v1799 = vld [vmem:[%s3 + $0xa0] sm:$0xf]
  %v1800 = vld [vmem:[%s3 + $0xa4] sm:$0xf]
  %v1801 = vld [vmem:[%s3 + $0xa8] sm:$0xf]
  %v1802 = vld [vmem:[%s3 + $0xac] sm:$0xf]
  %v1803 = vld [vmem:[%s3 + $0xb0] sm:$0xf]
  %v1804 = vld [vmem:[%s3 + $0xb4] sm:$0xf]
  %v1805 = vld [vmem:[%s3 + $0xb8] sm:$0xf]
  %v1806 = vld [vmem:[%s3 + $0xbc] sm:$0xf]
  %v1807 = vld [vmem:[%s3 + $0xc0] sm:$0xf]
  %v1808 = vld [vmem:[%s3 + $0xc4] sm:$0xf]
  %v1809 = vld [vmem:[%s3 + $0xc8] sm:$0xf]
  %v1810 = vld [vmem:[%s3 + $0xcc] sm:$0xf]
  %v1811 = vld [vmem:[%s3 + $0xd0] sm:$0xf]
  %v1812 = vld [vmem:[%s3 + $0xd4] sm:$0xf]
  %v1813 = vld [vmem:[%s3 + $0xd8] sm:$0xf]
  %v1814 = vld [vmem:[%s3 + $0xdc] sm:$0xf]
  %v1815 = vld [vmem:[%s3 + $0xe0] sm:$0xf]
  %v1816 = vld [vmem:[%s3 + $0xe4] sm:$0xf]
  %v1817 = vld [vmem:[%s3 + $0xe8] sm:$0xf]
  %v1818 = vld [vmem:[%s3 + $0xec] sm:$0xf]
  %v1819 = vld [vmem:[%s3 + $0xf0] sm:$0xf]
  %v1820 = vld [vmem:[%s3 + $0xf4] sm:$0xf]
  %v1821 = vld [vmem:[%s3 + $0xf8] sm:$0xf]
  %v1822 = vld [vmem:[%s3 + $0xfc] sm:$0xf]
  %v1823 = vld [vmem:[%s3 + $0x100] sm:$0xf]
  %v1824 = vld [vmem:[%s3 + $0x104] sm:$0xf]
  %v1825 = vld [vmem:[%s3 + $0x108] sm:$0xf]
  %v1826 = vld [vmem:[%s3 + $0x10c] sm:$0xf]
  %v1827 = vld [vmem:[%s3 + $0x110] sm:$0xf]
  %v1828 = vld [vmem:[%s3 + $0x114] sm:$0xf]
  %v1829 = vld [vmem:[%s3 + $0x118] sm:$0xf]
  %v1830 = vld [vmem:[%s3 + $0x11c] sm:$0xf]
  %v1831 = vld [vmem:[%s3 + $0x120] sm:$0xf]
  %v1832 = vld [vmem:[%s3 + $0x124] sm:$0xf]
  %v1833 = vld [vmem:[%s3 + $0x128] sm:$0xf]
  %v1834 = vld [vmem:[%s3 + $0x12c] sm:$0xf]
  %v1835 = vld [vmem:[%s3 + $0x130] sm:$0xf]
  %v1836 = vld [vmem:[%s3 + $0x134] sm:$0xf]
  %v1837 = vld [vmem:[%s3 + $0x138] sm:$0xf]
  %v1838 = vld [vmem:[%s3 + $0x13c] sm:$0xf]
  %v1839 = vld [vmem:[%s3 + $0x140] sm:$0xf]
  %v1840 = vld [vmem:[%s3 + $0x144] sm:$0xf]
  %v1841 = vld [vmem:[%s3 + $0x148] sm:$0xf]
  %v1842 = vld [vmem:[%s3 + $0x14c] sm:$0xf]
  %v1843 = vld [vmem:[%s3 + $0x150] sm:$0xf]
  %v1844 = vld [vmem:[%s3 + $0x154] sm:$0xf]
  %v1845 = vld [vmem:[%s3 + $0x158] sm:$0xf]
  %v1846 = vld [vmem:[%s3 + $0x15c] sm:$0xf]
  %v1847 = vld [vmem:[%s3 + $0x160] sm:$0xf]
  %v1848 = vld [vmem:[%s3 + $0x164] sm:$0xf]
  %v1849 = vld [vmem:[%s3 + $0x168] sm:$0xf]
  %v1850 = vld [vmem:[%s3 + $0x16c] sm:$0xf]
  %v1851 = vld [vmem:[%s3 + $0x170] sm:$0xf]
  %v1852 = vld [vmem:[%s3 + $0x174] sm:$0xf]
  %v1853 = vld [vmem:[%s3 + $0x178] sm:$0xf]
  %v1854 = vld [vmem:[%s3 + $0x17c] sm:$0xf]
  %v1855 = vld [vmem:[%s3 + $0x180] sm:$0xf]
  %v1856 = vld [vmem:[%s3 + $0x184] sm:$0xf]
  %v1857 = vld [vmem:[%s3 + $0x188] sm:$0xf]
  %v1858 = vld [vmem:[%s3 + $0x18c] sm:$0xf]
  %v1859 = vld [vmem:[%s3 + $0x190] sm:$0xf]
  %v1860 = vld [vmem:[%s3 + $0x194] sm:$0xf]
  %v1861 = vld [vmem:[%s3 + $0x198] sm:$0xf]
  %v1862 = vld [vmem:[%s3 + $0x19c] sm:$0xf]
  %v1863 = vld [vmem:[%s3 + $0x1a0] sm:$0xf]
  %v1864 = vld [vmem:[%s3 + $0x1a4] sm:$0xf]
  %v1865 = vld [vmem:[%s3 + $0x1a8] sm:$0xf]
  %v1866 = vld [vmem:[%s3 + $0x1ac] sm:$0xf]
  %v1867 = vld [vmem:[%s3 + $0x1b0] sm:$0xf]
  %v1868 = vld [vmem:[%s3 + $0x1b4] sm:$0xf]
  %v1869 = vld [vmem:[%s3 + $0x1b8] sm:$0xf]
  %v1870 = vld [vmem:[%s3 + $0x1bc] sm:$0xf]
  %v1871 = vld [vmem:[%s3 + $0x1c0] sm:$0xf]
  %v1872 = vld [vmem:[%s3 + $0x1c4] sm:$0xf]
  %v1873 = vld [vmem:[%s3 + $0x1c8] sm:$0xf]
  %v1874 = vld [vmem:[%s3 + $0x1cc] sm:$0xf]
  %v1875 = vld [vmem:[%s3 + $0x1d0] sm:$0xf]
  %v1876 = vld [vmem:[%s3 + $0x1d4] sm:$0xf]
  %v1877 = vld [vmem:[%s3 + $0x1d8] sm:$0xf]
  %v1878 = vld [vmem:[%s3 + $0x1dc] sm:$0xf]
  %v1879 = vld [vmem:[%s3 + $0x1e0] sm:$0xf]
  %v1880 = vld [vmem:[%s3 + $0x1e4] sm:$0xf]
  %v1881 = vld [vmem:[%s3 + $0x1e8] sm:$0xf]
  %v1882 = vld [vmem:[%s3 + $0x1ec] sm:$0xf]
  %v1883 = vld [vmem:[%s3 + $0x1f0] sm:$0xf]
  %v1884 = vld [vmem:[%s3 + $0x1f4] sm:$0xf]
  %v1885 = vld [vmem:[%s3 + $0x1f8] sm:$0xf]
  %v1886 = vld [vmem:[%s3 + $0x1fc] sm:$0xf]
  %v1887 = vld [vmem:[%s4] sm:$0x1]
  %v1889 = vperm.slane %v1887, 0
  %v2019 = vunpack.c.l.b16 %v1759
  %v2020 = vunpack.c.l.b16 %v1760
  %v2021 = vunpack.c.l.b16 %v1761
  %v2022 = vunpack.c.l.b16 %v1762
  %v2023 = vunpack.c.l.b16 %v1763
  %v2024 = vunpack.c.l.b16 %v1764
  %v2025 = vunpack.c.l.b16 %v1765
  %v2026 = vunpack.c.l.b16 %v1766
  %v2027 = vunpack.c.l.b16 %v1767
  %v2028 = vunpack.c.l.b16 %v1768
  %v2029 = vunpack.c.l.b16 %v1769
  %v2030 = vunpack.c.l.b16 %v1770
  %v2031 = vunpack.c.l.b16 %v1771
  %v2032 = vunpack.c.l.b16 %v1772
  %v2033 = vunpack.c.l.b16 %v1773
  %v2034 = vunpack.c.l.b16 %v1774
  %v2035 = vunpack.c.l.b16 %v1775
  %v2036 = vunpack.c.l.b16 %v1776
  %v2037 = vunpack.c.l.b16 %v1777
  %v2038 = vunpack.c.l.b16 %v1778
  %v2039 = vunpack.c.l.b16 %v1779
  %v2040 = vunpack.c.l.b16 %v1780
  %v2041 = vunpack.c.l.b16 %v1781
  %v2042 = vunpack.c.l.b16 %v1782
  %v2043 = vunpack.c.l.b16 %v1783
  %v2044 = vunpack.c.l.b16 %v1784
  %v2045 = vunpack.c.l.b16 %v1785
  %v2046 = vunpack.c.l.b16 %v1786
  %v2047 = vunpack.c.l.b16 %v1787
  %v2048 = vunpack.c.l.b16 %v1788
  %v2049 = vunpack.c.l.b16 %v1789
  %v2050 = vunpack.c.l.b16 %v1790
  %v2051 = vunpack.c.l.b16 %v1791
  %v2052 = vunpack.c.l.b16 %v1792
  %v2053 = vunpack.c.l.b16 %v1793
  %v2054 = vunpack.c.l.b16 %v1794
  %v2055 = vunpack.c.l.b16 %v1795
  %v2056 = vunpack.c.l.b16 %v1796
  %v2057 = vunpack.c.l.b16 %v1797
  %v2058 = vunpack.c.l.b16 %v1798
  %v2059 = vunpack.c.l.b16 %v1799
  %v2060 = vunpack.c.l.b16 %v1800
  %v2061 = vunpack.c.l.b16 %v1801
  %v2062 = vunpack.c.l.b16 %v1802
  %v2063 = vunpack.c.l.b16 %v1803
  %v2064 = vunpack.c.l.b16 %v1804
  %v2065 = vunpack.c.l.b16 %v1805
  %v2066 = vunpack.c.l.b16 %v1806
  %v2067 = vunpack.c.l.b16 %v1807
  %v2068 = vunpack.c.l.b16 %v1808
  %v2069 = vunpack.c.l.b16 %v1809
  %v2070 = vunpack.c.l.b16 %v1810
  %v2071 = vunpack.c.l.b16 %v1811
  %v2072 = vunpack.c.l.b16 %v1812
  %v2073 = vunpack.c.l.b16 %v1813
  %v2074 = vunpack.c.l.b16 %v1814
  %v2075 = vunpack.c.l.b16 %v1815
  %v2076 = vunpack.c.l.b16 %v1816
  %v2077 = vunpack.c.l.b16 %v1817
  %v2078 = vunpack.c.l.b16 %v1818
  %v2079 = vunpack.c.l.b16 %v1819
  %v2080 = vunpack.c.l.b16 %v1820
  %v2081 = vunpack.c.l.b16 %v1821
  %v2082 = vunpack.c.l.b16 %v1822
  %v2083 = vunpack.c.l.b16 %v1823
  %v2084 = vunpack.c.l.b16 %v1824
  %v2085 = vunpack.c.l.b16 %v1825
  %v2086 = vunpack.c.l.b16 %v1826
  %v2087 = vunpack.c.l.b16 %v1827
  %v2088 = vunpack.c.l.b16 %v1828
  %v2089 = vunpack.c.l.b16 %v1829
  %v2090 = vunpack.c.l.b16 %v1830
  %v2091 = vunpack.c.l.b16 %v1831
  %v2092 = vunpack.c.l.b16 %v1832
  %v2093 = vunpack.c.l.b16 %v1833
  %v2094 = vunpack.c.l.b16 %v1834
  %v2095 = vunpack.c.l.b16 %v1835
  %v2096 = vunpack.c.l.b16 %v1836
  %v2097 = vunpack.c.l.b16 %v1837
  %v2098 = vunpack.c.l.b16 %v1838
  %v2099 = vunpack.c.l.b16 %v1839
  %v2100 = vunpack.c.l.b16 %v1840
  %v2101 = vunpack.c.l.b16 %v1841
  %v2102 = vunpack.c.l.b16 %v1842
  %v2103 = vunpack.c.l.b16 %v1843
  %v2104 = vunpack.c.l.b16 %v1844
  %v2105 = vunpack.c.l.b16 %v1845
  %v2106 = vunpack.c.l.b16 %v1846
  %v2107 = vunpack.c.l.b16 %v1847
  %v2108 = vunpack.c.l.b16 %v1848
  %v2109 = vunpack.c.l.b16 %v1849
  %v2110 = vunpack.c.l.b16 %v1850
  %v2111 = vunpack.c.l.b16 %v1851
  %v2112 = vunpack.c.l.b16 %v1852
  %v2113 = vunpack.c.l.b16 %v1853
  %v2114 = vunpack.c.l.b16 %v1854
  %v2115 = vunpack.c.l.b16 %v1855
  %v2116 = vunpack.c.l.b16 %v1856
  %v2117 = vunpack.c.l.b16 %v1857
  %v2118 = vunpack.c.l.b16 %v1858
  %v2119 = vunpack.c.l.b16 %v1859
  %v2120 = vunpack.c.l.b16 %v1860
  %v2121 = vunpack.c.l.b16 %v1861
  %v2122 = vunpack.c.l.b16 %v1862
  %v2123 = vunpack.c.l.b16 %v1863
  %v2124 = vunpack.c.l.b16 %v1864
  %v2125 = vunpack.c.l.b16 %v1865
  %v2126 = vunpack.c.l.b16 %v1866
  %v2127 = vunpack.c.l.b16 %v1867
  %v2128 = vunpack.c.l.b16 %v1868
  %v2129 = vunpack.c.l.b16 %v1869
  %v2130 = vunpack.c.l.b16 %v1870
  %v2131 = vunpack.c.l.b16 %v1871
  %v2132 = vunpack.c.l.b16 %v1872
  %v2133 = vunpack.c.l.b16 %v1873
  %v2134 = vunpack.c.l.b16 %v1874
  %v2135 = vunpack.c.l.b16 %v1875
  %v2136 = vunpack.c.l.b16 %v1876
  %v2137 = vunpack.c.l.b16 %v1877
  %v2138 = vunpack.c.l.b16 %v1878
  %v2139 = vunpack.c.l.b16 %v1879
  %v2140 = vunpack.c.l.b16 %v1880
  %v2141 = vunpack.c.l.b16 %v1881
  %v2142 = vunpack.c.l.b16 %v1882
  %v2143 = vunpack.c.l.b16 %v1883
  %v2144 = vunpack.c.l.b16 %v1884
  %v2145 = vunpack.c.l.b16 %v1885
  %v2146 = vunpack.c.l.b16 %v1886
  %v2147 = vpack.c.b16 %v2020, %v2019
  %v2148 = vpack.c.b16 %v2022, %v2021
  %v2149 = vpack.c.b16 %v2024, %v2023
  %v2150 = vpack.c.b16 %v2026, %v2025
  %v2151 = vpack.c.b16 %v2028, %v2027
  %v2152 = vpack.c.b16 %v2030, %v2029
  %v2153 = vpack.c.b16 %v2032, %v2031
  %v2154 = vpack.c.b16 %v2034, %v2033
  %v2155 = vpack.c.b16 %v2036, %v2035
  %v2156 = vpack.c.b16 %v2038, %v2037
  %v2157 = vpack.c.b16 %v2040, %v2039
  %v2158 = vpack.c.b16 %v2042, %v2041
  %v2159 = vpack.c.b16 %v2044, %v2043
  %v2160 = vpack.c.b16 %v2046, %v2045
  %v2161 = vpack.c.b16 %v2048, %v2047
  %v2162 = vpack.c.b16 %v2050, %v2049
  %v2163 = vpack.c.b16 %v2052, %v2051
  %v2164 = vpack.c.b16 %v2054, %v2053
  %v2165 = vpack.c.b16 %v2056, %v2055
  %v2166 = vpack.c.b16 %v2058, %v2057
  %v2167 = vpack.c.b16 %v2060, %v2059
  %v2168 = vpack.c.b16 %v2062, %v2061
  %v2169 = vpack.c.b16 %v2064, %v2063
  %v2170 = vpack.c.b16 %v2066, %v2065
  %v2171 = vpack.c.b16 %v2068, %v2067
  %v2172 = vpack.c.b16 %v2070, %v2069
  %v2173 = vpack.c.b16 %v2072, %v2071
  %v2174 = vpack.c.b16 %v2074, %v2073
  %v2175 = vpack.c.b16 %v2076, %v2075
  %v2176 = vpack.c.b16 %v2078, %v2077
  %v2177 = vpack.c.b16 %v2080, %v2079
  %v2178 = vpack.c.b16 %v2082, %v2081
  %v2179 = vpack.c.b16 %v2084, %v2083
  %v2180 = vpack.c.b16 %v2086, %v2085
  %v2181 = vpack.c.b16 %v2088, %v2087
  %v2182 = vpack.c.b16 %v2090, %v2089
  %v2183 = vpack.c.b16 %v2092, %v2091
  %v2184 = vpack.c.b16 %v2094, %v2093
  %v2185 = vpack.c.b16 %v2096, %v2095
  %v2186 = vpack.c.b16 %v2098, %v2097
  %v2187 = vpack.c.b16 %v2100, %v2099
  %v2188 = vpack.c.b16 %v2102, %v2101
  %v2189 = vpack.c.b16 %v2104, %v2103
  %v2190 = vpack.c.b16 %v2106, %v2105
  %v2191 = vpack.c.b16 %v2108, %v2107
  %v2192 = vpack.c.b16 %v2110, %v2109
  %v2193 = vpack.c.b16 %v2112, %v2111
  %v2194 = vpack.c.b16 %v2114, %v2113
  %v2195 = vpack.c.b16 %v2116, %v2115
  %v2196 = vpack.c.b16 %v2118, %v2117
  %v2197 = vpack.c.b16 %v2120, %v2119
  %v2198 = vpack.c.b16 %v2122, %v2121
  %v2199 = vpack.c.b16 %v2124, %v2123
  %v2200 = vpack.c.b16 %v2126, %v2125
  %v2201 = vpack.c.b16 %v2128, %v2127
  %v2202 = vpack.c.b16 %v2130, %v2129
  %v2203 = vpack.c.b16 %v2132, %v2131
  %v2204 = vpack.c.b16 %v2134, %v2133
  %v2205 = vpack.c.b16 %v2136, %v2135
  %v2206 = vpack.c.b16 %v2138, %v2137
  %v2207 = vpack.c.b16 %v2140, %v2139
  %v2208 = vpack.c.b16 %v2142, %v2141
  %v2209 = vpack.c.b16 %v2144, %v2143
  %v2210 = vpack.c.b16 %v2146, %v2145
  %2275 = vmatpush.bf16.msra.mxu0 %v2154
  %2276 = vmatpush.bf16.msra.mxu0 %v2153
  %2277 = vmatpush.bf16.msra.mxu0 %v2152
  %2278 = vmatpush.bf16.msra.mxu0 %v2151
  %2279 = vmatpush.bf16.msra.mxu0 %v2150
  %2280 = vmatpush.bf16.msra.mxu0 %v2149
  %2281 = vmatpush.bf16.msra.mxu0 %v2148
  %2282 = vmatpush.bf16.msra.mxu0 %v2147
  %2283 = vmatmul.bf16.gmra.mxu0 %v1719
  %v2284 = vpop.f32.mrf.mxu0
  %v2285 = vadd.f32 %v1889, %v2284
  %v2286 = vpop.f32.mrf.mxu0
  %v2287 = vadd.f32 %v1889, %v2286
  %2288 = vmatmul.bf16.gmra.mxu0 %v1727
  %v2289 = vpop.f32.mrf.mxu0
  %v2290 = vadd.f32 %v1889, %v2289
  %v2291 = vpop.f32.mrf.mxu0
  %v2292 = vadd.f32 %v1889, %v2291
  %2293 = vmatmul.bf16.gmra.mxu0 %v1735
  %v2294 = vpop.f32.mrf.mxu0
  %v2295 = vadd.f32 %v1889, %v2294
  %v2296 = vpop.f32.mrf.mxu0
  %v2297 = vadd.f32 %v1889, %v2296
  %2298 = vmatmul.bf16.gmra.mxu0 %v1743
  %v2299 = vpop.f32.mrf.mxu0
  %v2300 = vadd.f32 %v1889, %v2299
  %v2301 = vpop.f32.mrf.mxu0
  %v2302 = vadd.f32 %v1889, %v2301
  %2303 = vmatmul.bf16.gmra.mxu0 %v1751
  %v2304 = vpop.f32.mrf.mxu0
  %v2305 = vadd.f32 %v1889, %v2304
  %v2306 = vpop.f32.mrf.mxu0
  %2307 = vdwg.mxu0
  %2308 = vmatpush.bf16.msra.mxu0 %v2162
  %2309 = vmatpush.bf16.msra.mxu0 %v2161
  %2310 = vmatpush.bf16.msra.mxu0 %v2160
  %2311 = vmatpush.bf16.msra.mxu0 %v2159
  %2312 = vmatpush.bf16.msra.mxu0 %v2158
  %2313 = vmatpush.bf16.msra.mxu0 %v2157
  %2314 = vmatpush.bf16.msra.mxu0 %v2156
  %2315 = vmatpush.bf16.msra.mxu0 %v2155
  %2316 = vmatmul.bf16.gmra.mxu0 %v1720
  %v2317 = vpop.f32.mrf.mxu0
  %v2318 = vadd.f32 %v2285, %v2317
  %v2319 = vpop.f32.mrf.mxu0
  %v2320 = vadd.f32 %v2287, %v2319
  %2321 = vmatmul.bf16.gmra.mxu0 %v1728
  %v2322 = vpop.f32.mrf.mxu0
  %v2323 = vadd.f32 %v2290, %v2322
  %v2324 = vpop.f32.mrf.mxu0
  %v2325 = vadd.f32 %v2292, %v2324
  %2326 = vmatmul.bf16.gmra.mxu0 %v1736
  %v2327 = vpop.f32.mrf.mxu0
  %v2328 = vadd.f32 %v2295, %v2327
  %v2329 = vpop.f32.mrf.mxu0
  %v2330 = vadd.f32 %v2297, %v2329
  %2331 = vmatmul.bf16.gmra.mxu0 %v1744
  %v2332 = vpop.f32.mrf.mxu0
  %v2333 = vadd.f32 %v2300, %v2332
  %v2334 = vpop.f32.mrf.mxu0
  %v2335 = vadd.f32 %v2302, %v2334
  %2336 = vmatmul.bf16.gmra.mxu0 %v1752
  %v2337 = vpop.f32.mrf.mxu0
  %v2338 = vadd.f32 %v2305, %v2337
  %v2339 = vpop.f32.mrf.mxu0
  %2340 = vdwg.mxu0
  %2341 = vmatpush.bf16.msra.mxu0 %v2170
  %2342 = vmatpush.bf16.msra.mxu0 %v2169
  %2343 = vmatpush.bf16.msra.mxu0 %v2168
  %2344 = vmatpush.bf16.msra.mxu0 %v2167
  %2345 = vmatpush.bf16.msra.mxu0 %v2166
  %2346 = vmatpush.bf16.msra.mxu0 %v2165
  %2347 = vmatpush.bf16.msra.mxu0 %v2164
  %2348 = vmatpush.bf16.msra.mxu0 %v2163
  %2349 = vmatmul.bf16.gmra.mxu0 %v1721
  %v2350 = vpop.f32.mrf.mxu0
  %v2351 = vadd.f32 %v2318, %v2350
  %v2352 = vpop.f32.mrf.mxu0
  %v2353 = vadd.f32 %v2320, %v2352
  %2354 = vmatmul.bf16.gmra.mxu0 %v1729
  %v2355 = vpop.f32.mrf.mxu0
  %v2356 = vadd.f32 %v2323, %v2355
  %v2357 = vpop.f32.mrf.mxu0
  %v2358 = vadd.f32 %v2325, %v2357
  %2359 = vmatmul.bf16.gmra.mxu0 %v1737
  %v2360 = vpop.f32.mrf.mxu0
  %v2361 = vadd.f32 %v2328, %v2360
  %v2362 = vpop.f32.mrf.mxu0
  %v2363 = vadd.f32 %v2330, %v2362
  %2364 = vmatmul.bf16.gmra.mxu0 %v1745
  %v2365 = vpop.f32.mrf.mxu0
  %v2366 = vadd.f32 %v2333, %v2365
  %v2367 = vpop.f32.mrf.mxu0
  %v2368 = vadd.f32 %v2335, %v2367
  %2369 = vmatmul.bf16.gmra.mxu0 %v1753
  %v2370 = vpop.f32.mrf.mxu0
  %v2371 = vadd.f32 %v2338, %v2370
  %v2372 = vpop.f32.mrf.mxu0
  %2373 = vdwg.mxu0
  %2374 = vmatpush.bf16.msra.mxu0 %v2178
  %2375 = vmatpush.bf16.msra.mxu0 %v2177
  %2376 = vmatpush.bf16.msra.mxu0 %v2176
  %2377 = vmatpush.bf16.msra.mxu0 %v2175
  %2378 = vmatpush.bf16.msra.mxu0 %v2174
  %2379 = vmatpush.bf16.msra.mxu0 %v2173
  %2380 = vmatpush.bf16.msra.mxu0 %v2172
  %2381 = vmatpush.bf16.msra.mxu0 %v2171
  %2382 = vmatmul.bf16.gmra.mxu0 %v1722
  %v2383 = vpop.f32.mrf.mxu0
  %v2384 = vadd.f32 %v2351, %v2383
  %v2385 = vpop.f32.mrf.mxu0
  %v2386 = vadd.f32 %v2353, %v2385
  %2387 = vmatmul.bf16.gmra.mxu0 %v1730
  %v2388 = vpop.f32.mrf.mxu0
  %v2389 = vadd.f32 %v2356, %v2388
  %v2390 = vpop.f32.mrf.mxu0
  %v2391 = vadd.f32 %v2358, %v2390
  %2392 = vmatmul.bf16.gmra.mxu0 %v1738
  %v2393 = vpop.f32.mrf.mxu0
  %v2394 = vadd.f32 %v2361, %v2393
  %v2395 = vpop.f32.mrf.mxu0
  %v2396 = vadd.f32 %v2363, %v2395
  %2397 = vmatmul.bf16.gmra.mxu0 %v1746
  %v2398 = vpop.f32.mrf.mxu0
  %v2399 = vadd.f32 %v2366, %v2398
  %v2400 = vpop.f32.mrf.mxu0
  %v2401 = vadd.f32 %v2368, %v2400
  %2402 = vmatmul.bf16.gmra.mxu0 %v1754
  %v2403 = vpop.f32.mrf.mxu0
  %v2404 = vadd.f32 %v2371, %v2403
  %v2405 = vpop.f32.mrf.mxu0
  %2406 = vdwg.mxu0
  %2407 = vmatpush.bf16.msra.mxu0 %v2186
  %2408 = vmatpush.bf16.msra.mxu0 %v2185
  %2409 = vmatpush.bf16.msra.mxu0 %v2184
  %2410 = vmatpush.bf16.msra.mxu0 %v2183
  %2411 = vmatpush.bf16.msra.mxu0 %v2182
  %2412 = vmatpush.bf16.msra.mxu0 %v2181
  %2413 = vmatpush.bf16.msra.mxu0 %v2180
  %2414 = vmatpush.bf16.msra.mxu0 %v2179
  %2415 = vmatmul.bf16.gmra.mxu0 %v1723
  %v2416 = vpop.f32.mrf.mxu0
  %v2417 = vadd.f32 %v2384, %v2416
  %v2418 = vpop.f32.mrf.mxu0
  %v2419 = vadd.f32 %v2386, %v2418
  %2420 = vmatmul.bf16.gmra.mxu0 %v1731
  %v2421 = vpop.f32.mrf.mxu0
  %v2422 = vadd.f32 %v2389, %v2421
  %v2423 = vpop.f32.mrf.mxu0
  %v2424 = vadd.f32 %v2391, %v2423
  %2425 = vmatmul.bf16.gmra.mxu0 %v1739
  %v2426 = vpop.f32.mrf.mxu0
  %v2427 = vadd.f32 %v2394, %v2426
  %v2428 = vpop.f32.mrf.mxu0
  %v2429 = vadd.f32 %v2396, %v2428
  %2430 = vmatmul.bf16.gmra.mxu0 %v1747
  %v2431 = vpop.f32.mrf.mxu0
  %v2432 = vadd.f32 %v2399, %v2431
  %v2433 = vpop.f32.mrf.mxu0
  %v2434 = vadd.f32 %v2401, %v2433
  %2435 = vmatmul.bf16.gmra.mxu0 %v1755
  %v2436 = vpop.f32.mrf.mxu0
  %v2437 = vadd.f32 %v2404, %v2436
  %v2438 = vpop.f32.mrf.mxu0
  %2439 = vdwg.mxu0
  %2440 = vmatpush.bf16.msra.mxu0 %v2194
  %2441 = vmatpush.bf16.msra.mxu0 %v2193
  %2442 = vmatpush.bf16.msra.mxu0 %v2192
  %2443 = vmatpush.bf16.msra.mxu0 %v2191
  %2444 = vmatpush.bf16.msra.mxu0 %v2190
  %2445 = vmatpush.bf16.msra.mxu0 %v2189
  %2446 = vmatpush.bf16.msra.mxu0 %v2188
  %2447 = vmatpush.bf16.msra.mxu0 %v2187
  %2448 = vmatmul.bf16.gmra.mxu0 %v1724
  %v2449 = vpop.f32.mrf.mxu0
  %v2450 = vadd.f32 %v2417, %v2449
  %v2451 = vpop.f32.mrf.mxu0
  %v2452 = vadd.f32 %v2419, %v2451
  %2453 = vmatmul.bf16.gmra.mxu0 %v1732
  %v2454 = vpop.f32.mrf.mxu0
  %v2455 = vadd.f32 %v2422, %v2454
  %v2456 = vpop.f32.mrf.mxu0
  %v2457 = vadd.f32 %v2424, %v2456
  %2458 = vmatmul.bf16.gmra.mxu0 %v1740
  %v2459 = vpop.f32.mrf.mxu0
  %v2460 = vadd.f32 %v2427, %v2459
  %v2461 = vpop.f32.mrf.mxu0
  %v2462 = vadd.f32 %v2429, %v2461
  %2463 = vmatmul.bf16.gmra.mxu0 %v1748
  %v2464 = vpop.f32.mrf.mxu0
  %v2465 = vadd.f32 %v2432, %v2464
  %v2466 = vpop.f32.mrf.mxu0
  %v2467 = vadd.f32 %v2434, %v2466
  %2468 = vmatmul.bf16.gmra.mxu0 %v1756
  %v2469 = vpop.f32.mrf.mxu0
  %v2470 = vadd.f32 %v2437, %v2469
  %v2471 = vpop.f32.mrf.mxu0
  %2472 = vdwg.mxu0
  %2473 = vmatpush.bf16.msra.mxu0 %v2202
  %2474 = vmatpush.bf16.msra.mxu0 %v2201
  %2475 = vmatpush.bf16.msra.mxu0 %v2200
  %2476 = vmatpush.bf16.msra.mxu0 %v2199
  %2477 = vmatpush.bf16.msra.mxu0 %v2198
  %2478 = vmatpush.bf16.msra.mxu0 %v2197
  %2479 = vmatpush.bf16.msra.mxu0 %v2196
  %2480 = vmatpush.bf16.msra.mxu0 %v2195
  %2481 = vmatmul.bf16.gmra.mxu0 %v1725
  %v2482 = vpop.f32.mrf.mxu0
  %v2483 = vadd.f32 %v2450, %v2482
  %v2484 = vpop.f32.mrf.mxu0
  %v2485 = vadd.f32 %v2452, %v2484
  %2486 = vmatmul.bf16.gmra.mxu0 %v1733
  %v2487 = vpop.f32.mrf.mxu0
  %v2488 = vadd.f32 %v2455, %v2487
  %v2489 = vpop.f32.mrf.mxu0
  %v2490 = vadd.f32 %v2457, %v2489
  %2491 = vmatmul.bf16.gmra.mxu0 %v1741
  %v2492 = vpop.f32.mrf.mxu0
  %v2493 = vadd.f32 %v2460, %v2492
  %v2494 = vpop.f32.mrf.mxu0
  %v2495 = vadd.f32 %v2462, %v2494
  %2496 = vmatmul.bf16.gmra.mxu0 %v1749
  %v2497 = vpop.f32.mrf.mxu0
  %v2498 = vadd.f32 %v2465, %v2497
  %v2499 = vpop.f32.mrf.mxu0
  %v2500 = vadd.f32 %v2467, %v2499
  %2501 = vmatmul.bf16.gmra.mxu0 %v1757
  %v2502 = vpop.f32.mrf.mxu0
  %v2503 = vadd.f32 %v2470, %v2502
  %v2504 = vpop.f32.mrf.mxu0
  %2505 = vdwg.mxu0
  %2506 = vmatpush.bf16.msra.mxu0 %v2210
  %2507 = vmatpush.bf16.msra.mxu0 %v2209
  %2508 = vmatpush.bf16.msra.mxu0 %v2208
  %2509 = vmatpush.bf16.msra.mxu0 %v2207
  %2510 = vmatpush.bf16.msra.mxu0 %v2206
  %2511 = vmatpush.bf16.msra.mxu0 %v2205
  %2512 = vmatpush.bf16.msra.mxu0 %v2204
  %2513 = vmatpush.bf16.msra.mxu0 %v2203
  %2514 = vmatmul.bf16.gmra.mxu0 %v1726
  %v2515 = vpop.f32.mrf.mxu0
  %v2516 = vadd.f32 %v2483, %v2515
  %v2517 = vpop.f32.mrf.mxu0
  %v2518 = vadd.f32 %v2485, %v2517
  %2519 = vmatmul.bf16.gmra.mxu0 %v1734
  %v2520 = vpop.f32.mrf.mxu0
  %v2521 = vadd.f32 %v2488, %v2520
  %v2522 = vpop.f32.mrf.mxu0
  %v2523 = vadd.f32 %v2490, %v2522
  %2524 = vmatmul.bf16.gmra.mxu0 %v1742
  %v2525 = vpop.f32.mrf.mxu0
  %v2526 = vadd.f32 %v2493, %v2525
  %v2527 = vpop.f32.mrf.mxu0
  %v2528 = vadd.f32 %v2495, %v2527
  %2529 = vmatmul.bf16.gmra.mxu0 %v1750
  %v2530 = vpop.f32.mrf.mxu0
  %v2531 = vadd.f32 %v2498, %v2530
  %v2532 = vpop.f32.mrf.mxu0
  %v2533 = vadd.f32 %v2500, %v2532
  %2534 = vmatmul.bf16.gmra.mxu0 %v1758
  %v2535 = vpop.f32.mrf.mxu0
  %v2536 = vadd.f32 %v2503, %v2535
  %v2537 = vpop.f32.mrf.mxu0
  %2538 = vdwg.mxu0
  %v2539 = vmax.f32 %v2516, 0.0
  %v2540 = vmax.f32 %v2518, 0.0
  %v2541 = vmax.f32 %v2521, 0.0
  %v2542 = vmax.f32 %v2523, 0.0
  %v2543 = vmax.f32 %v2526, 0.0
  %v2544 = vmax.f32 %v2528, 0.0
  %v2545 = vmax.f32 %v2531, 0.0
  %v2546 = vmax.f32 %v2533, 0.0
  %v2547 = vmax.f32 %v2536, 0.0
  %2549 = vrot.lane.b32.xlu0 %v2540, 64
  %v2550 = vpop.permute.xlu0 %2549
  %2553 = vrot.lane.b32.xlu0 %v2542, 64
  %v2554 = vpop.permute.xlu0 %2553
  %2557 = vrot.lane.b32.xlu0 %v2544, 64
  %v2558 = vpop.permute.xlu0 %2557
  %2561 = vrot.lane.b32.xlu0 %v2546, 64
  %v2562 = vpop.permute.xlu0 %2561
  %v2564 = vsel %vm1085, %v2539, %v2550
  %v2565 = vsel %vm1085, %v2541, %v2554
  %v2566 = vsel %vm1085, %v2543, %v2558
  %v2567 = vsel %vm1085, %v2545, %v2562
  %v2568 = vpack.c.bf16 %v2564, %v2564
  %v2569 = vpack.c.bf16 %v2565, %v2565
  %v2570 = vpack.c.bf16 %v2566, %v2566
  %v2571 = vpack.c.bf16 %v2567, %v2567
  %v2572 = vpack.c.bf16 %v2547, %v2547
  %v2573 = vld [vmem:[%s5] sm:$0xf]
  %v2574 = vld [vmem:[%s5 + $0x4] sm:$0xf]
  %v2575 = vld [vmem:[%s5 + $0x8] sm:$0xf]
  %v2576 = vld [vmem:[%s5 + $0xc] sm:$0xf]
  %v2577 = vld [vmem:[%s5 + $0x10] sm:$0xf]
  %v2578 = vld [vmem:[%s5 + $0x14] sm:$0xf]
  %v2579 = vld [vmem:[%s5 + $0x18] sm:$0xf]
  %v2580 = vld [vmem:[%s5 + $0x1c] sm:$0xf]
  %v2581 = vld [vmem:[%s5 + $0x20] sm:$0xf]
  %v2582 = vld [vmem:[%s5 + $0x24] sm:$0xf]
  %v2583 = vld [vmem:[%s5 + $0x28] sm:$0xf]
  %v2584 = vld [vmem:[%s5 + $0x2c] sm:$0xf]
  %v2585 = vld [vmem:[%s5 + $0x30] sm:$0xf]
  %v2586 = vld [vmem:[%s5 + $0x34] sm:$0xf]
  %v2587 = vld [vmem:[%s5 + $0x38] sm:$0xf]
  %v2588 = vld [vmem:[%s5 + $0x3c] sm:$0xf]
  %v2589 = vld [vmem:[%s5 + $0x40] sm:$0xf]
  %v2590 = vld [vmem:[%s5 + $0x44] sm:$0xf]
  %v2591 = vld [vmem:[%s5 + $0x48] sm:$0xf]
  %v2592 = vld [vmem:[%s5 + $0x4c] sm:$0xf]
  %v2593 = vld [vmem:[%s5 + $0x50] sm:$0xf]
  %v2594 = vld [vmem:[%s5 + $0x54] sm:$0xf]
  %v2595 = vld [vmem:[%s5 + $0x58] sm:$0xf]
  %v2596 = vld [vmem:[%s5 + $0x5c] sm:$0xf]
  %v2597 = vld [vmem:[%s5 + $0x60] sm:$0xf]
  %v2598 = vld [vmem:[%s5 + $0x64] sm:$0xf]
  %v2599 = vld [vmem:[%s5 + $0x68] sm:$0xf]
  %v2600 = vld [vmem:[%s5 + $0x6c] sm:$0xf]
  %v2601 = vld [vmem:[%s5 + $0x70] sm:$0xf]
  %v2602 = vld [vmem:[%s5 + $0x74] sm:$0xf]
  %v2603 = vld [vmem:[%s5 + $0x78] sm:$0xf]
  %v2604 = vld [vmem:[%s5 + $0x7c] sm:$0xf]
  %v2605 = vld [vmem:[%s5 + $0x80] sm:$0xf]
  %v2606 = vld [vmem:[%s5 + $0x84] sm:$0xf]
  %v2607 = vld [vmem:[%s5 + $0x88] sm:$0xf]
  %v2608 = vld [vmem:[%s5 + $0x8c] sm:$0xf]
  %v2609 = vld [vmem:[%s5 + $0x90] sm:$0xf]
  %v2610 = vld [vmem:[%s5 + $0x94] sm:$0xf]
  %v2611 = vld [vmem:[%s5 + $0x98] sm:$0xf]
  %v2612 = vld [vmem:[%s5 + $0x9c] sm:$0xf]
  %v2613 = vld [vmem:[%s5 + $0xa0] sm:$0xf]
  %v2614 = vld [vmem:[%s5 + $0xa4] sm:$0xf]
  %v2615 = vld [vmem:[%s5 + $0xa8] sm:$0xf]
  %v2616 = vld [vmem:[%s5 + $0xac] sm:$0xf]
  %v2617 = vld [vmem:[%s5 + $0xb0] sm:$0xf]
  %v2618 = vld [vmem:[%s5 + $0xb4] sm:$0xf]
  %v2619 = vld [vmem:[%s5 + $0xb8] sm:$0xf]
  %v2620 = vld [vmem:[%s5 + $0xbc] sm:$0xf]
  %v2621 = vld [vmem:[%s5 + $0xc0] sm:$0xf]
  %v2622 = vld [vmem:[%s5 + $0xc4] sm:$0xf]
  %v2623 = vld [vmem:[%s5 + $0xc8] sm:$0xf]
  %v2624 = vld [vmem:[%s5 + $0xcc] sm:$0xf]
  %v2625 = vld [vmem:[%s5 + $0xd0] sm:$0xf]
  %v2626 = vld [vmem:[%s5 + $0xd4] sm:$0xf]
  %v2627 = vld [vmem:[%s5 + $0xd8] sm:$0xf]
  %v2628 = vld [vmem:[%s5 + $0xdc] sm:$0xf]
  %v2629 = vld [vmem:[%s5 + $0xe0] sm:$0xf]
  %v2630 = vld [vmem:[%s5 + $0xe4] sm:$0xf]
  %v2631 = vld [vmem:[%s5 + $0xe8] sm:$0xf]
  %v2632 = vld [vmem:[%s5 + $0xec] sm:$0xf]
  %v2633 = vld [vmem:[%s5 + $0xf0] sm:$0xf]
  %v2634 = vld [vmem:[%s5 + $0xf4] sm:$0xf]
  %v2635 = vld [vmem:[%s5 + $0xf8] sm:$0xf]
  %v2636 = vld [vmem:[%s5 + $0xfc] sm:$0xf]
  %v2637 = vld [vmem:[%s5 + $0x100] sm:$0xf]
  %v2638 = vld [vmem:[%s5 + $0x104] sm:$0xf]
  %v2639 = vld [vmem:[%s5 + $0x108] sm:$0xf]
  %v2640 = vld [vmem:[%s5 + $0x10c] sm:$0xf]
  %v2641 = vld [vmem:[%s5 + $0x110] sm:$0xf]
  %v2642 = vld [vmem:[%s5 + $0x114] sm:$0xf]
  %v2643 = vld [vmem:[%s5 + $0x118] sm:$0xf]
  %v2644 = vld [vmem:[%s5 + $0x11c] sm:$0xf]
  %v2645 = vld [vmem:[%s6] sm:$0x1]
  %v2647 = vperm.slane %v2645, 0
  %v2721 = vunpack.c.l.b16 %v2573
  %v2722 = vunpack.c.l.b16 %v2574
  %v2723 = vunpack.c.l.b16 %v2575
  %v2724 = vunpack.c.l.b16 %v2576
  %v2725 = vunpack.c.l.b16 %v2577
  %v2726 = vunpack.c.l.b16 %v2578
  %v2727 = vunpack.c.l.b16 %v2579
  %v2728 = vunpack.c.l.b16 %v2580
  %v2729 = vunpack.c.l.b16 %v2581
  %v2730 = vunpack.c.l.b16 %v2582
  %v2731 = vunpack.c.l.b16 %v2583
  %v2732 = vunpack.c.l.b16 %v2584
  %v2733 = vunpack.c.l.b16 %v2585
  %v2734 = vunpack.c.l.b16 %v2586
  %v2735 = vunpack.c.l.b16 %v2587
  %v2736 = vunpack.c.l.b16 %v2588
  %v2737 = vunpack.c.l.b16 %v2589
  %v2738 = vunpack.c.l.b16 %v2590
  %v2739 = vunpack.c.l.b16 %v2591
  %v2740 = vunpack.c.l.b16 %v2592
  %v2741 = vunpack.c.l.b16 %v2593
  %v2742 = vunpack.c.l.b16 %v2594
  %v2743 = vunpack.c.l.b16 %v2595
  %v2744 = vunpack.c.l.b16 %v2596
  %v2745 = vunpack.c.l.b16 %v2597
  %v2746 = vunpack.c.l.b16 %v2598
  %v2747 = vunpack.c.l.b16 %v2599
  %v2748 = vunpack.c.l.b16 %v2600
  %v2749 = vunpack.c.l.b16 %v2601
  %v2750 = vunpack.c.l.b16 %v2602
  %v2751 = vunpack.c.l.b16 %v2603
  %v2752 = vunpack.c.l.b16 %v2604
  %v2753 = vunpack.c.l.b16 %v2605
  %v2754 = vunpack.c.l.b16 %v2606
  %v2755 = vunpack.c.l.b16 %v2607
  %v2756 = vunpack.c.l.b16 %v2608
  %v2757 = vunpack.c.l.b16 %v2609
  %v2758 = vunpack.c.l.b16 %v2610
  %v2759 = vunpack.c.l.b16 %v2611
  %v2760 = vunpack.c.l.b16 %v2612
  %v2761 = vunpack.c.l.b16 %v2613
  %v2762 = vunpack.c.l.b16 %v2614
  %v2763 = vunpack.c.l.b16 %v2615
  %v2764 = vunpack.c.l.b16 %v2616
  %v2765 = vunpack.c.l.b16 %v2617
  %v2766 = vunpack.c.l.b16 %v2618
  %v2767 = vunpack.c.l.b16 %v2619
  %v2768 = vunpack.c.l.b16 %v2620
  %v2769 = vunpack.c.l.b16 %v2621
  %v2770 = vunpack.c.l.b16 %v2622
  %v2771 = vunpack.c.l.b16 %v2623
  %v2772 = vunpack.c.l.b16 %v2624
  %v2773 = vunpack.c.l.b16 %v2625
  %v2774 = vunpack.c.l.b16 %v2626
  %v2775 = vunpack.c.l.b16 %v2627
  %v2776 = vunpack.c.l.b16 %v2628
  %v2777 = vunpack.c.l.b16 %v2629
  %v2778 = vunpack.c.l.b16 %v2630
  %v2779 = vunpack.c.l.b16 %v2631
  %v2780 = vunpack.c.l.b16 %v2632
  %v2781 = vunpack.c.l.b16 %v2633
  %v2782 = vunpack.c.l.b16 %v2634
  %v2783 = vunpack.c.l.b16 %v2635
  %v2784 = vunpack.c.l.b16 %v2636
  %v2785 = vunpack.c.l.b16 %v2637
  %v2786 = vunpack.c.l.b16 %v2638
  %v2787 = vunpack.c.l.b16 %v2639
  %v2788 = vunpack.c.l.b16 %v2640
  %v2789 = vunpack.c.l.b16 %v2641
  %v2790 = vunpack.c.l.b16 %v2642
  %v2791 = vunpack.c.l.b16 %v2643
  %v2792 = vunpack.c.l.b16 %v2644
  %v2793 = vpack.c.b16 %v2722, %v2721
  %v2794 = vpack.c.b16 %v2724, %v2723
  %v2795 = vpack.c.b16 %v2726, %v2725
  %v2796 = vpack.c.b16 %v2728, %v2727
  %v2797 = vpack.c.b16 %v2730, %v2729
  %v2798 = vpack.c.b16 %v2732, %v2731
  %v2799 = vpack.c.b16 %v2734, %v2733
  %v2800 = vpack.c.b16 %v2736, %v2735
  %v2801 = vpack.c.b16 %v2738, %v2737
  %v2802 = vpack.c.b16 %v2740, %v2739
  %v2803 = vpack.c.b16 %v2742, %v2741
  %v2804 = vpack.c.b16 %v2744, %v2743
  %v2805 = vpack.c.b16 %v2746, %v2745
  %v2806 = vpack.c.b16 %v2748, %v2747
  %v2807 = vpack.c.b16 %v2750, %v2749
  %v2808 = vpack.c.b16 %v2752, %v2751
  %v2809 = vpack.c.b16 %v2754, %v2753
  %v2810 = vpack.c.b16 %v2756, %v2755
  %v2811 = vpack.c.b16 %v2758, %v2757
  %v2812 = vpack.c.b16 %v2760, %v2759
  %v2813 = vpack.c.b16 %v2762, %v2761
  %v2814 = vpack.c.b16 %v2764, %v2763
  %v2815 = vpack.c.b16 %v2766, %v2765
  %v2816 = vpack.c.b16 %v2768, %v2767
  %v2817 = vpack.c.b16 %v2770, %v2769
  %v2818 = vpack.c.b16 %v2772, %v2771
  %v2819 = vpack.c.b16 %v2774, %v2773
  %v2820 = vpack.c.b16 %v2776, %v2775
  %v2821 = vpack.c.b16 %v2778, %v2777
  %v2822 = vpack.c.b16 %v2780, %v2779
  %v2823 = vpack.c.b16 %v2782, %v2781
  %v2824 = vpack.c.b16 %v2784, %v2783
  %v2825 = vpack.c.b16 %v2786, %v2785
  %v2826 = vpack.c.b16 %v2788, %v2787
  %v2827 = vpack.c.b16 %v2790, %v2789
  %v2828 = vpack.c.b16 %v2792, %v2791
  %v2866 = vsel %vm1085, %v2572, 0
  %2868 = vmatpush.bf16.msra.mxu0 %v2800
  %2869 = vmatpush.bf16.msra.mxu0 %v2799
  %2870 = vmatpush.bf16.msra.mxu0 %v2798
  %2871 = vmatpush.bf16.msra.mxu0 %v2797
  %2872 = vmatpush.bf16.msra.mxu0 %v2796
  %2873 = vmatpush.bf16.msra.mxu0 %v2795
  %2874 = vmatpush.bf16.msra.mxu0 %v2794
  %2875 = vmatpush.bf16.msra.mxu0 %v2793
  %2876 = vmatmul.bf16.gmra.mxu0 %v2568
  %v2877 = vpop.f32.mrf.mxu0
  %v2878 = vadd.f32 %v2647, %v2877
  %v2879 = vpop.f32.mrf.mxu0
  %2880 = vdwg.mxu0
  %2881 = vmatpush.bf16.msra.mxu0 %v2808
  %2882 = vmatpush.bf16.msra.mxu0 %v2807
  %2883 = vmatpush.bf16.msra.mxu0 %v2806
  %2884 = vmatpush.bf16.msra.mxu0 %v2805
  %2885 = vmatpush.bf16.msra.mxu0 %v2804
  %2886 = vmatpush.bf16.msra.mxu0 %v2803
  %2887 = vmatpush.bf16.msra.mxu0 %v2802
  %2888 = vmatpush.bf16.msra.mxu0 %v2801
  %2889 = vmatmul.bf16.gmra.mxu0 %v2569
  %v2890 = vpop.f32.mrf.mxu0
  %v2891 = vadd.f32 %v2878, %v2890
  %v2892 = vpop.f32.mrf.mxu0
  %2893 = vdwg.mxu0
  %2894 = vmatpush.bf16.msra.mxu0 %v2816
  %2895 = vmatpush.bf16.msra.mxu0 %v2815
  %2896 = vmatpush.bf16.msra.mxu0 %v2814
  %2897 = vmatpush.bf16.msra.mxu0 %v2813
  %2898 = vmatpush.bf16.msra.mxu0 %v2812
  %2899 = vmatpush.bf16.msra.mxu0 %v2811
  %2900 = vmatpush.bf16.msra.mxu0 %v2810
  %2901 = vmatpush.bf16.msra.mxu0 %v2809
  %2902 = vmatmul.bf16.gmra.mxu0 %v2570
  %v2903 = vpop.f32.mrf.mxu0
  %v2904 = vadd.f32 %v2891, %v2903
  %v2905 = vpop.f32.mrf.mxu0
  %2906 = vdwg.mxu0
  %2907 = vmatpush.bf16.msra.mxu0 %v2824
  %2908 = vmatpush.bf16.msra.mxu0 %v2823
  %2909 = vmatpush.bf16.msra.mxu0 %v2822
  %2910 = vmatpush.bf16.msra.mxu0 %v2821
  %2911 = vmatpush.bf16.msra.mxu0 %v2820
  %2912 = vmatpush.bf16.msra.mxu0 %v2819
  %2913 = vmatpush.bf16.msra.mxu0 %v2818
  %2914 = vmatpush.bf16.msra.mxu0 %v2817
  %2915 = vmatmul.bf16.gmra.mxu0 %v2571
  %v2916 = vpop.f32.mrf.mxu0
  %v2917 = vadd.f32 %v2904, %v2916
  %v2918 = vpop.f32.mrf.mxu0
  %2919 = vdwg.mxu0
  %2920 = vmatpush.bf16.msra.mxu0 0
  %2921 = vmatpush.bf16.msra.mxu0 0
  %2922 = vmatpush.bf16.msra.mxu0 0
  %2923 = vmatpush.bf16.msra.mxu0 0
  %2924 = vmatpush.bf16.msra.mxu0 %v2828
  %2925 = vmatpush.bf16.msra.mxu0 %v2827
  %2926 = vmatpush.bf16.msra.mxu0 %v2826
  %2927 = vmatpush.bf16.msra.mxu0 %v2825
  %2928 = vmatmul.bf16.gmra.mxu0 %v2866
  %v2929 = vpop.f32.mrf.mxu0
  %v2930 = vadd.f32 %v2917, %v2929
  %v2931 = vpop.f32.mrf.mxu0
  %2932 = vdwg.mxu0
  %v2933 = vmax.f32 %v2930, 0.0
  %v2934 = vpack.c.bf16 %v2933, %v2933
  %v2935 = vld [vmem:[%s7] sm:$0xff]
  %v2936 = vld [vmem:[%s7 + $0x8] sm:$0xff]
  %v2937 = vld [vmem:[%s7 + $0x10] sm:$0xff]
  %v2938 = vld [vmem:[%s7 + $0x18] sm:$0xff]
  %v2939 = vld [vmem:[%s7 + $0x20] sm:$0xff]
  %v2940 = vld [vmem:[%s7 + $0x28] sm:$0xff]
  %v2941 = vld [vmem:[%s7 + $0x30] sm:$0xff]
  %v2942 = vld [vmem:[%s7 + $0x38] sm:$0xff]
  %v2943 = vld [vmem:[%s7 + $0x40] sm:$0xff]
  %v2944 = vld [vmem:[%s7 + $0x48] sm:$0xff]
  %v2945 = vld [vmem:[%s7 + $0x50] sm:$0xff]
  %v2946 = vld [vmem:[%s7 + $0x58] sm:$0xff]
  %v2947 = vld [vmem:[%s7 + $0x60] sm:$0xff]
  %v2948 = vld [vmem:[%s7 + $0x68] sm:$0xff]
  %v2949 = vld [vmem:[%s7 + $0x70] sm:$0xff]
  %v2950 = vld [vmem:[%s7 + $0x78] sm:$0xff]
  %v2951 = vld [vmem:[%s7 + $0x80] sm:$0xff]
  %v2952 = vld [vmem:[%s7 + $0x88] sm:$0xff]
  %v2953 = vld [vmem:[%s7 + $0x90] sm:$0xff]
  %v2954 = vld [vmem:[%s7 + $0x98] sm:$0xff]
  %v2955 = vld [vmem:[%s7 + $0xa0] sm:$0xff]
  %v2956 = vld [vmem:[%s7 + $0xa8] sm:$0xff]
  %v2957 = vld [vmem:[%s7 + $0xb0] sm:$0xff]
  %v2958 = vld [vmem:[%s7 + $0xb8] sm:$0xff]
  %v2959 = vld [vmem:[%s7 + $0xc0] sm:$0xff]
  %v2960 = vld [vmem:[%s7 + $0xc8] sm:$0xff]
  %v2961 = vld [vmem:[%s7 + $0xd0] sm:$0xff]
  %v2962 = vld [vmem:[%s7 + $0xd8] sm:$0xff]
  %v2963 = vld [vmem:[%s7 + $0xe0] sm:$0xff]
  %v2964 = vld [vmem:[%s7 + $0xe8] sm:$0xff]
  %v2965 = vld [vmem:[%s7 + $0xf0] sm:$0xff]
  %v2966 = vld [vmem:[%s7 + $0xf8] sm:$0xff]
  %v2967 = vld [vmem:[%s8] sm:$0xff]
  %v2969 = vperm.slane %v2967, 0
  %v2970 = vperm.slane %v2967, 1
  %v2971 = vperm.slane %v2967, 2
  %v2972 = vperm.slane %v2967, 3
  %v2973 = vperm.slane %v2967, 4
  %v2974 = vperm.slane %v2967, 5
  %v2975 = vperm.slane %v2967, 6
  %v2976 = vperm.slane %v2967, 7
  %v3017 = vunpack.c.l.b16 %v2935
  %v3018 = vunpack.c.h.b16 %v2935
  %v3019 = vunpack.c.l.b16 %v2936
  %v3020 = vunpack.c.h.b16 %v2936
  %v3021 = vunpack.c.l.b16 %v2937
  %v3022 = vunpack.c.h.b16 %v2937
  %v3023 = vunpack.c.l.b16 %v2938
  %v3024 = vunpack.c.h.b16 %v2938
  %v3025 = vunpack.c.l.b16 %v2939
  %v3026 = vunpack.c.h.b16 %v2939
  %v3027 = vunpack.c.l.b16 %v2940
  %v3028 = vunpack.c.h.b16 %v2940
  %v3029 = vunpack.c.l.b16 %v2941
  %v3030 = vunpack.c.h.b16 %v2941
  %v3031 = vunpack.c.l.b16 %v2942
  %v3032 = vunpack.c.h.b16 %v2942
  %v3033 = vunpack.c.l.b16 %v2943
  %v3034 = vunpack.c.h.b16 %v2943
  %v3035 = vunpack.c.l.b16 %v2944
  %v3036 = vunpack.c.h.b16 %v2944
  %v3037 = vunpack.c.l.b16 %v2945
  %v3038 = vunpack.c.h.b16 %v2945
  %v3039 = vunpack.c.l.b16 %v2946
  %v3040 = vunpack.c.h.b16 %v2946
  %v3041 = vunpack.c.l.b16 %v2947
  %v3042 = vunpack.c.h.b16 %v2947
  %v3043 = vunpack.c.l.b16 %v2948
  %v3044 = vunpack.c.h.b16 %v2948
  %v3045 = vunpack.c.l.b16 %v2949
  %v3046 = vunpack.c.h.b16 %v2949
  %v3047 = vunpack.c.l.b16 %v2950
  %v3048 = vunpack.c.h.b16 %v2950
  %v3049 = vunpack.c.l.b16 %v2951
  %v3050 = vunpack.c.h.b16 %v2951
  %v3051 = vunpack.c.l.b16 %v2952
  %v3052 = vunpack.c.h.b16 %v2952
  %v3053 = vunpack.c.l.b16 %v2953
  %v3054 = vunpack.c.h.b16 %v2953
  %v3055 = vunpack.c.l.b16 %v2954
  %v3056 = vunpack.c.h.b16 %v2954
  %v3057 = vunpack.c.l.b16 %v2955
  %v3058 = vunpack.c.h.b16 %v2955
  %v3059 = vunpack.c.l.b16 %v2956
  %v3060 = vunpack.c.h.b16 %v2956
  %v3061 = vunpack.c.l.b16 %v2957
  %v3062 = vunpack.c.h.b16 %v2957
  %v3063 = vunpack.c.l.b16 %v2958
  %v3064 = vunpack.c.h.b16 %v2958
  %v3065 = vunpack.c.l.b16 %v2959
  %v3066 = vunpack.c.h.b16 %v2959
  %v3067 = vunpack.c.l.b16 %v2960
  %v3068 = vunpack.c.h.b16 %v2960
  %v3069 = vunpack.c.l.b16 %v2961
  %v3070 = vunpack.c.h.b16 %v2961
  %v3071 = vunpack.c.l.b16 %v2962
  %v3072 = vunpack.c.h.b16 %v2962
  %v3073 = vunpack.c.l.b16 %v2963
  %v3074 = vunpack.c.h.b16 %v2963
  %v3075 = vunpack.c.l.b16 %v2964
  %v3076 = vunpack.c.h.b16 %v2964
  %v3077 = vunpack.c.l.b16 %v2965
  %v3078 = vunpack.c.h.b16 %v2965
  %v3079 = vunpack.c.l.b16 %v2966
  %v3080 = vunpack.c.h.b16 %v2966
  %v3081 = vpack.c.b16 %v3025, %v3017
  %v3082 = vpack.c.b16 %v3026, %v3018
  %v3083 = vpack.c.b16 %v3027, %v3019
  %v3084 = vpack.c.b16 %v3028, %v3020
  %v3085 = vpack.c.b16 %v3029, %v3021
  %v3086 = vpack.c.b16 %v3030, %v3022
  %v3087 = vpack.c.b16 %v3031, %v3023
  %v3088 = vpack.c.b16 %v3032, %v3024
  %v3089 = vpack.c.b16 %v3041, %v3033
  %v3090 = vpack.c.b16 %v3042, %v3034
  %v3091 = vpack.c.b16 %v3043, %v3035
  %v3092 = vpack.c.b16 %v3044, %v3036
  %v3093 = vpack.c.b16 %v3045, %v3037
  %v3094 = vpack.c.b16 %v3046, %v3038
  %v3095 = vpack.c.b16 %v3047, %v3039
  %v3096 = vpack.c.b16 %v3048, %v3040
  %v3097 = vpack.c.b16 %v3057, %v3049
  %v3098 = vpack.c.b16 %v3058, %v3050
  %v3099 = vpack.c.b16 %v3059, %v3051
  %v3100 = vpack.c.b16 %v3060, %v3052
  %v3101 = vpack.c.b16 %v3061, %v3053
  %v3102 = vpack.c.b16 %v3062, %v3054
  %v3103 = vpack.c.b16 %v3063, %v3055
  %v3104 = vpack.c.b16 %v3064, %v3056
  %v3105 = vpack.c.b16 %v3073, %v3065
  %v3106 = vpack.c.b16 %v3074, %v3066
  %v3107 = vpack.c.b16 %v3075, %v3067
  %v3108 = vpack.c.b16 %v3076, %v3068
  %v3109 = vpack.c.b16 %v3077, %v3069
  %v3110 = vpack.c.b16 %v3078, %v3070
  %v3111 = vpack.c.b16 %v3079, %v3071
  %v3112 = vpack.c.b16 %v3080, %v3072
  %v3146 = vsel %vm1085, %v2934, 0
  %3148 = vmatpush.bf16.msra.mxu0 0
  %3149 = vmatpush.bf16.msra.mxu0 0
  %3150 = vmatpush.bf16.msra.mxu0 0
  %3151 = vmatpush.bf16.msra.mxu0 0
  %3152 = vmatpush.bf16.msra.mxu0 %v3105
  %3153 = vmatpush.bf16.msra.mxu0 %v3097
  %3154 = vmatpush.bf16.msra.mxu0 %v3089
  %3155 = vmatpush.bf16.msra.mxu0 %v3081
  %3156 = vmatmul.bf16.gmra.mxu0 %v3146
  %v3157 = vpop.f32.mrf.mxu0
  %v3158 = vadd.f32 %v2969, %v3157
  %v3159 = vpop.f32.mrf.mxu0
  %3160 = vdwg.mxu0
  %3161 = vmatpush.bf16.msra.mxu0 0
  %3162 = vmatpush.bf16.msra.mxu0 0
  %3163 = vmatpush.bf16.msra.mxu0 0
  %3164 = vmatpush.bf16.msra.mxu0 0
  %3165 = vmatpush.bf16.msra.mxu0 %v3106
  %3166 = vmatpush.bf16.msra.mxu0 %v3098
  %3167 = vmatpush.bf16.msra.mxu0 %v3090
  %3168 = vmatpush.bf16.msra.mxu0 %v3082
  %3169 = vmatmul.bf16.gmra.mxu0 %v3146
  %v3170 = vpop.f32.mrf.mxu0
  %v3171 = vadd.f32 %v2970, %v3170
  %v3172 = vpop.f32.mrf.mxu0
  %3173 = vdwg.mxu0
  %3174 = vmatpush.bf16.msra.mxu0 0
  %3175 = vmatpush.bf16.msra.mxu0 0
  %3176 = vmatpush.bf16.msra.mxu0 0
  %3177 = vmatpush.bf16.msra.mxu0 0
  %3178 = vmatpush.bf16.msra.mxu0 %v3107
  %3179 = vmatpush.bf16.msra.mxu0 %v3099
  %3180 = vmatpush.bf16.msra.mxu0 %v3091
  %3181 = vmatpush.bf16.msra.mxu0 %v3083
  %3182 = vmatmul.bf16.gmra.mxu0 %v3146
  %v3183 = vpop.f32.mrf.mxu0
  %v3184 = vadd.f32 %v2971, %v3183
  %v3185 = vpop.f32.mrf.mxu0
  %3186 = vdwg.mxu0
  %3187 = vmatpush.bf16.msra.mxu0 0
  %3188 = vmatpush.bf16.msra.mxu0 0
  %3189 = vmatpush.bf16.msra.mxu0 0
  %3190 = vmatpush.bf16.msra.mxu0 0
  %3191 = vmatpush.bf16.msra.mxu0 %v3108
  %3192 = vmatpush.bf16.msra.mxu0 %v3100
  %3193 = vmatpush.bf16.msra.mxu0 %v3092
  %3194 = vmatpush.bf16.msra.mxu0 %v3084
  %3195 = vmatmul.bf16.gmra.mxu0 %v3146
  %v3196 = vpop.f32.mrf.mxu0
  %v3197 = vadd.f32 %v2972, %v3196
  %v3198 = vpop.f32.mrf.mxu0
  %3199 = vdwg.mxu0
  %3200 = vmatpush.bf16.msra.mxu0 0
  %3201 = vmatpush.bf16.msra.mxu0 0
  %3202 = vmatpush.bf16.msra.mxu0 0
  %3203 = vmatpush.bf16.msra.mxu0 0
  %3204 = vmatpush.bf16.msra.mxu0 %v3109
  %3205 = vmatpush.bf16.msra.mxu0 %v3101
  %3206 = vmatpush.bf16.msra.mxu0 %v3093
  %3207 = vmatpush.bf16.msra.mxu0 %v3085
  %3208 = vmatmul.bf16.gmra.mxu0 %v3146
  %v3209 = vpop.f32.mrf.mxu0
  %v3210 = vadd.f32 %v2973, %v3209
  %v3211 = vpop.f32.mrf.mxu0
  %3212 = vdwg.mxu0
  %3213 = vmatpush.bf16.msra.mxu0 0
  %3214 = vmatpush.bf16.msra.mxu0 0
  %3215 = vmatpush.bf16.msra.mxu0 0
  %3216 = vmatpush.bf16.msra.mxu0 0
  %3217 = vmatpush.bf16.msra.mxu0 %v3110
  %3218 = vmatpush.bf16.msra.mxu0 %v3102
  %3219 = vmatpush.bf16.msra.mxu0 %v3094
  %3220 = vmatpush.bf16.msra.mxu0 %v3086
  %3221 = vmatmul.bf16.gmra.mxu0 %v3146
  %v3222 = vpop.f32.mrf.mxu0
  %v3223 = vadd.f32 %v2974, %v3222
  %v3224 = vpop.f32.mrf.mxu0
  %3225 = vdwg.mxu0
  %3226 = vmatpush.bf16.msra.mxu0 0
  %3227 = vmatpush.bf16.msra.mxu0 0
  %3228 = vmatpush.bf16.msra.mxu0 0
  %3229 = vmatpush.bf16.msra.mxu0 0
  %3230 = vmatpush.bf16.msra.mxu0 %v3111
  %3231 = vmatpush.bf16.msra.mxu0 %v3103
  %3232 = vmatpush.bf16.msra.mxu0 %v3095
  %3233 = vmatpush.bf16.msra.mxu0 %v3087
  %3234 = vmatmul.bf16.gmra.mxu0 %v3146
  %v3235 = vpop.f32.mrf.mxu0
  %v3236 = vadd.f32 %v2975, %v3235
  %v3237 = vpop.f32.mrf.mxu0
  %3238 = vdwg.mxu0
  %3239 = vmatpush.bf16.msra.mxu0 0
  %3240 = vmatpush.bf16.msra.mxu0 0
  %3241 = vmatpush.bf16.msra.mxu0 0
  %3242 = vmatpush.bf16.msra.mxu0 0
  %3243 = vmatpush.bf16.msra.mxu0 %v3112
  %3244 = vmatpush.bf16.msra.mxu0 %v3104
  %3245 = vmatpush.bf16.msra.mxu0 %v3096
  %3246 = vmatpush.bf16.msra.mxu0 %v3088
  %3247 = vmatmul.bf16.gmra.mxu0 %v3146
  %v3248 = vpop.f32.mrf.mxu0
  %v3249 = vadd.f32 %v2976, %v3248
  %v3250 = vpop.f32.mrf.mxu0
  %3251 = vdwg.mxu0
  %v3252 = vmax.f32 %v3158, 0.0
  %v3253 = vmax.f32 %v3171, 0.0
  %v3254 = vmax.f32 %v3184, 0.0
  %v3255 = vmax.f32 %v3197, 0.0
  %v3256 = vmax.f32 %v3210, 0.0
  %v3257 = vmax.f32 %v3223, 0.0
  %v3258 = vmax.f32 %v3236, 0.0
  %v3259 = vmax.f32 %v3249, 0.0
  %v3260 = vpack.c.bf16 %v3252, %v3252
  %v3261 = vpack.c.bf16 %v3253, %v3253
  %v3262 = vpack.c.bf16 %v3254, %v3254
  %v3263 = vpack.c.bf16 %v3255, %v3255
  %v3264 = vpack.c.bf16 %v3256, %v3256
  %v3265 = vpack.c.bf16 %v3257, %v3257
  %v3266 = vpack.c.bf16 %v3258, %v3258
  %v3267 = vpack.c.bf16 %v3259, %v3259
  %v3268 = vld [vmem:[%s9] sm:$0xf]
  %v3269 = vld [vmem:[%s9 + $0x4] sm:$0xf]
  %v3270 = vld [vmem:[%s9 + $0x8] sm:$0xf]
  %v3271 = vld [vmem:[%s9 + $0xc] sm:$0xf]
  %v3272 = vld [vmem:[%s9 + $0x10] sm:$0xf]
  %v3273 = vld [vmem:[%s9 + $0x14] sm:$0xf]
  %v3274 = vld [vmem:[%s9 + $0x18] sm:$0xf]
  %v3275 = vld [vmem:[%s9 + $0x1c] sm:$0xf]
  %v3276 = vld [vmem:[%s9 + $0x20] sm:$0xf]
  %v3277 = vld [vmem:[%s9 + $0x24] sm:$0xf]
  %v3278 = vld [vmem:[%s9 + $0x28] sm:$0xf]
  %v3279 = vld [vmem:[%s9 + $0x2c] sm:$0xf]
  %v3280 = vld [vmem:[%s9 + $0x30] sm:$0xf]
  %v3281 = vld [vmem:[%s9 + $0x34] sm:$0xf]
  %v3282 = vld [vmem:[%s9 + $0x38] sm:$0xf]
  %v3283 = vld [vmem:[%s9 + $0x3c] sm:$0xf]
  %v3284 = vld [vmem:[%s9 + $0x40] sm:$0xf]
  %v3285 = vld [vmem:[%s9 + $0x44] sm:$0xf]
  %v3286 = vld [vmem:[%s9 + $0x48] sm:$0xf]
  %v3287 = vld [vmem:[%s9 + $0x4c] sm:$0xf]
  %v3288 = vld [vmem:[%s9 + $0x50] sm:$0xf]
  %v3289 = vld [vmem:[%s9 + $0x54] sm:$0xf]
  %v3290 = vld [vmem:[%s9 + $0x58] sm:$0xf]
  %v3291 = vld [vmem:[%s9 + $0x5c] sm:$0xf]
  %v3292 = vld [vmem:[%s9 + $0x60] sm:$0xf]
  %v3293 = vld [vmem:[%s9 + $0x64] sm:$0xf]
  %v3294 = vld [vmem:[%s9 + $0x68] sm:$0xf]
  %v3295 = vld [vmem:[%s9 + $0x6c] sm:$0xf]
  %v3296 = vld [vmem:[%s9 + $0x70] sm:$0xf]
  %v3297 = vld [vmem:[%s9 + $0x74] sm:$0xf]
  %v3298 = vld [vmem:[%s9 + $0x78] sm:$0xf]
  %v3299 = vld [vmem:[%s9 + $0x7c] sm:$0xf]
  %v3300 = vld [vmem:[%s9 + $0x80] sm:$0xf]
  %v3301 = vld [vmem:[%s9 + $0x84] sm:$0xf]
  %v3302 = vld [vmem:[%s9 + $0x88] sm:$0xf]
  %v3303 = vld [vmem:[%s9 + $0x8c] sm:$0xf]
  %v3304 = vld [vmem:[%s9 + $0x90] sm:$0xf]
  %v3305 = vld [vmem:[%s9 + $0x94] sm:$0xf]
  %v3306 = vld [vmem:[%s9 + $0x98] sm:$0xf]
  %v3307 = vld [vmem:[%s9 + $0x9c] sm:$0xf]
  %v3308 = vld [vmem:[%s9 + $0xa0] sm:$0xf]
  %v3309 = vld [vmem:[%s9 + $0xa4] sm:$0xf]
  %v3310 = vld [vmem:[%s9 + $0xa8] sm:$0xf]
  %v3311 = vld [vmem:[%s9 + $0xac] sm:$0xf]
  %v3312 = vld [vmem:[%s9 + $0xb0] sm:$0xf]
  %v3313 = vld [vmem:[%s9 + $0xb4] sm:$0xf]
  %v3314 = vld [vmem:[%s9 + $0xb8] sm:$0xf]
  %v3315 = vld [vmem:[%s9 + $0xbc] sm:$0xf]
  %v3316 = vld [vmem:[%s9 + $0xc0] sm:$0xf]
  %v3317 = vld [vmem:[%s9 + $0xc4] sm:$0xf]
  %v3318 = vld [vmem:[%s9 + $0xc8] sm:$0xf]
  %v3319 = vld [vmem:[%s9 + $0xcc] sm:$0xf]
  %v3320 = vld [vmem:[%s9 + $0xd0] sm:$0xf]
  %v3321 = vld [vmem:[%s9 + $0xd4] sm:$0xf]
  %v3322 = vld [vmem:[%s9 + $0xd8] sm:$0xf]
  %v3323 = vld [vmem:[%s9 + $0xdc] sm:$0xf]
  %v3324 = vld [vmem:[%s9 + $0xe0] sm:$0xf]
  %v3325 = vld [vmem:[%s9 + $0xe4] sm:$0xf]
  %v3326 = vld [vmem:[%s9 + $0xe8] sm:$0xf]
  %v3327 = vld [vmem:[%s9 + $0xec] sm:$0xf]
  %v3328 = vld [vmem:[%s9 + $0xf0] sm:$0xf]
  %v3329 = vld [vmem:[%s9 + $0xf4] sm:$0xf]
  %v3330 = vld [vmem:[%s9 + $0xf8] sm:$0xf]
  %v3331 = vld [vmem:[%s9 + $0xfc] sm:$0xf]
  %v3332 = vld [vmem:[%s9 + $0x100] sm:$0xf]
  %v3333 = vld [vmem:[%s9 + $0x104] sm:$0xf]
  %v3334 = vld [vmem:[%s9 + $0x108] sm:$0xf]
  %v3335 = vld [vmem:[%s9 + $0x10c] sm:$0xf]
  %v3336 = vld [vmem:[%s9 + $0x110] sm:$0xf]
  %v3337 = vld [vmem:[%s9 + $0x114] sm:$0xf]
  %v3338 = vld [vmem:[%s9 + $0x118] sm:$0xf]
  %v3339 = vld [vmem:[%s9 + $0x11c] sm:$0xf]
  %v3340 = vld [vmem:[%s9 + $0x120] sm:$0xf]
  %v3341 = vld [vmem:[%s9 + $0x124] sm:$0xf]
  %v3342 = vld [vmem:[%s9 + $0x128] sm:$0xf]
  %v3343 = vld [vmem:[%s9 + $0x12c] sm:$0xf]
  %v3344 = vld [vmem:[%s9 + $0x130] sm:$0xf]
  %v3345 = vld [vmem:[%s9 + $0x134] sm:$0xf]
  %v3346 = vld [vmem:[%s9 + $0x138] sm:$0xf]
  %v3347 = vld [vmem:[%s9 + $0x13c] sm:$0xf]
  %v3348 = vld [vmem:[%s9 + $0x140] sm:$0xf]
  %v3349 = vld [vmem:[%s9 + $0x144] sm:$0xf]
  %v3350 = vld [vmem:[%s9 + $0x148] sm:$0xf]
  %v3351 = vld [vmem:[%s9 + $0x14c] sm:$0xf]
  %v3352 = vld [vmem:[%s9 + $0x150] sm:$0xf]
  %v3353 = vld [vmem:[%s9 + $0x154] sm:$0xf]
  %v3354 = vld [vmem:[%s9 + $0x158] sm:$0xf]
  %v3355 = vld [vmem:[%s9 + $0x15c] sm:$0xf]
  %v3356 = vld [vmem:[%s9 + $0x160] sm:$0xf]
  %v3357 = vld [vmem:[%s9 + $0x164] sm:$0xf]
  %v3358 = vld [vmem:[%s9 + $0x168] sm:$0xf]
  %v3359 = vld [vmem:[%s9 + $0x16c] sm:$0xf]
  %v3360 = vld [vmem:[%s9 + $0x170] sm:$0xf]
  %v3361 = vld [vmem:[%s9 + $0x174] sm:$0xf]
  %v3362 = vld [vmem:[%s9 + $0x178] sm:$0xf]
  %v3363 = vld [vmem:[%s9 + $0x17c] sm:$0xf]
  %v3364 = vld [vmem:[%s9 + $0x180] sm:$0xf]
  %v3365 = vld [vmem:[%s9 + $0x184] sm:$0xf]
  %v3366 = vld [vmem:[%s9 + $0x188] sm:$0xf]
  %v3367 = vld [vmem:[%s9 + $0x18c] sm:$0xf]
  %v3368 = vld [vmem:[%s9 + $0x190] sm:$0xf]
  %v3369 = vld [vmem:[%s9 + $0x194] sm:$0xf]
  %v3370 = vld [vmem:[%s9 + $0x198] sm:$0xf]
  %v3371 = vld [vmem:[%s9 + $0x19c] sm:$0xf]
  %v3372 = vld [vmem:[%s9 + $0x1a0] sm:$0xf]
  %v3373 = vld [vmem:[%s9 + $0x1a4] sm:$0xf]
  %v3374 = vld [vmem:[%s9 + $0x1a8] sm:$0xf]
  %v3375 = vld [vmem:[%s9 + $0x1ac] sm:$0xf]
  %v3376 = vld [vmem:[%s9 + $0x1b0] sm:$0xf]
  %v3377 = vld [vmem:[%s9 + $0x1b4] sm:$0xf]
  %v3378 = vld [vmem:[%s9 + $0x1b8] sm:$0xf]
  %v3379 = vld [vmem:[%s9 + $0x1bc] sm:$0xf]
  %v3380 = vld [vmem:[%s9 + $0x1c0] sm:$0xf]
  %v3381 = vld [vmem:[%s9 + $0x1c4] sm:$0xf]
  %v3382 = vld [vmem:[%s9 + $0x1c8] sm:$0xf]
  %v3383 = vld [vmem:[%s9 + $0x1cc] sm:$0xf]
  %v3384 = vld [vmem:[%s9 + $0x1d0] sm:$0xf]
  %v3385 = vld [vmem:[%s9 + $0x1d4] sm:$0xf]
  %v3386 = vld [vmem:[%s9 + $0x1d8] sm:$0xf]
  %v3387 = vld [vmem:[%s9 + $0x1dc] sm:$0xf]
  %v3388 = vld [vmem:[%s9 + $0x1e0] sm:$0xf]
  %v3389 = vld [vmem:[%s9 + $0x1e4] sm:$0xf]
  %v3390 = vld [vmem:[%s9 + $0x1e8] sm:$0xf]
  %v3391 = vld [vmem:[%s9 + $0x1ec] sm:$0xf]
  %v3392 = vld [vmem:[%s9 + $0x1f0] sm:$0xf]
  %v3393 = vld [vmem:[%s9 + $0x1f4] sm:$0xf]
  %v3394 = vld [vmem:[%s9 + $0x1f8] sm:$0xf]
  %v3395 = vld [vmem:[%s9 + $0x1fc] sm:$0xf]
  %v3396 = vld [vmem:[%s10] sm:$0x1]
  %v3398 = vperm.slane %v3396, 0
  %v3528 = vunpack.c.l.b16 %v3268
  %v3529 = vunpack.c.l.b16 %v3269
  %v3530 = vunpack.c.l.b16 %v3270
  %v3531 = vunpack.c.l.b16 %v3271
  %v3532 = vunpack.c.l.b16 %v3272
  %v3533 = vunpack.c.l.b16 %v3273
  %v3534 = vunpack.c.l.b16 %v3274
  %v3535 = vunpack.c.l.b16 %v3275
  %v3536 = vunpack.c.l.b16 %v3276
  %v3537 = vunpack.c.l.b16 %v3277
  %v3538 = vunpack.c.l.b16 %v3278
  %v3539 = vunpack.c.l.b16 %v3279
  %v3540 = vunpack.c.l.b16 %v3280
  %v3541 = vunpack.c.l.b16 %v3281
  %v3542 = vunpack.c.l.b16 %v3282
  %v3543 = vunpack.c.l.b16 %v3283
  %v3544 = vunpack.c.l.b16 %v3284
  %v3545 = vunpack.c.l.b16 %v3285
  %v3546 = vunpack.c.l.b16 %v3286
  %v3547 = vunpack.c.l.b16 %v3287
  %v3548 = vunpack.c.l.b16 %v3288
  %v3549 = vunpack.c.l.b16 %v3289
  %v3550 = vunpack.c.l.b16 %v3290
  %v3551 = vunpack.c.l.b16 %v3291
  %v3552 = vunpack.c.l.b16 %v3292
  %v3553 = vunpack.c.l.b16 %v3293
  %v3554 = vunpack.c.l.b16 %v3294
  %v3555 = vunpack.c.l.b16 %v3295
  %v3556 = vunpack.c.l.b16 %v3296
  %v3557 = vunpack.c.l.b16 %v3297
  %v3558 = vunpack.c.l.b16 %v3298
  %v3559 = vunpack.c.l.b16 %v3299
  %v3560 = vunpack.c.l.b16 %v3300
  %v3561 = vunpack.c.l.b16 %v3301
  %v3562 = vunpack.c.l.b16 %v3302
  %v3563 = vunpack.c.l.b16 %v3303
  %v3564 = vunpack.c.l.b16 %v3304
  %v3565 = vunpack.c.l.b16 %v3305
  %v3566 = vunpack.c.l.b16 %v3306
  %v3567 = vunpack.c.l.b16 %v3307
  %v3568 = vunpack.c.l.b16 %v3308
  %v3569 = vunpack.c.l.b16 %v3309
  %v3570 = vunpack.c.l.b16 %v3310
  %v3571 = vunpack.c.l.b16 %v3311
  %v3572 = vunpack.c.l.b16 %v3312
  %v3573 = vunpack.c.l.b16 %v3313
  %v3574 = vunpack.c.l.b16 %v3314
  %v3575 = vunpack.c.l.b16 %v3315
  %v3576 = vunpack.c.l.b16 %v3316
  %v3577 = vunpack.c.l.b16 %v3317
  %v3578 = vunpack.c.l.b16 %v3318
  %v3579 = vunpack.c.l.b16 %v3319
  %v3580 = vunpack.c.l.b16 %v3320
  %v3581 = vunpack.c.l.b16 %v3321
  %v3582 = vunpack.c.l.b16 %v3322
  %v3583 = vunpack.c.l.b16 %v3323
  %v3584 = vunpack.c.l.b16 %v3324
  %v3585 = vunpack.c.l.b16 %v3325
  %v3586 = vunpack.c.l.b16 %v3326
  %v3587 = vunpack.c.l.b16 %v3327
  %v3588 = vunpack.c.l.b16 %v3328
  %v3589 = vunpack.c.l.b16 %v3329
  %v3590 = vunpack.c.l.b16 %v3330
  %v3591 = vunpack.c.l.b16 %v3331
  %v3592 = vunpack.c.l.b16 %v3332
  %v3593 = vunpack.c.l.b16 %v3333
  %v3594 = vunpack.c.l.b16 %v3334
  %v3595 = vunpack.c.l.b16 %v3335
  %v3596 = vunpack.c.l.b16 %v3336
  %v3597 = vunpack.c.l.b16 %v3337
  %v3598 = vunpack.c.l.b16 %v3338
  %v3599 = vunpack.c.l.b16 %v3339
  %v3600 = vunpack.c.l.b16 %v3340
  %v3601 = vunpack.c.l.b16 %v3341
  %v3602 = vunpack.c.l.b16 %v3342
  %v3603 = vunpack.c.l.b16 %v3343
  %v3604 = vunpack.c.l.b16 %v3344
  %v3605 = vunpack.c.l.b16 %v3345
  %v3606 = vunpack.c.l.b16 %v3346
  %v3607 = vunpack.c.l.b16 %v3347
  %v3608 = vunpack.c.l.b16 %v3348
  %v3609 = vunpack.c.l.b16 %v3349
  %v3610 = vunpack.c.l.b16 %v3350
  %v3611 = vunpack.c.l.b16 %v3351
  %v3612 = vunpack.c.l.b16 %v3352
  %v3613 = vunpack.c.l.b16 %v3353
  %v3614 = vunpack.c.l.b16 %v3354
  %v3615 = vunpack.c.l.b16 %v3355
  %v3616 = vunpack.c.l.b16 %v3356
  %v3617 = vunpack.c.l.b16 %v3357
  %v3618 = vunpack.c.l.b16 %v3358
  %v3619 = vunpack.c.l.b16 %v3359
  %v3620 = vunpack.c.l.b16 %v3360
  %v3621 = vunpack.c.l.b16 %v3361
  %v3622 = vunpack.c.l.b16 %v3362
  %v3623 = vunpack.c.l.b16 %v3363
  %v3624 = vunpack.c.l.b16 %v3364
  %v3625 = vunpack.c.l.b16 %v3365
  %v3626 = vunpack.c.l.b16 %v3366
  %v3627 = vunpack.c.l.b16 %v3367
  %v3628 = vunpack.c.l.b16 %v3368
  %v3629 = vunpack.c.l.b16 %v3369
  %v3630 = vunpack.c.l.b16 %v3370
  %v3631 = vunpack.c.l.b16 %v3371
  %v3632 = vunpack.c.l.b16 %v3372
  %v3633 = vunpack.c.l.b16 %v3373
  %v3634 = vunpack.c.l.b16 %v3374
  %v3635 = vunpack.c.l.b16 %v3375
  %v3636 = vunpack.c.l.b16 %v3376
  %v3637 = vunpack.c.l.b16 %v3377
  %v3638 = vunpack.c.l.b16 %v3378
  %v3639 = vunpack.c.l.b16 %v3379
  %v3640 = vunpack.c.l.b16 %v3380
  %v3641 = vunpack.c.l.b16 %v3381
  %v3642 = vunpack.c.l.b16 %v3382
  %v3643 = vunpack.c.l.b16 %v3383
  %v3644 = vunpack.c.l.b16 %v3384
  %v3645 = vunpack.c.l.b16 %v3385
  %v3646 = vunpack.c.l.b16 %v3386
  %v3647 = vunpack.c.l.b16 %v3387
  %v3648 = vunpack.c.l.b16 %v3388
  %v3649 = vunpack.c.l.b16 %v3389
  %v3650 = vunpack.c.l.b16 %v3390
  %v3651 = vunpack.c.l.b16 %v3391
  %v3652 = vunpack.c.l.b16 %v3392
  %v3653 = vunpack.c.l.b16 %v3393
  %v3654 = vunpack.c.l.b16 %v3394
  %v3655 = vunpack.c.l.b16 %v3395
  %v3656 = vpack.c.b16 %v3529, %v3528
  %v3657 = vpack.c.b16 %v3531, %v3530
  %v3658 = vpack.c.b16 %v3533, %v3532
  %v3659 = vpack.c.b16 %v3535, %v3534
  %v3660 = vpack.c.b16 %v3537, %v3536
  %v3661 = vpack.c.b16 %v3539, %v3538
  %v3662 = vpack.c.b16 %v3541, %v3540
  %v3663 = vpack.c.b16 %v3543, %v3542
  %v3664 = vpack.c.b16 %v3545, %v3544
  %v3665 = vpack.c.b16 %v3547, %v3546
  %v3666 = vpack.c.b16 %v3549, %v3548
  %v3667 = vpack.c.b16 %v3551, %v3550
  %v3668 = vpack.c.b16 %v3553, %v3552
  %v3669 = vpack.c.b16 %v3555, %v3554
  %v3670 = vpack.c.b16 %v3557, %v3556
  %v3671 = vpack.c.b16 %v3559, %v3558
  %v3672 = vpack.c.b16 %v3561, %v3560
  %v3673 = vpack.c.b16 %v3563, %v3562
  %v3674 = vpack.c.b16 %v3565, %v3564
  %v3675 = vpack.c.b16 %v3567, %v3566
  %v3676 = vpack.c.b16 %v3569, %v3568
  %v3677 = vpack.c.b16 %v3571, %v3570
  %v3678 = vpack.c.b16 %v3573, %v3572
  %v3679 = vpack.c.b16 %v3575, %v3574
  %v3680 = vpack.c.b16 %v3577, %v3576
  %v3681 = vpack.c.b16 %v3579, %v3578
  %v3682 = vpack.c.b16 %v3581, %v3580
  %v3683 = vpack.c.b16 %v3583, %v3582
  %v3684 = vpack.c.b16 %v3585, %v3584
  %v3685 = vpack.c.b16 %v3587, %v3586
  %v3686 = vpack.c.b16 %v3589, %v3588
  %v3687 = vpack.c.b16 %v3591, %v3590
  %v3688 = vpack.c.b16 %v3593, %v3592
  %v3689 = vpack.c.b16 %v3595, %v3594
  %v3690 = vpack.c.b16 %v3597, %v3596
  %v3691 = vpack.c.b16 %v3599, %v3598
  %v3692 = vpack.c.b16 %v3601, %v3600
  %v3693 = vpack.c.b16 %v3603, %v3602
  %v3694 = vpack.c.b16 %v3605, %v3604
  %v3695 = vpack.c.b16 %v3607, %v3606
  %v3696 = vpack.c.b16 %v3609, %v3608
  %v3697 = vpack.c.b16 %v3611, %v3610
  %v3698 = vpack.c.b16 %v3613, %v3612
  %v3699 = vpack.c.b16 %v3615, %v3614
  %v3700 = vpack.c.b16 %v3617, %v3616
  %v3701 = vpack.c.b16 %v3619, %v3618
  %v3702 = vpack.c.b16 %v3621, %v3620
  %v3703 = vpack.c.b16 %v3623, %v3622
  %v3704 = vpack.c.b16 %v3625, %v3624
  %v3705 = vpack.c.b16 %v3627, %v3626
  %v3706 = vpack.c.b16 %v3629, %v3628
  %v3707 = vpack.c.b16 %v3631, %v3630
  %v3708 = vpack.c.b16 %v3633, %v3632
  %v3709 = vpack.c.b16 %v3635, %v3634
  %v3710 = vpack.c.b16 %v3637, %v3636
  %v3711 = vpack.c.b16 %v3639, %v3638
  %v3712 = vpack.c.b16 %v3641, %v3640
  %v3713 = vpack.c.b16 %v3643, %v3642
  %v3714 = vpack.c.b16 %v3645, %v3644
  %v3715 = vpack.c.b16 %v3647, %v3646
  %v3716 = vpack.c.b16 %v3649, %v3648
  %v3717 = vpack.c.b16 %v3651, %v3650
  %v3718 = vpack.c.b16 %v3653, %v3652
  %v3719 = vpack.c.b16 %v3655, %v3654
  %3784 = vmatpush.bf16.msra.mxu0 %v3663
  %3785 = vmatpush.bf16.msra.mxu0 %v3662
  %3786 = vmatpush.bf16.msra.mxu0 %v3661
  %3787 = vmatpush.bf16.msra.mxu0 %v3660
  %3788 = vmatpush.bf16.msra.mxu0 %v3659
  %3789 = vmatpush.bf16.msra.mxu0 %v3658
  %3790 = vmatpush.bf16.msra.mxu0 %v3657
  %3791 = vmatpush.bf16.msra.mxu0 %v3656
  %3792 = vmatmul.bf16.gmra.mxu0 %v3260
  %v3793 = vpop.f32.mrf.mxu0
  %v3794 = vadd.f32 %v3398, %v3793
  %v3795 = vpop.f32.mrf.mxu0
  %3796 = vdwg.mxu0
  %3797 = vmatpush.bf16.msra.mxu0 %v3671
  %3798 = vmatpush.bf16.msra.mxu0 %v3670
  %3799 = vmatpush.bf16.msra.mxu0 %v3669
  %3800 = vmatpush.bf16.msra.mxu0 %v3668
  %3801 = vmatpush.bf16.msra.mxu0 %v3667
  %3802 = vmatpush.bf16.msra.mxu0 %v3666
  %3803 = vmatpush.bf16.msra.mxu0 %v3665
  %3804 = vmatpush.bf16.msra.mxu0 %v3664
  %3805 = vmatmul.bf16.gmra.mxu0 %v3261
  %v3806 = vpop.f32.mrf.mxu0
  %v3807 = vadd.f32 %v3794, %v3806
  %v3808 = vpop.f32.mrf.mxu0
  %3809 = vdwg.mxu0
  %3810 = vmatpush.bf16.msra.mxu0 %v3679
  %3811 = vmatpush.bf16.msra.mxu0 %v3678
  %3812 = vmatpush.bf16.msra.mxu0 %v3677
  %3813 = vmatpush.bf16.msra.mxu0 %v3676
  %3814 = vmatpush.bf16.msra.mxu0 %v3675
  %3815 = vmatpush.bf16.msra.mxu0 %v3674
  %3816 = vmatpush.bf16.msra.mxu0 %v3673
  %3817 = vmatpush.bf16.msra.mxu0 %v3672
  %3818 = vmatmul.bf16.gmra.mxu0 %v3262
  %v3819 = vpop.f32.mrf.mxu0
  %v3820 = vadd.f32 %v3807, %v3819
  %v3821 = vpop.f32.mrf.mxu0
  %3822 = vdwg.mxu0
  %3823 = vmatpush.bf16.msra.mxu0 %v3687
  %3824 = vmatpush.bf16.msra.mxu0 %v3686
  %3825 = vmatpush.bf16.msra.mxu0 %v3685
  %3826 = vmatpush.bf16.msra.mxu0 %v3684
  %3827 = vmatpush.bf16.msra.mxu0 %v3683
  %3828 = vmatpush.bf16.msra.mxu0 %v3682
  %3829 = vmatpush.bf16.msra.mxu0 %v3681
  %3830 = vmatpush.bf16.msra.mxu0 %v3680
  %3831 = vmatmul.bf16.gmra.mxu0 %v3263
  %v3832 = vpop.f32.mrf.mxu0
  %v3833 = vadd.f32 %v3820, %v3832
  %v3834 = vpop.f32.mrf.mxu0
  %3835 = vdwg.mxu0
  %3836 = vmatpush.bf16.msra.mxu0 %v3695
  %3837 = vmatpush.bf16.msra.mxu0 %v3694
  %3838 = vmatpush.bf16.msra.mxu0 %v3693
  %3839 = vmatpush.bf16.msra.mxu0 %v3692
  %3840 = vmatpush.bf16.msra.mxu0 %v3691
  %3841 = vmatpush.bf16.msra.mxu0 %v3690
  %3842 = vmatpush.bf16.msra.mxu0 %v3689
  %3843 = vmatpush.bf16.msra.mxu0 %v3688
  %3844 = vmatmul.bf16.gmra.mxu0 %v3264
  %v3845 = vpop.f32.mrf.mxu0
  %v3846 = vadd.f32 %v3833, %v3845
  %v3847 = vpop.f32.mrf.mxu0
  %3848 = vdwg.mxu0
  %3849 = vmatpush.bf16.msra.mxu0 %v3703
  %3850 = vmatpush.bf16.msra.mxu0 %v3702
  %3851 = vmatpush.bf16.msra.mxu0 %v3701
  %3852 = vmatpush.bf16.msra.mxu0 %v3700
  %3853 = vmatpush.bf16.msra.mxu0 %v3699
  %3854 = vmatpush.bf16.msra.mxu0 %v3698
  %3855 = vmatpush.bf16.msra.mxu0 %v3697
  %3856 = vmatpush.bf16.msra.mxu0 %v3696
  %3857 = vmatmul.bf16.gmra.mxu0 %v3265
  %v3858 = vpop.f32.mrf.mxu0
  %v3859 = vadd.f32 %v3846, %v3858
  %v3860 = vpop.f32.mrf.mxu0
  %3861 = vdwg.mxu0
  %3862 = vmatpush.bf16.msra.mxu0 %v3711
  %3863 = vmatpush.bf16.msra.mxu0 %v3710
  %3864 = vmatpush.bf16.msra.mxu0 %v3709
  %3865 = vmatpush.bf16.msra.mxu0 %v3708
  %3866 = vmatpush.bf16.msra.mxu0 %v3707
  %3867 = vmatpush.bf16.msra.mxu0 %v3706
  %3868 = vmatpush.bf16.msra.mxu0 %v3705
  %3869 = vmatpush.bf16.msra.mxu0 %v3704
  %3870 = vmatmul.bf16.gmra.mxu0 %v3266
  %v3871 = vpop.f32.mrf.mxu0
  %v3872 = vadd.f32 %v3859, %v3871
  %v3873 = vpop.f32.mrf.mxu0
  %3874 = vdwg.mxu0
  %3875 = vmatpush.bf16.msra.mxu0 %v3719
  %3876 = vmatpush.bf16.msra.mxu0 %v3718
  %3877 = vmatpush.bf16.msra.mxu0 %v3717
  %3878 = vmatpush.bf16.msra.mxu0 %v3716
  %3879 = vmatpush.bf16.msra.mxu0 %v3715
  %3880 = vmatpush.bf16.msra.mxu0 %v3714
  %3881 = vmatpush.bf16.msra.mxu0 %v3713
  %3882 = vmatpush.bf16.msra.mxu0 %v3712
  %3883 = vmatmul.bf16.gmra.mxu0 %v3267
  %v3884 = vpop.f32.mrf.mxu0
  %v3885 = vadd.f32 %v3872, %v3884
  %v3886 = vpop.f32.mrf.mxu0
  %3887 = vdwg.mxu0
  %vm3888 = vcmask 48128
  %v3889 = vsel %vm3888, %v3885, 0.0
  %3890 = vadd.xlane.f32.xlu0 %v3889
  %v3891 = vpop.xlane.xlu0 %3890
  %v3892 = vrcp.pop 6.0
  %v3893 = vmul.f32 6.0, %v3892
  %v3894 = vsub.f32 1.0, %v3893
  %v3895 = vmul.f32 %v3892, %v3894
  %v3896 = vadd.f32 %v3892, %v3895
  %vm3897 = vweird.f32 %v3892
  %v3898 = vsel %vm3897, %v3892, %v3896
  %v3899 = vmul.f32 %v3891, %v3898
  %v3900 = vsub.f32 %v3885, %v3899
  %3902 = vset.pattern.permute.xlu0 6
  %3903 = vperm.xlu0 %3902, %v3900
  %v3904 = vpop.permute.xlu0 %3903
  %v3906 = vadd.f32 %v3885, %v3904
  %3907 = vst [vmem:[%s11] sm:$0xff] %v3906
  // Predicated region
  $region46: #{_lambda_.1} parent=0 // pred_check
    _
  $region47: #{_lambda_.1} parent=0 // pred_check_branch
    %3909 = sbr.rel (0) target = $region49
  $region48: #{_lambda_.1} parent=0 // pred_region
    _
  $region49: #{_lambda_.1} parent=0 // pred_fallthru
    _
  // Predicated region
  $region50: #{_lambda_.1} parent=0 // pred_check
    _
  $region51: #{_lambda_.1} parent=0 // pred_check_branch
    %3911 = sbr.rel (0) target = $region53
  $region52: #{_lambda_.1} parent=0 // pred_region
    _
  $region53: #{_lambda_.1} parent=0 // pred_fallthru
    _

</llo_original>
